<compile_context>
chip_gen: v7x
topology: tpu7x:2x2x1
jax: 0.10.0
libtpu: 0.0.40
codegen_flags: <defaults>
</compile_context>

<pallas_src>
import functools

import jax
import jax.numpy as jnp
from jax.experimental import pallas as pl
from jax.experimental.pallas import tpu as pltpu


def _round_up(x, m):
    return ((x + m - 1) // m) * m


# ---------------------------------------------------------------------------
# Conv2d ('same') + optional GLU  — one big-K MXU matmul per spatial tile.
# ---------------------------------------------------------------------------
def _conv_glu_kernel(x_ref, w_ref, b_ref, o_ref, *, KH, KW, Wp, Cout, TQ, glu):
    max_off = (KH - 1) * Wp + (KW - 1)
    q0 = pl.multiple_of(pl.program_id(1) * TQ, 128)
    # One lane-aligned dynamic window load; per-tap shifts are static value
    # slices (lane rolls) concatenated into a single im2col matrix.
    win = x_ref[:, :, pl.ds(q0, TQ + max_off)][0]           # [Cin_p, TQ+max_off] bf16
    pieces = []
    for kh in range(KH):
        base = kh * Wp
        for kw in range(KW):
            off = base + kw
            pieces.append(win[:, off:off + TQ])
    patches = jnp.concatenate(pieces, axis=0)               # [KH*KW*Cin_p, TQ]
    acc = jnp.dot(w_ref[...], patches,
                  preferred_element_type=jnp.float32)       # [Cout2, TQ] fp32
    acc = acc + b_ref[...]                                  # + [Cout2, 1]
    if glu:
        out = acc[:Cout, :] * jax.nn.sigmoid(acc[Cout:, :])  # sublane-aligned split
    else:
        out = acc
    o_ref[...] = out[None].astype(o_ref.dtype)


def conv2d_glu(x, w, b, *, glu, out_dtype=jnp.bfloat16):
    """'same'-padded Conv2d (+ optional GLU) as a Pallas TPU kernel.

    x: [B, Cin, H, W]   (NCHW, float32 or bfloat16)
    w: [Cout2, KH, KW, Cin]
    b: [Cout2]
    returns [B, Cout, H, W] with Cout = Cout2//2 if glu else Cout2.
    """
    B, Cin, H, W = x.shape
    Cout2, KH, KW, _ = w.shape
    ph, pw = KH // 2, KW // 2
    Cout = Cout2 // 2 if glu else Cout2
    Cin_p = _round_up(Cin, 8)                 # sublane-aligned channel count
    Hp, Wp = H + 2 * ph, W + 2 * pw

    # Flattened padded spatial coordinate q = h*Wp + w: tap (kh,kw) is a
    # constant shift kh*Wp + kw of the flat array; invalid (wrap) columns are
    # computed but sliced away in the wrapper.
    Nq = (H - 1) * Wp + W
    Nq_pad = _round_up(Nq, 128)
    TQ = min(256, Nq_pad)
    Nq_pad = _round_up(Nq_pad, TQ)
    max_off = (KH - 1) * Wp + (KW - 1)
    L_pad = Nq_pad + max_off
    Ktot = KH * KW * Cin_p

    xp = jnp.pad(x, ((0, 0), (0, Cin_p - Cin), (ph, ph), (pw, pw)))
    xflat = xp.reshape(B, Cin_p, Hp * Wp)
    xflat = jnp.pad(xflat, ((0, 0), (0, 0), (0, L_pad - Hp * Wp)))
    xflat = xflat.astype(jnp.bfloat16)

    wr = jnp.pad(w, ((0, 0), (0, 0), (0, 0), (0, Cin_p - Cin)))
    wr = wr.reshape(Cout2, Ktot).astype(jnp.bfloat16)
    bf = b.reshape(Cout2, 1).astype(jnp.float32)

    kernel = functools.partial(_conv_glu_kernel, KH=KH, KW=KW, Wp=Wp,
                               Cout=Cout, TQ=TQ, glu=glu)
    out_flat = pl.pallas_call(
        kernel,
        out_shape=jax.ShapeDtypeStruct((B, Cout, Nq_pad), out_dtype),
        grid=(B, Nq_pad // TQ),
        in_specs=[
            # full flat plane resident per batch (re-used across q tiles)
            pl.BlockSpec((1, Cin_p, L_pad), lambda bb, qq: (bb, 0, 0)),
            pl.BlockSpec((Cout2, Ktot), lambda bb, qq: (0, 0)),
            pl.BlockSpec((Cout2, 1), lambda bb, qq: (0, 0)),
        ],
        out_specs=pl.BlockSpec((1, Cout, TQ), lambda bb, qq: (bb, 0, qq)),
        compiler_params=pltpu.CompilerParams(
            dimension_semantics=("parallel", "parallel"),
            vmem_limit_bytes=48 * 1024 * 1024),
    )(xflat, wr, bf)

    # q -> (h, w) unflatten in plain JAX; drop W-padding junk columns.
    need = H * Wp
    if out_flat.shape[-1] < need:
        out_flat = jnp.pad(out_flat,
                           ((0, 0), (0, 0), (0, need - out_flat.shape[-1])))
    out = out_flat[:, :, :need].reshape(B, Cout, H, Wp)[:, :, :, :W]
    return out


# ---------------------------------------------------------------------------
# Elementwise Pallas kernels: magswap, fused 7-channel DNN-input builder.
# ---------------------------------------------------------------------------
_EPS = 1e-12  # guards mag*x/|x| against zero bins (matches torch up to 1e-12)


def _magswap_kernel(xr_ref, xi_ref, m_ref, yr_ref, yi_ref):
    xr = xr_ref[...]
    xi = xi_ref[...]
    s = m_ref[...] * jax.lax.rsqrt(xr * xr + xi * xi + _EPS)
    yr_ref[...] = xr * s
    yi_ref[...] = xi * s


def magswap(x_re, x_im, mag):
    """y = mag * x / |x|, complex carried as (re, im) float32 [B, F, T]."""
    B, F, T = x_re.shape
    spec = pl.BlockSpec((1, F, T), lambda b: (b, 0, 0))
    shp = jax.ShapeDtypeStruct((B, F, T), jnp.float32)
    return pl.pallas_call(
        _magswap_kernel,
        out_shape=(shp, shp),
        grid=(B,),
        in_specs=[spec, spec, spec],
        out_specs=(spec, spec),
        compiler_params=pltpu.CompilerParams(dimension_semantics=("parallel",)),
    )(x_re, x_im, mag)


def _dnn_in_kernel(xr_ref, xi_ref, zr_ref, zi_ref, m_ref, o_ref):
    xr = xr_ref[0]
    xi = xi_ref[0]
    m = m_ref[0]
    s = m * jax.lax.rsqrt(xr * xr + xi * xi + _EPS)   # recompute magswap (free)
    dt = o_ref.dtype
    o_ref[0, 0, :, :] = xr.astype(dt)
    o_ref[0, 1, :, :] = xi.astype(dt)
    o_ref[0, 2, :, :] = (xr * s).astype(dt)
    o_ref[0, 3, :, :] = (xi * s).astype(dt)
    o_ref[0, 4, :, :] = zr_ref[0].astype(dt)
    o_ref[0, 5, :, :] = zi_ref[0].astype(dt)
    o_ref[0, 6, :, :] = m.astype(dt)


def build_dnn_in(x_re, x_im, z_re, z_im, mag):
    """Fused [x.re, x.im, y.re, y.im, z.re, z.im, mag] channel stack -> bf16."""
    B, F, T = x_re.shape
    spec = pl.BlockSpec((1, F, T), lambda b: (b, 0, 0))
    return pl.pallas_call(
        _dnn_in_kernel,
        out_shape=jax.ShapeDtypeStruct((B, 7, F, T), jnp.bfloat16),
        grid=(B,),
        in_specs=[spec] * 5,
        out_specs=pl.BlockSpec((1, 7, F, T), lambda b: (b, 0, 0, 0)),
        compiler_params=pltpu.CompilerParams(dimension_semantics=("parallel",)),
    )(x_re, x_im, z_re, z_im, mag)


# ---------------------------------------------------------------------------
# STFT / ISTFT glue (rectangular window, center=True, hop = n_fft // 2).
# TODO(synk): no Pallas FFT primitive — plain JAX jnp.fft.
# ---------------------------------------------------------------------------
def _istft(Y, n_fft, hop):
    # Y: [B, F, T] complex64 -> [B, hop*(T-1)] float32
    B, F, T = Y.shape
    frames = jnp.fft.irfft(Y, n=n_fft, axis=1)           # [B, n_fft, T]
    frames = jnp.transpose(frames, (0, 2, 1))            # [B, T, n_fft]
    out_len = n_fft + hop * (T - 1)
    idx = (jnp.arange(T)[:, None] * hop + jnp.arange(n_fft)[None, :]).reshape(-1)
    sig = jnp.zeros((B, out_len), jnp.float32).at[:, idx].add(
        frames.reshape(B, T * n_fft).astype(jnp.float32))
    env = jnp.zeros((out_len,), jnp.float32).at[idx].add(jnp.ones(T * n_fft))
    sig = sig / env
    pad = n_fft // 2
    return sig[:, pad:pad + hop * (T - 1)]


def _stft(x, n_fft, hop):
    # x: [B, L] float32 -> [B, F, T] complex64
    pad = n_fft // 2
    xp = jnp.pad(x, ((0, 0), (pad, pad)), mode="reflect")
    T = 1 + (xp.shape[1] - n_fft) // hop
    idx = jnp.arange(T)[:, None] * hop + jnp.arange(n_fft)[None, :]
    frames = xp[:, idx]                                   # [B, T, n_fft]
    Z = jnp.fft.rfft(frames, axis=-1)                     # [B, T, F]
    return jnp.transpose(Z, (0, 2, 1)).astype(jnp.complex64)


# ---------------------------------------------------------------------------
# DNN block (convGLU x4 + residual + final conv), all convs via Pallas.
# ---------------------------------------------------------------------------
HIDDEN = 32


def _init_conv(key, kh, kw, cin, cout2):
    k1, k2 = jax.random.split(key)
    fan_in = cin * kh * kw
    w = jax.random.normal(k1, (cout2, kh, kw, cin), jnp.float32) / jnp.sqrt(fan_in)
    b = jax.random.normal(k2, (cout2,), jnp.float32) * 0.01
    return w, b


def init_dnn_params(key):
    ks = jax.random.split(key, 5)
    return {
        "glu1": _init_conv(ks[0], 11, 11, 7, 2 * HIDDEN),
        "glu2": _init_conv(ks[1], 7, 3, HIDDEN, 2 * HIDDEN),
        "glu3": _init_conv(ks[2], 7, 3, HIDDEN, 2 * HIDDEN),
        "glu4": _init_conv(ks[3], 7, 3, HIDDEN, 2 * HIDDEN),
        "final": _init_conv(ks[4], 7, 3, HIDDEN, 2),
    }


def dnn_apply(params, x):
    # x: [B, 7, F, T] (bf16)  ->  [B, 2, F, T] (f32)
    h = conv2d_glu(x, *params["glu1"], glu=True, out_dtype=jnp.bfloat16)
    res = h
    h = conv2d_glu(h, *params["glu2"], glu=True, out_dtype=jnp.bfloat16)
    h = conv2d_glu(h, *params["glu3"], glu=True, out_dtype=jnp.bfloat16)
    h = h + res                                           # residual (bf16)
    h = conv2d_glu(h, *params["glu4"], glu=True, out_dtype=jnp.bfloat16)
    h = conv2d_glu(h, *params["final"], glu=False, out_dtype=jnp.float32)
    return h


# ---------------------------------------------------------------------------
# DeepGriffinLim forward
# ---------------------------------------------------------------------------
def deep_griffin_lim_forward(params_list, x_tilda, mag, n_fft, hop):
    """x_tilda: [B,1,F,T] complex64, mag: [B,1,F,T] float32."""
    x_r = jnp.real(x_tilda)[:, 0].astype(jnp.float32)
    x_i = jnp.imag(x_tilda)[:, 0].astype(jnp.float32)
    m = mag[:, 0].astype(jnp.float32)
    subblock_out = []
    z_r = z_i = res_r = res_i = None
    for params in params_list:
        y_r, y_i = magswap(x_r, x_i, m)                            # Pallas
        y = (y_r + 1j * y_i).astype(jnp.complex64)
        z = _stft(_istft(y, n_fft, hop), n_fft, hop)               # [B,F,T]
        z_r = jnp.real(z).astype(jnp.float32)
        z_i = jnp.imag(z).astype(jnp.float32)
        dnn_in = build_dnn_in(x_r, x_i, z_r, z_i, m)               # Pallas, bf16
        dnn_out = dnn_apply(params, dnn_in)                        # [B,2,F,T]
        res_r = dnn_out[:, 0]
        res_i = dnn_out[:, 1]
        x_r = z_r - res_r
        x_i = z_i - res_i
        subblock_out.append((res_r + 1j * res_i).astype(jnp.complex64))
    f_r, f_i = magswap(x_r, x_i, m)
    final = (f_r + 1j * f_i).astype(jnp.complex64)[:, None]
    z_out = (z_r + 1j * z_i).astype(jnp.complex64)[:, None]
    res_out = (res_r + 1j * res_i).astype(jnp.complex64)[:, None]
    # Mimic the torch in-place unsqueeze_ quirk on the last subblock entry.
    subblock_out[-1] = subblock_out[-1][:, None]
    return z_out, res_out, final, subblock_out


# ---------------------------------------------------------------------------
if __name__ == "__main__":
    B = 2
    n_fft, hop = 16, 8          # small stand-in for 1024/512
    F = n_fft // 2 + 1          # 9
    T = 8
    BLOCKS = 2                  # small stand-in for 10 DNN blocks

    key = jax.random.PRNGKey(0)
    k_xr, k_xi, k_m, k_p = jax.random.split(key, 4)
    x_re = jax.random.normal(k_xr, (B, 1, F, T), jnp.float32)
    x_im = jax.random.normal(k_xi, (B, 1, F, T), jnp.float32)
    x_tilda = (x_re + 1j * x_im).astype(jnp.complex64)
    mag = jnp.abs(jax.random.normal(k_m, (B, 1, F, T), jnp.float32)) + 0.1

    params_list = [init_dnn_params(jax.random.fold_in(k_p, i))
                   for i in range(BLOCKS)]

    fwd = jax.jit(functools.partial(deep_griffin_lim_forward,
                                    params_list, n_fft=n_fft, hop=hop))
    z_out, res_out, final_out, sub_out = fwd(x_tilda, mag)
    jax.block_until_ready((z_out, res_out, final_out, sub_out))

    assert z_out.shape == (B, 1, F, T) and z_out.dtype == jnp.complex64
    assert res_out.shape == (B, 1, F, T)
    assert final_out.shape == (B, 1, F, T)
    assert len(sub_out) == BLOCKS
    print("KERNEL_OK")
</pallas_src>

<mosaic_0001>
module attributes {stable_mosaic.version = 11 : i64} {
  func.func private @main(%arg0: i32) attributes {dimension_semantics = [#tpu.dimension_semantics<core_parallel>], iteration_bounds = array<i64: 2>, tpu.core_type = #tpu.core_type<sc_scalar_subcore>, window_params = []} {
    return
  }
}

module attributes {stable_mosaic.version = 11 : i64} {
  func.func private @main(%arg0: i32) attributes {dimension_semantics = [#tpu.dimension_semantics<core_parallel>], iteration_bounds = array<i64: 2>, tpu.core_type = #tpu.core_type<sc_scalar_subcore>, window_params = []} {
    return
  }
}

module attributes {stable_mosaic.version = 11 : i64} {
  func.func @_magswap_kernel(%arg0: i32, %arg1: memref<1x9x8xf32, #tpu.memory_space<vmem>>, %arg2: memref<1x9x8xf32, #tpu.memory_space<vmem>>, %arg3: memref<1x9x8xf32, #tpu.memory_space<vmem>>, %arg4: memref<1x9x8xf32, #tpu.memory_space<vmem>>, %arg5: memref<1x9x8xf32, #tpu.memory_space<vmem>>) attributes {dimension_semantics = [#tpu.dimension_semantics<parallel>], iteration_bounds = array<i64: 2>, scalar_prefetch = 0 : i64, scratch_operands = 0 : i64, tpu.core_type = #tpu.core_type<tc>, window_params = [{transform_indices = @transform_0, window_bounds = array<i64: 1, 9, 8>}, {transform_indices = @transform_1, window_bounds = array<i64: 1, 9, 8>}, {transform_indices = @transform_2, window_bounds = array<i64: 1, 9, 8>}, {transform_indices = @transform_3, window_bounds = array<i64: 1, 9, 8>}, {transform_indices = @transform_4, window_bounds = array<i64: 1, 9, 8>}]} {
    %c0 = arith.constant 0 : index
    %c0_0 = arith.constant 0 : index
    %c0_1 = arith.constant 0 : index
    %0 = vector.load %arg1[%c0, %c0_0, %c0_1] : memref<1x9x8xf32, #tpu.memory_space<vmem>>, vector<1x9x8xf32>
    %c0_2 = arith.constant 0 : index
    %c0_3 = arith.constant 0 : index
    %c0_4 = arith.constant 0 : index
    %1 = vector.load %arg2[%c0_2, %c0_3, %c0_4] : memref<1x9x8xf32, #tpu.memory_space<vmem>>, vector<1x9x8xf32>
    %c0_5 = arith.constant 0 : index
    %c0_6 = arith.constant 0 : index
    %c0_7 = arith.constant 0 : index
    %2 = vector.load %arg3[%c0_5, %c0_6, %c0_7] : memref<1x9x8xf32, #tpu.memory_space<vmem>>, vector<1x9x8xf32>
    %3 = arith.mulf %0, %0 : vector<1x9x8xf32>
    %4 = arith.mulf %1, %1 : vector<1x9x8xf32>
    %5 = arith.addf %3, %4 : vector<1x9x8xf32>
    %cst = arith.constant 9.99999996E-13 : f32
    %6 = vector.broadcast %cst : f32 to vector<1x9x8xf32>
    %7 = arith.addf %5, %6 : vector<1x9x8xf32>
    %8 = math.rsqrt %7 : vector<1x9x8xf32>
    %9 = arith.mulf %2, %8 : vector<1x9x8xf32>
    %10 = arith.mulf %0, %9 : vector<1x9x8xf32>
    %c0_8 = arith.constant 0 : index
    %c0_9 = arith.constant 0 : index
    %c0_10 = arith.constant 0 : index
    %11 = vector.load %arg4[%c0_8, %c0_9, %c0_10] : memref<1x9x8xf32, #tpu.memory_space<vmem>>, vector<1x9x8xf32>
    tpu.vector_store %arg4[%c0_8, %c0_9, %c0_10], %10 {strides = array<i32>} : memref<1x9x8xf32, #tpu.memory_space<vmem>>, vector<1x9x8xf32>,
    %12 = arith.mulf %1, %9 : vector<1x9x8xf32>
    %c0_11 = arith.constant 0 : index
    %c0_12 = arith.constant 0 : index
    %c0_13 = arith.constant 0 : index
    %13 = vector.load %arg5[%c0_11, %c0_12, %c0_13] : memref<1x9x8xf32, #tpu.memory_space<vmem>>, vector<1x9x8xf32>
    tpu.vector_store %arg5[%c0_11, %c0_12, %c0_13], %12 {strides = array<i32>} : memref<1x9x8xf32, #tpu.memory_space<vmem>>, vector<1x9x8xf32>,
    return
  }
  func.func @transform_0(%arg0: i32) -> (i32, i32, i32) {
    %c0_i32 = arith.constant 0 : i32
    %c0_i32_0 = arith.constant 0 : i32
    %c0_i32_1 = arith.constant 0 : i32
    return %arg0, %c0_i32, %c0_i32_0 : i32, i32, i32
  }
  func.func @transform_1(%arg0: i32) -> (i32, i32, i32) {
    %c0_i32 = arith.constant 0 : i32
    %c0_i32_0 = arith.constant 0 : i32
    %c0_i32_1 = arith.constant 0 : i32
    return %arg0, %c0_i32, %c0_i32_0 : i32, i32, i32
  }
  func.func @transform_2(%arg0: i32) -> (i32, i32, i32) {
    %c0_i32 = arith.constant 0 : i32
    %c0_i32_0 = arith.constant 0 : i32
    %c0_i32_1 = arith.constant 0 : i32
    return %arg0, %c0_i32, %c0_i32_0 : i32, i32, i32
  }
  func.func @transform_3(%arg0: i32) -> (i32, i32, i32) {
    %c0_i32 = arith.constant 0 : i32
    %c0_i32_0 = arith.constant 0 : i32
    %c0_i32_1 = arith.constant 0 : i32
    return %arg0, %c0_i32, %c0_i32_0 : i32, i32, i32
  }
  func.func @transform_4(%arg0: i32) -> (i32, i32, i32) {
    %c0_i32 = arith.constant 0 : i32
    %c0_i32_0 = arith.constant 0 : i32
    %c0_i32_1 = arith.constant 0 : i32
    return %arg0, %c0_i32, %c0_i32_0 : i32, i32, i32
  }
}

module attributes {stable_mosaic.version = 11 : i64} {
  func.func @_dnn_in_kernel(%arg0: i32, %arg1: memref<1x9x8xf32, #tpu.memory_space<vmem>>, %arg2: memref<1x9x8xf32, #tpu.memory_space<vmem>>, %arg3: memref<1x9x8xf32, #tpu.memory_space<vmem>>, %arg4: memref<1x9x8xf32, #tpu.memory_space<vmem>>, %arg5: memref<1x9x8xf32, #tpu.memory_space<vmem>>, %arg6: memref<1x7x9x8xbf16, #tpu.memory_space<vmem>>) attributes {dimension_semantics = [#tpu.dimension_semantics<parallel>], iteration_bounds = array<i64: 2>, scalar_prefetch = 0 : i64, scratch_operands = 0 : i64, tpu.core_type = #tpu.core_type<tc>, window_params = [{transform_indices = @transform_0, window_bounds = array<i64: 1, 9, 8>}, {transform_indices = @transform_1, window_bounds = array<i64: 1, 9, 8>}, {transform_indices = @transform_2, window_bounds = array<i64: 1, 9, 8>}, {transform_indices = @transform_3, window_bounds = array<i64: 1, 9, 8>}, {transform_indices = @transform_4, window_bounds = array<i64: 1, 9, 8>}, {transform_indices = @transform_5, window_bounds = array<i64: 1, 7, 9, 8>}]} {
    %c0 = arith.constant 0 : index
    %c0_0 = arith.constant 0 : index
    %c0_1 = arith.constant 0 : index
    %0 = vector.load %arg1[%c0, %c0_0, %c0_1] : memref<1x9x8xf32, #tpu.memory_space<vmem>>, vector<1x9x8xf32>
    %1 = vector.shape_cast %0 : vector<1x9x8xf32> to vector<9x8xf32>
    %c0_2 = arith.constant 0 : index
    %c0_3 = arith.constant 0 : index
    %c0_4 = arith.constant 0 : index
    %2 = vector.load %arg2[%c0_2, %c0_3, %c0_4] : memref<1x9x8xf32, #tpu.memory_space<vmem>>, vector<1x9x8xf32>
    %3 = vector.shape_cast %2 : vector<1x9x8xf32> to vector<9x8xf32>
    %c0_5 = arith.constant 0 : index
    %c0_6 = arith.constant 0 : index
    %c0_7 = arith.constant 0 : index
    %4 = vector.load %arg5[%c0_5, %c0_6, %c0_7] : memref<1x9x8xf32, #tpu.memory_space<vmem>>, vector<1x9x8xf32>
    %5 = vector.shape_cast %4 : vector<1x9x8xf32> to vector<9x8xf32>
    %6 = arith.mulf %1, %1 : vector<9x8xf32>
    %7 = arith.mulf %3, %3 : vector<9x8xf32>
    %8 = arith.addf %6, %7 : vector<9x8xf32>
    %cst = arith.constant 9.99999996E-13 : f32
    %9 = vector.broadcast %cst : f32 to vector<9x8xf32>
    %10 = arith.addf %8, %9 : vector<9x8xf32>
    %11 = math.rsqrt %10 : vector<9x8xf32>
    %12 = arith.mulf %5, %11 : vector<9x8xf32>
    %13 = arith.truncf %1 : vector<9x8xf32> to vector<9x8xbf16>
    %c0_8 = arith.constant 0 : index
    %c0_9 = arith.constant 0 : index
    %c0_10 = arith.constant 0 : index
    %c0_11 = arith.constant 0 : index
    %14 = vector.load %arg6[%c0_8, %c0_9, %c0_10, %c0_11] : memref<1x7x9x8xbf16, #tpu.memory_space<vmem>>, vector<1x1x9x8xbf16>
    %15 = vector.shape_cast %14 : vector<1x1x9x8xbf16> to vector<9x8xbf16>
    %16 = vector.shape_cast %13 : vector<9x8xbf16> to vector<1x1x9x8xbf16>
    tpu.vector_store %arg6[%c0_8, %c0_9, %c0_10, %c0_11], %16 {strides = array<i32>} : memref<1x7x9x8xbf16, #tpu.memory_space<vmem>>, vector<1x1x9x8xbf16>,
    %17 = arith.truncf %3 : vector<9x8xf32> to vector<9x8xbf16>
    %c0_12 = arith.constant 0 : index
    %c1 = arith.constant 1 : index
    %c0_13 = arith.constant 0 : index
    %c0_14 = arith.constant 0 : index
    %18 = vector.load %arg6[%c0_12, %c1, %c0_13, %c0_14] : memref<1x7x9x8xbf16, #tpu.memory_space<vmem>>, vector<1x1x9x8xbf16>
    %19 = vector.shape_cast %18 : vector<1x1x9x8xbf16> to vector<9x8xbf16>
    %20 = vector.shape_cast %17 : vector<9x8xbf16> to vector<1x1x9x8xbf16>
    tpu.vector_store %arg6[%c0_12, %c1, %c0_13, %c0_14], %20 {strides = array<i32>} : memref<1x7x9x8xbf16, #tpu.memory_space<vmem>>, vector<1x1x9x8xbf16>,
    %21 = arith.mulf %1, %12 : vector<9x8xf32>
    %22 = arith.truncf %21 : vector<9x8xf32> to vector<9x8xbf16>
    %c0_15 = arith.constant 0 : index
    %c2 = arith.constant 2 : index
    %c0_16 = arith.constant 0 : index
    %c0_17 = arith.constant 0 : index
    %23 = vector.load %arg6[%c0_15, %c2, %c0_16, %c0_17] : memref<1x7x9x8xbf16, #tpu.memory_space<vmem>>, vector<1x1x9x8xbf16>
    %24 = vector.shape_cast %23 : vector<1x1x9x8xbf16> to vector<9x8xbf16>
    %25 = vector.shape_cast %22 : vector<9x8xbf16> to vector<1x1x9x8xbf16>
    tpu.vector_store %arg6[%c0_15, %c2, %c0_16, %c0_17], %25 {strides = array<i32>} : memref<1x7x9x8xbf16, #tpu.memory_space<vmem>>, vector<1x1x9x8xbf16>,
    %26 = arith.mulf %3, %12 : vector<9x8xf32>
    %27 = arith.truncf %26 : vector<9x8xf32> to vector<9x8xbf16>
    %c0_18 = arith.constant 0 : index
    %c3 = arith.constant 3 : index
    %c0_19 = arith.constant 0 : index
    %c0_20 = arith.constant 0 : index
    %28 = vector.load %arg6[%c0_18, %c3, %c0_19, %c0_20] : memref<1x7x9x8xbf16, #tpu.memory_space<vmem>>, vector<1x1x9x8xbf16>
    %29 = vector.shape_cast %28 : vector<1x1x9x8xbf16> to vector<9x8xbf16>
    %30 = vector.shape_cast %27 : vector<9x8xbf16> to vector<1x1x9x8xbf16>
    tpu.vector_store %arg6[%c0_18, %c3, %c0_19, %c0_20], %30 {strides = array<i32>} : memref<1x7x9x8xbf16, #tpu.memory_space<vmem>>, vector<1x1x9x8xbf16>,
    %c0_21 = arith.constant 0 : index
    %c0_22 = arith.constant 0 : index
    %c0_23 = arith.constant 0 : index
    %31 = vector.load %arg3[%c0_21, %c0_22, %c0_23] : memref<1x9x8xf32, #tpu.memory_space<vmem>>, vector<1x9x8xf32>
    %32 = vector.shape_cast %31 : vector<1x9x8xf32> to vector<9x8xf32>
    %33 = arith.truncf %32 : vector<9x8xf32> to vector<9x8xbf16>
    %c0_24 = arith.constant 0 : index
    %c4 = arith.constant 4 : index
    %c0_25 = arith.constant 0 : index
    %c0_26 = arith.constant 0 : index
    %34 = vector.load %arg6[%c0_24, %c4, %c0_25, %c0_26] : memref<1x7x9x8xbf16, #tpu.memory_space<vmem>>, vector<1x1x9x8xbf16>
    %35 = vector.shape_cast %34 : vector<1x1x9x8xbf16> to vector<9x8xbf16>
    %36 = vector.shape_cast %33 : vector<9x8xbf16> to vector<1x1x9x8xbf16>
    tpu.vector_store %arg6[%c0_24, %c4, %c0_25, %c0_26], %36 {strides = array<i32>} : memref<1x7x9x8xbf16, #tpu.memory_space<vmem>>, vector<1x1x9x8xbf16>,
    %c0_27 = arith.constant 0 : index
    %c0_28 = arith.constant 0 : index
    %c0_29 = arith.constant 0 : index
    %37 = vector.load %arg4[%c0_27, %c0_28, %c0_29] : memref<1x9x8xf32, #tpu.memory_space<vmem>>, vector<1x9x8xf32>
    %38 = vector.shape_cast %37 : vector<1x9x8xf32> to vector<9x8xf32>
    %39 = arith.truncf %38 : vector<9x8xf32> to vector<9x8xbf16>
    %c0_30 = arith.constant 0 : index
    %c5 = arith.constant 5 : index
    %c0_31 = arith.constant 0 : index
    %c0_32 = arith.constant 0 : index
    %40 = vector.load %arg6[%c0_30, %c5, %c0_31, %c0_32] : memref<1x7x9x8xbf16, #tpu.memory_space<vmem>>, vector<1x1x9x8xbf16>
    %41 = vector.shape_cast %40 : vector<1x1x9x8xbf16> to vector<9x8xbf16>
    %42 = vector.shape_cast %39 : vector<9x8xbf16> to vector<1x1x9x8xbf16>
    tpu.vector_store %arg6[%c0_30, %c5, %c0_31, %c0_32], %42 {strides = array<i32>} : memref<1x7x9x8xbf16, #tpu.memory_space<vmem>>, vector<1x1x9x8xbf16>,
    %43 = arith.truncf %5 : vector<9x8xf32> to vector<9x8xbf16>
    %c0_33 = arith.constant 0 : index
    %c6 = arith.constant 6 : index
    %c0_34 = arith.constant 0 : index
    %c0_35 = arith.constant 0 : index
    %44 = vector.load %arg6[%c0_33, %c6, %c0_34, %c0_35] : memref<1x7x9x8xbf16, #tpu.memory_space<vmem>>, vector<1x1x9x8xbf16>
    %45 = vector.shape_cast %44 : vector<1x1x9x8xbf16> to vector<9x8xbf16>
    %46 = vector.shape_cast %43 : vector<9x8xbf16> to vector<1x1x9x8xbf16>
    tpu.vector_store %arg6[%c0_33, %c6, %c0_34, %c0_35], %46 {strides = array<i32>} : memref<1x7x9x8xbf16, #tpu.memory_space<vmem>>, vector<1x1x9x8xbf16>,
    return
  }
  func.func @transform_0(%arg0: i32) -> (i32, i32, i32) {
    %c0_i32 = arith.constant 0 : i32
    %c0_i32_0 = arith.constant 0 : i32
    %c0_i32_1 = arith.constant 0 : i32
    return %arg0, %c0_i32, %c0_i32_0 : i32, i32, i32
  }
  func.func @transform_1(%arg0: i32) -> (i32, i32, i32) {
    %c0_i32 = arith.constant 0 : i32
    %c0_i32_0 = arith.constant 0 : i32
    %c0_i32_1 = arith.constant 0 : i32
    return %arg0, %c0_i32, %c0_i32_0 : i32, i32, i32
  }
  func.func @transform_2(%arg0: i32) -> (i32, i32, i32) {
    %c0_i32 = arith.constant 0 : i32
    %c0_i32_0 = arith.constant 0 : i32
    %c0_i32_1 = arith.constant 0 : i32
    return %arg0, %c0_i32, %c0_i32_0 : i32, i32, i32
  }
  func.func @transform_3(%arg0: i32) -> (i32, i32, i32) {
    %c0_i32 = arith.constant 0 : i32
    %c0_i32_0 = arith.constant 0 : i32
    %c0_i32_1 = arith.constant 0 : i32
    return %arg0, %c0_i32, %c0_i32_0 : i32, i32, i32
  }
  func.func @transform_4(%arg0: i32) -> (i32, i32, i32) {
    %c0_i32 = arith.constant 0 : i32
    %c0_i32_0 = arith.constant 0 : i32
    %c0_i32_1 = arith.constant 0 : i32
    return %arg0, %c0_i32, %c0_i32_0 : i32, i32, i32
  }
  func.func @transform_5(%arg0: i32) -> (i32, i32, i32, i32) {
    %c0_i32 = arith.constant 0 : i32
    %c0_i32_0 = arith.constant 0 : i32
    %c0_i32_1 = arith.constant 0 : i32
    %c0_i32_2 = arith.constant 0 : i32
    return %arg0, %c0_i32, %c0_i32_0, %c0_i32_1 : i32, i32, i32, i32
  }
}

module attributes {stable_mosaic.version = 11 : i64} {
  func.func @_conv_glu_kernel(%arg0: i32, %arg1: i32, %arg2: memref<1x8x446xbf16, #tpu.memory_space<vmem>>, %arg3: memref<64x968xbf16, #tpu.memory_space<vmem>>, %arg4: memref<64x1xf32, #tpu.memory_space<vmem>>, %arg5: memref<1x32x256xbf16, #tpu.memory_space<vmem>>) attributes {dimension_semantics = [#tpu.dimension_semantics<parallel>, #tpu.dimension_semantics<parallel>], iteration_bounds = array<i64: 2, 1>, scalar_prefetch = 0 : i64, scratch_operands = 0 : i64, tpu.core_type = #tpu.core_type<tc>, window_params = [{transform_indices = @transform_0, window_bounds = array<i64: 1, 8, 446>}, {pipeline_mode = #tpu.pipeline_mode<synchronous>, transform_indices = @transform_1, window_bounds = array<i64: 64, 968>}, {pipeline_mode = #tpu.pipeline_mode<synchronous>, transform_indices = @transform_2, window_bounds = array<i64: 64, 1>}, {transform_indices = @transform_3, window_bounds = array<i64: 1, 32, 256>}]} {
    %c256_i32 = arith.constant 256 : i32
    %0 = arith.muli %arg1, %c256_i32 : i32
    %1 = tpu.assume_multiple %0, 128 : i32
    %c0 = arith.constant 0 : index
    %c0_0 = arith.constant 0 : index
    %2 = arith.index_cast %1 : i32 to index
    %3 = vector.load %arg2[%c0, %c0_0, %2] : memref<1x8x446xbf16, #tpu.memory_space<vmem>>, vector<1x8x446xbf16>
    %4 = vector.shape_cast %3 : vector<1x8x446xbf16> to vector<8x446xbf16>
    %5 = vector.extract_strided_slice %4 {offsets = [0, 0], sizes = [8, 256], strides = [1, 1]} : vector<8x446xbf16> to vector<8x256xbf16>
    %6 = vector.extract_strided_slice %4 {offsets = [0, 1], sizes = [8, 256], strides = [1, 1]} : vector<8x446xbf16> to vector<8x256xbf16>
    %7 = vector.extract_strided_slice %4 {offsets = [0, 2], sizes = [8, 256], strides = [1, 1]} : vector<8x446xbf16> to vector<8x256xbf16>
    %8 = vector.extract_strided_slice %4 {offsets = [0, 3], sizes = [8, 256], strides = [1, 1]} : vector<8x446xbf16> to vector<8x256xbf16>
    %9 = vector.extract_strided_slice %4 {offsets = [0, 4], sizes = [8, 256], strides = [1, 1]} : vector<8x446xbf16> to vector<8x256xbf16>
    %10 = vector.extract_strided_slice %4 {offsets = [0, 5], sizes = [8, 256], strides = [1, 1]} : vector<8x446xbf16> to vector<8x256xbf16>
    %11 = vector.extract_strided_slice %4 {offsets = [0, 6], sizes = [8, 256], strides = [1, 1]} : vector<8x446xbf16> to vector<8x256xbf16>
    %12 = vector.extract_strided_slice %4 {offsets = [0, 7], sizes = [8, 256], strides = [1, 1]} : vector<8x446xbf16> to vector<8x256xbf16>
    %13 = vector.extract_strided_slice %4 {offsets = [0, 8], sizes = [8, 256], strides = [1, 1]} : vector<8x446xbf16> to vector<8x256xbf16>
    %14 = vector.extract_strided_slice %4 {offsets = [0, 9], sizes = [8, 256], strides = [1, 1]} : vector<8x446xbf16> to vector<8x256xbf16>
    %15 = vector.extract_strided_slice %4 {offsets = [0, 10], sizes = [8, 256], strides = [1, 1]} : vector<8x446xbf16> to vector<8x256xbf16>
    %16 = vector.extract_strided_slice %4 {offsets = [0, 18], sizes = [8, 256], strides = [1, 1]} : vector<8x446xbf16> to vector<8x256xbf16>
    %17 = vector.extract_strided_slice %4 {offsets = [0, 19], sizes = [8, 256], strides = [1, 1]} : vector<8x446xbf16> to vector<8x256xbf16>
    %18 = vector.extract_strided_slice %4 {offsets = [0, 20], sizes = [8, 256], strides = [1, 1]} : vector<8x446xbf16> to vector<8x256xbf16>
    %19 = vector.extract_strided_slice %4 {offsets = [0, 21], sizes = [8, 256], strides = [1, 1]} : vector<8x446xbf16> to vector<8x256xbf16>
    %20 = vector.extract_strided_slice %4 {offsets = [0, 22], sizes = [8, 256], strides = [1, 1]} : vector<8x446xbf16> to vector<8x256xbf16>
    %21 = vector.extract_strided_slice %4 {offsets = [0, 23], sizes = [8, 256], strides = [1, 1]} : vector<8x446xbf16> to vector<8x256xbf16>
    %22 = vector.extract_strided_slice %4 {offsets = [0, 24], sizes = [8, 256], strides = [1, 1]} : vector<8x446xbf16> to vector<8x256xbf16>
    %23 = vector.extract_strided_slice %4 {offsets = [0, 25], sizes = [8, 256], strides = [1, 1]} : vector<8x446xbf16> to vector<8x256xbf16>
    %24 = vector.extract_strided_slice %4 {offsets = [0, 26], sizes = [8, 256], strides = [1, 1]} : vector<8x446xbf16> to vector<8x256xbf16>
    %25 = vector.extract_strided_slice %4 {offsets = [0, 27], sizes = [8, 256], strides = [1, 1]} : vector<8x446xbf16> to vector<8x256xbf16>
    %26 = vector.extract_strided_slice %4 {offsets = [0, 28], sizes = [8, 256], strides = [1, 1]} : vector<8x446xbf16> to vector<8x256xbf16>
    %27 = vector.extract_strided_slice %4 {offsets = [0, 36], sizes = [8, 256], strides = [1, 1]} : vector<8x446xbf16> to vector<8x256xbf16>
    %28 = vector.extract_strided_slice %4 {offsets = [0, 37], sizes = [8, 256], strides = [1, 1]} : vector<8x446xbf16> to vector<8x256xbf16>
    %29 = vector.extract_strided_slice %4 {offsets = [0, 38], sizes = [8, 256], strides = [1, 1]} : vector<8x446xbf16> to vector<8x256xbf16>
    %30 = vector.extract_strided_slice %4 {offsets = [0, 39], sizes = [8, 256], strides = [1, 1]} : vector<8x446xbf16> to vector<8x256xbf16>
    %31 = vector.extract_strided_slice %4 {offsets = [0, 40], sizes = [8, 256], strides = [1, 1]} : vector<8x446xbf16> to vector<8x256xbf16>
    %32 = vector.extract_strided_slice %4 {offsets = [0, 41], sizes = [8, 256], strides = [1, 1]} : vector<8x446xbf16> to vector<8x256xbf16>
    %33 = vector.extract_strided_slice %4 {offsets = [0, 42], sizes = [8, 256], strides = [1, 1]} : vector<8x446xbf16> to vector<8x256xbf16>
    %34 = vector.extract_strided_slice %4 {offsets = [0, 43], sizes = [8, 256], strides = [1, 1]} : vector<8x446xbf16> to vector<8x256xbf16>
    %35 = vector.extract_strided_slice %4 {offsets = [0, 44], sizes = [8, 256], strides = [1, 1]} : vector<8x446xbf16> to vector<8x256xbf16>
    %36 = vector.extract_strided_slice %4 {offsets = [0, 45], sizes = [8, 256], strides = [1, 1]} : vector<8x446xbf16> to vector<8x256xbf16>
    %37 = vector.extract_strided_slice %4 {offsets = [0, 46], sizes = [8, 256], strides = [1, 1]} : vector<8x446xbf16> to vector<8x256xbf16>
    %38 = vector.extract_strided_slice %4 {offsets = [0, 54], sizes = [8, 256], strides = [1, 1]} : vector<8x446xbf16> to vector<8x256xbf16>
    %39 = vector.extract_strided_slice %4 {offsets = [0, 55], sizes = [8, 256], strides = [1, 1]} : vector<8x446xbf16> to vector<8x256xbf16>
    %40 = vector.extract_strided_slice %4 {offsets = [0, 56], sizes = [8, 256], strides = [1, 1]} : vector<8x446xbf16> to vector<8x256xbf16>
    %41 = vector.extract_strided_slice %4 {offsets = [0, 57], sizes = [8, 256], strides = [1, 1]} : vector<8x446xbf16> to vector<8x256xbf16>
    %42 = vector.extract_strided_slice %4 {offsets = [0, 58], sizes = [8, 256], strides = [1, 1]} : vector<8x446xbf16> to vector<8x256xbf16>
    %43 = vector.extract_strided_slice %4 {offsets = [0, 59], sizes = [8, 256], strides = [1, 1]} : vector<8x446xbf16> to vector<8x256xbf16>
    %44 = vector.extract_strided_slice %4 {offsets = [0, 60], sizes = [8, 256], strides = [1, 1]} : vector<8x446xbf16> to vector<8x256xbf16>
    %45 = vector.extract_strided_slice %4 {offsets = [0, 61], sizes = [8, 256], strides = [1, 1]} : vector<8x446xbf16> to vector<8x256xbf16>
    %46 = vector.extract_strided_slice %4 {offsets = [0, 62], sizes = [8, 256], strides = [1, 1]} : vector<8x446xbf16> to vector<8x256xbf16>
    %47 = vector.extract_strided_slice %4 {offsets = [0, 63], sizes = [8, 256], strides = [1, 1]} : vector<8x446xbf16> to vector<8x256xbf16>
    %48 = vector.extract_strided_slice %4 {offsets = [0, 64], sizes = [8, 256], strides = [1, 1]} : vector<8x446xbf16> to vector<8x256xbf16>
    %49 = vector.extract_strided_slice %4 {offsets = [0, 72], sizes = [8, 256], strides = [1, 1]} : vector<8x446xbf16> to vector<8x256xbf16>
    %50 = vector.extract_strided_slice %4 {offsets = [0, 73], sizes = [8, 256], strides = [1, 1]} : vector<8x446xbf16> to vector<8x256xbf16>
    %51 = vector.extract_strided_slice %4 {offsets = [0, 74], sizes = [8, 256], strides = [1, 1]} : vector<8x446xbf16> to vector<8x256xbf16>
    %52 = vector.extract_strided_slice %4 {offsets = [0, 75], sizes = [8, 256], strides = [1, 1]} : vector<8x446xbf16> to vector<8x256xbf16>
    %53 = vector.extract_strided_slice %4 {offsets = [0, 76], sizes = [8, 256], strides = [1, 1]} : vector<8x446xbf16> to vector<8x256xbf16>
    %54 = vector.extract_strided_slice %4 {offsets = [0, 77], sizes = [8, 256], strides = [1, 1]} : vector<8x446xbf16> to vector<8x256xbf16>
    %55 = vector.extract_strided_slice %4 {offsets = [0, 78], sizes = [8, 256], strides = [1, 1]} : vector<8x446xbf16> to vector<8x256xbf16>
    %56 = vector.extract_strided_slice %4 {offsets = [0, 79], sizes = [8, 256], strides = [1, 1]} : vector<8x446xbf16> to vector<8x256xbf16>
    %57 = vector.extract_strided_slice %4 {offsets = [0, 80], sizes = [8, 256], strides = [1, 1]} : vector<8x446xbf16> to vector<8x256xbf16>
    %58 = vector.extract_strided_slice %4 {offsets = [0, 81], sizes = [8, 256], strides = [1, 1]} : vector<8x446xbf16> to vector<8x256xbf16>
    %59 = vector.extract_strided_slice %4 {offsets = [0, 82], sizes = [8, 256], strides = [1, 1]} : vector<8x446xbf16> to vector<8x256xbf16>
    %60 = vector.extract_strided_slice %4 {offsets = [0, 90], sizes = [8, 256], strides = [1, 1]} : vector<8x446xbf16> to vector<8x256xbf16>
    %61 = vector.extract_strided_slice %4 {offsets = [0, 91], sizes = [8, 256], strides = [1, 1]} : vector<8x446xbf16> to vector<8x256xbf16>
    %62 = vector.extract_strided_slice %4 {offsets = [0, 92], sizes = [8, 256], strides = [1, 1]} : vector<8x446xbf16> to vector<8x256xbf16>
    %63 = vector.extract_strided_slice %4 {offsets = [0, 93], sizes = [8, 256], strides = [1, 1]} : vector<8x446xbf16> to vector<8x256xbf16>
    %64 = vector.extract_strided_slice %4 {offsets = [0, 94], sizes = [8, 256], strides = [1, 1]} : vector<8x446xbf16> to vector<8x256xbf16>
    %65 = vector.extract_strided_slice %4 {offsets = [0, 95], sizes = [8, 256], strides = [1, 1]} : vector<8x446xbf16> to vector<8x256xbf16>
    %66 = vector.extract_strided_slice %4 {offsets = [0, 96], sizes = [8, 256], strides = [1, 1]} : vector<8x446xbf16> to vector<8x256xbf16>
    %67 = vector.extract_strided_slice %4 {offsets = [0, 97], sizes = [8, 256], strides = [1, 1]} : vector<8x446xbf16> to vector<8x256xbf16>
    %68 = vector.extract_strided_slice %4 {offsets = [0, 98], sizes = [8, 256], strides = [1, 1]} : vector<8x446xbf16> to vector<8x256xbf16>
    %69 = vector.extract_strided_slice %4 {offsets = [0, 99], sizes = [8, 256], strides = [1, 1]} : vector<8x446xbf16> to vector<8x256xbf16>
    %70 = vector.extract_strided_slice %4 {offsets = [0, 100], sizes = [8, 256], strides = [1, 1]} : vector<8x446xbf16> to vector<8x256xbf16>
    %71 = vector.extract_strided_slice %4 {offsets = [0, 108], sizes = [8, 256], strides = [1, 1]} : vector<8x446xbf16> to vector<8x256xbf16>
    %72 = vector.extract_strided_slice %4 {offsets = [0, 109], sizes = [8, 256], strides = [1, 1]} : vector<8x446xbf16> to vector<8x256xbf16>
    %73 = vector.extract_strided_slice %4 {offsets = [0, 110], sizes = [8, 256], strides = [1, 1]} : vector<8x446xbf16> to vector<8x256xbf16>
    %74 = vector.extract_strided_slice %4 {offsets = [0, 111], sizes = [8, 256], strides = [1, 1]} : vector<8x446xbf16> to vector<8x256xbf16>
    %75 = vector.extract_strided_slice %4 {offsets = [0, 112], sizes = [8, 256], strides = [1, 1]} : vector<8x446xbf16> to vector<8x256xbf16>
    %76 = vector.extract_strided_slice %4 {offsets = [0, 113], sizes = [8, 256], strides = [1, 1]} : vector<8x446xbf16> to vector<8x256xbf16>
    %77 = vector.extract_strided_slice %4 {offsets = [0, 114], sizes = [8, 256], strides = [1, 1]} : vector<8x446xbf16> to vector<8x256xbf16>
    %78 = vector.extract_strided_slice %4 {offsets = [0, 115], sizes = [8, 256], strides = [1, 1]} : vector<8x446xbf16> to vector<8x256xbf16>
    %79 = vector.extract_strided_slice %4 {offsets = [0, 116], sizes = [8, 256], strides = [1, 1]} : vector<8x446xbf16> to vector<8x256xbf16>
    %80 = vector.extract_strided_slice %4 {offsets = [0, 117], sizes = [8, 256], strides = [1, 1]} : vector<8x446xbf16> to vector<8x256xbf16>
    %81 = vector.extract_strided_slice %4 {offsets = [0, 118], sizes = [8, 256], strides = [1, 1]} : vector<8x446xbf16> to vector<8x256xbf16>
    %82 = vector.extract_strided_slice %4 {offsets = [0, 126], sizes = [8, 256], strides = [1, 1]} : vector<8x446xbf16> to vector<8x256xbf16>
    %83 = vector.extract_strided_slice %4 {offsets = [0, 127], sizes = [8, 256], strides = [1, 1]} : vector<8x446xbf16> to vector<8x256xbf16>
    %84 = vector.extract_strided_slice %4 {offsets = [0, 128], sizes = [8, 256], strides = [1, 1]} : vector<8x446xbf16> to vector<8x256xbf16>
    %85 = vector.extract_strided_slice %4 {offsets = [0, 129], sizes = [8, 256], strides = [1, 1]} : vector<8x446xbf16> to vector<8x256xbf16>
    %86 = vector.extract_strided_slice %4 {offsets = [0, 130], sizes = [8, 256], strides = [1, 1]} : vector<8x446xbf16> to vector<8x256xbf16>
    %87 = vector.extract_strided_slice %4 {offsets = [0, 131], sizes = [8, 256], strides = [1, 1]} : vector<8x446xbf16> to vector<8x256xbf16>
    %88 = vector.extract_strided_slice %4 {offsets = [0, 132], sizes = [8, 256], strides = [1, 1]} : vector<8x446xbf16> to vector<8x256xbf16>
    %89 = vector.extract_strided_slice %4 {offsets = [0, 133], sizes = [8, 256], strides = [1, 1]} : vector<8x446xbf16> to vector<8x256xbf16>
    %90 = vector.extract_strided_slice %4 {offsets = [0, 134], sizes = [8, 256], strides = [1, 1]} : vector<8x446xbf16> to vector<8x256xbf16>
    %91 = vector.extract_strided_slice %4 {offsets = [0, 135], sizes = [8, 256], strides = [1, 1]} : vector<8x446xbf16> to vector<8x256xbf16>
    %92 = vector.extract_strided_slice %4 {offsets = [0, 136], sizes = [8, 256], strides = [1, 1]} : vector<8x446xbf16> to vector<8x256xbf16>
    %93 = vector.extract_strided_slice %4 {offsets = [0, 144], sizes = [8, 256], strides = [1, 1]} : vector<8x446xbf16> to vector<8x256xbf16>
    %94 = vector.extract_strided_slice %4 {offsets = [0, 145], sizes = [8, 256], strides = [1, 1]} : vector<8x446xbf16> to vector<8x256xbf16>
    %95 = vector.extract_strided_slice %4 {offsets = [0, 146], sizes = [8, 256], strides = [1, 1]} : vector<8x446xbf16> to vector<8x256xbf16>
    %96 = vector.extract_strided_slice %4 {offsets = [0, 147], sizes = [8, 256], strides = [1, 1]} : vector<8x446xbf16> to vector<8x256xbf16>
    %97 = vector.extract_strided_slice %4 {offsets = [0, 148], sizes = [8, 256], strides = [1, 1]} : vector<8x446xbf16> to vector<8x256xbf16>
    %98 = vector.extract_strided_slice %4 {offsets = [0, 149], sizes = [8, 256], strides = [1, 1]} : vector<8x446xbf16> to vector<8x256xbf16>
    %99 = vector.extract_strided_slice %4 {offsets = [0, 150], sizes = [8, 256], strides = [1, 1]} : vector<8x446xbf16> to vector<8x256xbf16>
    %100 = vector.extract_strided_slice %4 {offsets = [0, 151], sizes = [8, 256], strides = [1, 1]} : vector<8x446xbf16> to vector<8x256xbf16>
    %101 = vector.extract_strided_slice %4 {offsets = [0, 152], sizes = [8, 256], strides = [1, 1]} : vector<8x446xbf16> to vector<8x256xbf16>
    %102 = vector.extract_strided_slice %4 {offsets = [0, 153], sizes = [8, 256], strides = [1, 1]} : vector<8x446xbf16> to vector<8x256xbf16>
    %103 = vector.extract_strided_slice %4 {offsets = [0, 154], sizes = [8, 256], strides = [1, 1]} : vector<8x446xbf16> to vector<8x256xbf16>
    %104 = vector.extract_strided_slice %4 {offsets = [0, 162], sizes = [8, 256], strides = [1, 1]} : vector<8x446xbf16> to vector<8x256xbf16>
    %105 = vector.extract_strided_slice %4 {offsets = [0, 163], sizes = [8, 256], strides = [1, 1]} : vector<8x446xbf16> to vector<8x256xbf16>
    %106 = vector.extract_strided_slice %4 {offsets = [0, 164], sizes = [8, 256], strides = [1, 1]} : vector<8x446xbf16> to vector<8x256xbf16>
    %107 = vector.extract_strided_slice %4 {offsets = [0, 165], sizes = [8, 256], strides = [1, 1]} : vector<8x446xbf16> to vector<8x256xbf16>
    %108 = vector.extract_strided_slice %4 {offsets = [0, 166], sizes = [8, 256], strides = [1, 1]} : vector<8x446xbf16> to vector<8x256xbf16>
    %109 = vector.extract_strided_slice %4 {offsets = [0, 167], sizes = [8, 256], strides = [1, 1]} : vector<8x446xbf16> to vector<8x256xbf16>
    %110 = vector.extract_strided_slice %4 {offsets = [0, 168], sizes = [8, 256], strides = [1, 1]} : vector<8x446xbf16> to vector<8x256xbf16>
    %111 = vector.extract_strided_slice %4 {offsets = [0, 169], sizes = [8, 256], strides = [1, 1]} : vector<8x446xbf16> to vector<8x256xbf16>
    %112 = vector.extract_strided_slice %4 {offsets = [0, 170], sizes = [8, 256], strides = [1, 1]} : vector<8x446xbf16> to vector<8x256xbf16>
    %113 = vector.extract_strided_slice %4 {offsets = [0, 171], sizes = [8, 256], strides = [1, 1]} : vector<8x446xbf16> to vector<8x256xbf16>
    %114 = vector.extract_strided_slice %4 {offsets = [0, 172], sizes = [8, 256], strides = [1, 1]} : vector<8x446xbf16> to vector<8x256xbf16>
    %115 = vector.extract_strided_slice %4 {offsets = [0, 180], sizes = [8, 256], strides = [1, 1]} : vector<8x446xbf16> to vector<8x256xbf16>
    %116 = vector.extract_strided_slice %4 {offsets = [0, 181], sizes = [8, 256], strides = [1, 1]} : vector<8x446xbf16> to vector<8x256xbf16>
    %117 = vector.extract_strided_slice %4 {offsets = [0, 182], sizes = [8, 256], strides = [1, 1]} : vector<8x446xbf16> to vector<8x256xbf16>
    %118 = vector.extract_strided_slice %4 {offsets = [0, 183], sizes = [8, 256], strides = [1, 1]} : vector<8x446xbf16> to vector<8x256xbf16>
    %119 = vector.extract_strided_slice %4 {offsets = [0, 184], sizes = [8, 256], strides = [1, 1]} : vector<8x446xbf16> to vector<8x256xbf16>
    %120 = vector.extract_strided_slice %4 {offsets = [0, 185], sizes = [8, 256], strides = [1, 1]} : vector<8x446xbf16> to vector<8x256xbf16>
    %121 = vector.extract_strided_slice %4 {offsets = [0, 186], sizes = [8, 256], strides = [1, 1]} : vector<8x446xbf16> to vector<8x256xbf16>
    %122 = vector.extract_strided_slice %4 {offsets = [0, 187], sizes = [8, 256], strides = [1, 1]} : vector<8x446xbf16> to vector<8x256xbf16>
    %123 = vector.extract_strided_slice %4 {offsets = [0, 188], sizes = [8, 256], strides = [1, 1]} : vector<8x446xbf16> to vector<8x256xbf16>
    %124 = vector.extract_strided_slice %4 {offsets = [0, 189], sizes = [8, 256], strides = [1, 1]} : vector<8x446xbf16> to vector<8x256xbf16>
    %125 = vector.extract_strided_slice %4 {offsets = [0, 190], sizes = [8, 256], strides = [1, 1]} : vector<8x446xbf16> to vector<8x256xbf16>
    %126 = tpu.concatenate %5, %6, %7, %8, %9, %10, %11, %12, %13, %14, %15, %16, %17, %18, %19, %20 in 0 : vector<8x256xbf16>, vector<8x256xbf16>, vector<8x256xbf16>, vector<8x256xbf16>, vector<8x256xbf16>, vector<8x256xbf16>, vector<8x256xbf16>, vector<8x256xbf16>, vector<8x256xbf16>, vector<8x256xbf16>, vector<8x256xbf16>, vector<8x256xbf16>, vector<8x256xbf16>, vector<8x256xbf16>, vector<8x256xbf16>, vector<8x256xbf16> -> vector<128x256xbf16>
    %127 = tpu.concatenate %21, %22, %23, %24, %25, %26, %27, %28, %29, %30, %31, %32, %33, %34, %35, %36 in 0 : vector<8x256xbf16>, vector<8x256xbf16>, vector<8x256xbf16>, vector<8x256xbf16>, vector<8x256xbf16>, vector<8x256xbf16>, vector<8x256xbf16>, vector<8x256xbf16>, vector<8x256xbf16>, vector<8x256xbf16>, vector<8x256xbf16>, vector<8x256xbf16>, vector<8x256xbf16>, vector<8x256xbf16>, vector<8x256xbf16>, vector<8x256xbf16> -> vector<128x256xbf16>
    %128 = tpu.concatenate %37, %38, %39, %40, %41, %42, %43, %44, %45, %46, %47, %48, %49, %50, %51, %52 in 0 : vector<8x256xbf16>, vector<8x256xbf16>, vector<8x256xbf16>, vector<8x256xbf16>, vector<8x256xbf16>, vector<8x256xbf16>, vector<8x256xbf16>, vector<8x256xbf16>, vector<8x256xbf16>, vector<8x256xbf16>, vector<8x256xbf16>, vector<8x256xbf16>, vector<8x256xbf16>, vector<8x256xbf16>, vector<8x256xbf16>, vector<8x256xbf16> -> vector<128x256xbf16>
    %129 = tpu.concatenate %53, %54, %55, %56, %57, %58, %59, %60, %61, %62, %63, %64, %65, %66, %67, %68 in 0 : vector<8x256xbf16>, vector<8x256xbf16>, vector<8x256xbf16>, vector<8x256xbf16>, vector<8x256xbf16>, vector<8x256xbf16>, vector<8x256xbf16>, vector<8x256xbf16>, vector<8x256xbf16>, vector<8x256xbf16>, vector<8x256xbf16>, vector<8x256xbf16>, vector<8x256xbf16>, vector<8x256xbf16>, vector<8x256xbf16>, vector<8x256xbf16> -> vector<128x256xbf16>
    %130 = tpu.concatenate %69, %70, %71, %72, %73, %74, %75, %76, %77, %78, %79, %80, %81, %82, %83, %84 in 0 : vector<8x256xbf16>, vector<8x256xbf16>, vector<8x256xbf16>, vector<8x256xbf16>, vector<8x256xbf16>, vector<8x256xbf16>, vector<8x256xbf16>, vector<8x256xbf16>, vector<8x256xbf16>, vector<8x256xbf16>, vector<8x256xbf16>, vector<8x256xbf16>, vector<8x256xbf16>, vector<8x256xbf16>, vector<8x256xbf16>, vector<8x256xbf16> -> vector<128x256xbf16>
    %131 = tpu.concatenate %85, %86, %87, %88, %89, %90, %91, %92, %93, %94, %95, %96, %97, %98, %99, %100 in 0 : vector<8x256xbf16>, vector<8x256xbf16>, vector<8x256xbf16>, vector<8x256xbf16>, vector<8x256xbf16>, vector<8x256xbf16>, vector<8x256xbf16>, vector<8x256xbf16>, vector<8x256xbf16>, vector<8x256xbf16>, vector<8x256xbf16>, vector<8x256xbf16>, vector<8x256xbf16>, vector<8x256xbf16>, vector<8x256xbf16>, vector<8x256xbf16> -> vector<128x256xbf16>
    %132 = tpu.concatenate %101, %102, %103, %104, %105, %106, %107, %108, %109, %110, %111, %112, %113, %114, %115, %116 in 0 : vector<8x256xbf16>, vector<8x256xbf16>, vector<8x256xbf16>, vector<8x256xbf16>, vector<8x256xbf16>, vector<8x256xbf16>, vector<8x256xbf16>, vector<8x256xbf16>, vector<8x256xbf16>, vector<8x256xbf16>, vector<8x256xbf16>, vector<8x256xbf16>, vector<8x256xbf16>, vector<8x256xbf16>, vector<8x256xbf16>, vector<8x256xbf16> -> vector<128x256xbf16>
    %133 = tpu.concatenate %117, %118, %119, %120, %121, %122, %123, %124, %125 in 0 : vector<8x256xbf16>, vector<8x256xbf16>, vector<8x256xbf16>, vector<8x256xbf16>, vector<8x256xbf16>, vector<8x256xbf16>, vector<8x256xbf16>, vector<8x256xbf16>, vector<8x256xbf16> -> vector<72x256xbf16>
    %134 = tpu.concatenate %126, %127, %128, %129, %130, %131, %132, %133 in 0 : vector<128x256xbf16>, vector<128x256xbf16>, vector<128x256xbf16>, vector<128x256xbf16>, vector<128x256xbf16>, vector<128x256xbf16>, vector<128x256xbf16>, vector<72x256xbf16> -> vector<968x256xbf16>
    %c0_1 = arith.constant 0 : index
    %c0_2 = arith.constant 0 : index
    %135 = vector.load %arg3[%c0_1, %c0_2] : memref<64x968xbf16, #tpu.memory_space<vmem>>, vector<64x968xbf16>
    %cst = arith.constant dense<0.000000e+00> : vector<64x256xf32>
    %136 = tpu.matmul %135, %134, %cst {dimension_numbers = #tpu.dot_dimension_numbers<[1], [0], [0], [1], [0, 0, 1, 1], [], []>} : vector<64x968xbf16>, vector<968x256xbf16>, vector<64x256xf32> -> vector<64x256xf32>
    %c0_3 = arith.constant 0 : index
    %c0_4 = arith.constant 0 : index
    %137 = vector.load %arg4[%c0_3, %c0_4] : memref<64x1xf32, #tpu.memory_space<vmem>>, vector<64x1xf32>
    %138 = vector.broadcast %137 : vector<64x1xf32> to vector<64x256xf32>
    %139 = arith.addf %136, %138 : vector<64x256xf32>
    %140 = vector.extract_strided_slice %139 {offsets = [0, 0], sizes = [32, 256], strides = [1, 1]} : vector<64x256xf32> to vector<32x256xf32>
    %141 = vector.extract_strided_slice %139 {offsets = [32, 0], sizes = [32, 256], strides = [1, 1]} : vector<64x256xf32> to vector<32x256xf32>
    %142 = arith.negf %141 : vector<32x256xf32>
    %143 = math.exp %142 : vector<32x256xf32>
    %cst_5 = arith.constant 1.000000e+00 : f32
    %144 = vector.broadcast %cst_5 : f32 to vector<32x256xf32>
    %145 = arith.addf %144, %143 : vector<32x256xf32>
    %146 = arith.divf %144, %145 : vector<32x256xf32>
    %147 = arith.mulf %140, %146 : vector<32x256xf32>
    %148 = vector.shape_cast %147 : vector<32x256xf32> to vector<1x32x256xf32>
    %149 = arith.truncf %148 : vector<1x32x256xf32> to vector<1x32x256xbf16>
    %c0_6 = arith.constant 0 : index
    %c0_7 = arith.constant 0 : index
    %c0_8 = arith.constant 0 : index
    %150 = vector.load %arg5[%c0_6, %c0_7, %c0_8] : memref<1x32x256xbf16, #tpu.memory_space<vmem>>, vector<1x32x256xbf16>
    tpu.vector_store %arg5[%c0_6, %c0_7, %c0_8], %149 {strides = array<i32>} : memref<1x32x256xbf16, #tpu.memory_space<vmem>>, vector<1x32x256xbf16>,
    return
  }
  func.func @transform_0(%arg0: i32, %arg1: i32) -> (i32, i32, i32) {
    %c0_i32 = arith.constant 0 : i32
    %c0_i32_0 = arith.constant 0 : i32
    %c0_i32_1 = arith.constant 0 : i32
    return %arg0, %c0_i32, %c0_i32_0 : i32, i32, i32
  }
  func.func @transform_1(%arg0: i32, %arg1: i32) -> (i32, i32) {
    %c0_i32 = arith.constant 0 : i32
    %c0_i32_0 = arith.constant 0 : i32
    %c0_i32_1 = arith.constant 0 : i32
    return %c0_i32, %c0_i32_0 : i32, i32
  }
  func.func @transform_2(%arg0: i32, %arg1: i32) -> (i32, i32) {
    %c0_i32 = arith.constant 0 : i32
    %c0_i32_0 = arith.constant 0 : i32
    %c0_i32_1 = arith.constant 0 : i32
    return %c0_i32, %c0_i32_0 : i32, i32
  }
  func.func @transform_3(%arg0: i32, %arg1: i32) -> (i32, i32, i32) {
    %c0_i32 = arith.constant 0 : i32
    %c0_i32_0 = arith.constant 0 : i32
    return %arg0, %c0_i32, %arg1 : i32, i32, i32
  }
}

module attributes {stable_mosaic.version = 11 : i64} {
  func.func @_conv_glu_kernel(%arg0: i32, %arg1: i32, %arg2: memref<1x32x190xbf16, #tpu.memory_space<vmem>>, %arg3: memref<64x672xbf16, #tpu.memory_space<vmem>>, %arg4: memref<64x1xf32, #tpu.memory_space<vmem>>, %arg5: memref<1x32x128xbf16, #tpu.memory_space<vmem>>) attributes {dimension_semantics = [#tpu.dimension_semantics<parallel>, #tpu.dimension_semantics<parallel>], iteration_bounds = array<i64: 2, 1>, scalar_prefetch = 0 : i64, scratch_operands = 0 : i64, tpu.core_type = #tpu.core_type<tc>, window_params = [{transform_indices = @transform_0, window_bounds = array<i64: 1, 32, 190>}, {pipeline_mode = #tpu.pipeline_mode<synchronous>, transform_indices = @transform_1, window_bounds = array<i64: 64, 672>}, {pipeline_mode = #tpu.pipeline_mode<synchronous>, transform_indices = @transform_2, window_bounds = array<i64: 64, 1>}, {transform_indices = @transform_3, window_bounds = array<i64: 1, 32, 128>}]} {
    %c128_i32 = arith.constant 128 : i32
    %0 = arith.muli %arg1, %c128_i32 : i32
    %1 = tpu.assume_multiple %0, 128 : i32
    %c0 = arith.constant 0 : index
    %c0_0 = arith.constant 0 : index
    %2 = arith.index_cast %1 : i32 to index
    %3 = vector.load %arg2[%c0, %c0_0, %2] : memref<1x32x190xbf16, #tpu.memory_space<vmem>>, vector<1x32x190xbf16>
    %4 = vector.shape_cast %3 : vector<1x32x190xbf16> to vector<32x190xbf16>
    %5 = vector.extract_strided_slice %4 {offsets = [0, 0], sizes = [32, 128], strides = [1, 1]} : vector<32x190xbf16> to vector<32x128xbf16>
    %6 = vector.extract_strided_slice %4 {offsets = [0, 1], sizes = [32, 128], strides = [1, 1]} : vector<32x190xbf16> to vector<32x128xbf16>
    %7 = vector.extract_strided_slice %4 {offsets = [0, 2], sizes = [32, 128], strides = [1, 1]} : vector<32x190xbf16> to vector<32x128xbf16>
    %8 = vector.extract_strided_slice %4 {offsets = [0, 10], sizes = [32, 128], strides = [1, 1]} : vector<32x190xbf16> to vector<32x128xbf16>
    %9 = vector.extract_strided_slice %4 {offsets = [0, 11], sizes = [32, 128], strides = [1, 1]} : vector<32x190xbf16> to vector<32x128xbf16>
    %10 = vector.extract_strided_slice %4 {offsets = [0, 12], sizes = [32, 128], strides = [1, 1]} : vector<32x190xbf16> to vector<32x128xbf16>
    %11 = vector.extract_strided_slice %4 {offsets = [0, 20], sizes = [32, 128], strides = [1, 1]} : vector<32x190xbf16> to vector<32x128xbf16>
    %12 = vector.extract_strided_slice %4 {offsets = [0, 21], sizes = [32, 128], strides = [1, 1]} : vector<32x190xbf16> to vector<32x128xbf16>
    %13 = vector.extract_strided_slice %4 {offsets = [0, 22], sizes = [32, 128], strides = [1, 1]} : vector<32x190xbf16> to vector<32x128xbf16>
    %14 = vector.extract_strided_slice %4 {offsets = [0, 30], sizes = [32, 128], strides = [1, 1]} : vector<32x190xbf16> to vector<32x128xbf16>
    %15 = vector.extract_strided_slice %4 {offsets = [0, 31], sizes = [32, 128], strides = [1, 1]} : vector<32x190xbf16> to vector<32x128xbf16>
    %16 = vector.extract_strided_slice %4 {offsets = [0, 32], sizes = [32, 128], strides = [1, 1]} : vector<32x190xbf16> to vector<32x128xbf16>
    %17 = vector.extract_strided_slice %4 {offsets = [0, 40], sizes = [32, 128], strides = [1, 1]} : vector<32x190xbf16> to vector<32x128xbf16>
    %18 = vector.extract_strided_slice %4 {offsets = [0, 41], sizes = [32, 128], strides = [1, 1]} : vector<32x190xbf16> to vector<32x128xbf16>
    %19 = vector.extract_strided_slice %4 {offsets = [0, 42], sizes = [32, 128], strides = [1, 1]} : vector<32x190xbf16> to vector<32x128xbf16>
    %20 = vector.extract_strided_slice %4 {offsets = [0, 50], sizes = [32, 128], strides = [1, 1]} : vector<32x190xbf16> to vector<32x128xbf16>
    %21 = vector.extract_strided_slice %4 {offsets = [0, 51], sizes = [32, 128], strides = [1, 1]} : vector<32x190xbf16> to vector<32x128xbf16>
    %22 = vector.extract_strided_slice %4 {offsets = [0, 52], sizes = [32, 128], strides = [1, 1]} : vector<32x190xbf16> to vector<32x128xbf16>
    %23 = vector.extract_strided_slice %4 {offsets = [0, 60], sizes = [32, 128], strides = [1, 1]} : vector<32x190xbf16> to vector<32x128xbf16>
    %24 = vector.extract_strided_slice %4 {offsets = [0, 61], sizes = [32, 128], strides = [1, 1]} : vector<32x190xbf16> to vector<32x128xbf16>
    %25 = vector.extract_strided_slice %4 {offsets = [0, 62], sizes = [32, 128], strides = [1, 1]} : vector<32x190xbf16> to vector<32x128xbf16>
    %26 = tpu.concatenate %5, %6, %7, %8, %9, %10, %11, %12, %13, %14, %15, %16, %17, %18, %19, %20 in 0 : vector<32x128xbf16>, vector<32x128xbf16>, vector<32x128xbf16>, vector<32x128xbf16>, vector<32x128xbf16>, vector<32x128xbf16>, vector<32x128xbf16>, vector<32x128xbf16>, vector<32x128xbf16>, vector<32x128xbf16>, vector<32x128xbf16>, vector<32x128xbf16>, vector<32x128xbf16>, vector<32x128xbf16>, vector<32x128xbf16>, vector<32x128xbf16> -> vector<512x128xbf16>
    %27 = tpu.concatenate %21, %22, %23, %24, %25 in 0 : vector<32x128xbf16>, vector<32x128xbf16>, vector<32x128xbf16>, vector<32x128xbf16>, vector<32x128xbf16> -> vector<160x128xbf16>
    %28 = tpu.concatenate %26, %27 in 0 : vector<512x128xbf16>, vector<160x128xbf16> -> vector<672x128xbf16>
    %c0_1 = arith.constant 0 : index
    %c0_2 = arith.constant 0 : index
    %29 = vector.load %arg3[%c0_1, %c0_2] : memref<64x672xbf16, #tpu.memory_space<vmem>>, vector<64x672xbf16>
    %cst = arith.constant dense<0.000000e+00> : vector<64x128xf32>
    %30 = tpu.matmul %29, %28, %cst {dimension_numbers = #tpu.dot_dimension_numbers<[1], [0], [0], [1], [0, 0, 1, 1], [], []>} : vector<64x672xbf16>, vector<672x128xbf16>, vector<64x128xf32> -> vector<64x128xf32>
    %c0_3 = arith.constant 0 : index
    %c0_4 = arith.constant 0 : index
    %31 = vector.load %arg4[%c0_3, %c0_4] : memref<64x1xf32, #tpu.memory_space<vmem>>, vector<64x1xf32>
    %32 = vector.broadcast %31 : vector<64x1xf32> to vector<64x128xf32>
    %33 = arith.addf %30, %32 : vector<64x128xf32>
    %34 = vector.extract_strided_slice %33 {offsets = [0, 0], sizes = [32, 128], strides = [1, 1]} : vector<64x128xf32> to vector<32x128xf32>
    %35 = vector.extract_strided_slice %33 {offsets = [32, 0], sizes = [32, 128], strides = [1, 1]} : vector<64x128xf32> to vector<32x128xf32>
    %36 = arith.negf %35 : vector<32x128xf32>
    %37 = math.exp %36 : vector<32x128xf32>
    %cst_5 = arith.constant 1.000000e+00 : f32
    %38 = vector.broadcast %cst_5 : f32 to vector<32x128xf32>
    %39 = arith.addf %38, %37 : vector<32x128xf32>
    %40 = arith.divf %38, %39 : vector<32x128xf32>
    %41 = arith.mulf %34, %40 : vector<32x128xf32>
    %42 = vector.shape_cast %41 : vector<32x128xf32> to vector<1x32x128xf32>
    %43 = arith.truncf %42 : vector<1x32x128xf32> to vector<1x32x128xbf16>
    %c0_6 = arith.constant 0 : index
    %c0_7 = arith.constant 0 : index
    %c0_8 = arith.constant 0 : index
    %44 = vector.load %arg5[%c0_6, %c0_7, %c0_8] : memref<1x32x128xbf16, #tpu.memory_space<vmem>>, vector<1x32x128xbf16>
    tpu.vector_store %arg5[%c0_6, %c0_7, %c0_8], %43 {strides = array<i32>} : memref<1x32x128xbf16, #tpu.memory_space<vmem>>, vector<1x32x128xbf16>,
    return
  }
  func.func @transform_0(%arg0: i32, %arg1: i32) -> (i32, i32, i32) {
    %c0_i32 = arith.constant 0 : i32
    %c0_i32_0 = arith.constant 0 : i32
    %c0_i32_1 = arith.constant 0 : i32
    return %arg0, %c0_i32, %c0_i32_0 : i32, i32, i32
  }
  func.func @transform_1(%arg0: i32, %arg1: i32) -> (i32, i32) {
    %c0_i32 = arith.constant 0 : i32
    %c0_i32_0 = arith.constant 0 : i32
    %c0_i32_1 = arith.constant 0 : i32
    return %c0_i32, %c0_i32_0 : i32, i32
  }
  func.func @transform_2(%arg0: i32, %arg1: i32) -> (i32, i32) {
    %c0_i32 = arith.constant 0 : i32
    %c0_i32_0 = arith.constant 0 : i32
    %c0_i32_1 = arith.constant 0 : i32
    return %c0_i32, %c0_i32_0 : i32, i32
  }
  func.func @transform_3(%arg0: i32, %arg1: i32) -> (i32, i32, i32) {
    %c0_i32 = arith.constant 0 : i32
    %c0_i32_0 = arith.constant 0 : i32
    return %arg0, %c0_i32, %arg1 : i32, i32, i32
  }
}

module attributes {stable_mosaic.version = 11 : i64} {
  func.func @_conv_glu_kernel(%arg0: i32, %arg1: i32, %arg2: memref<1x32x190xbf16, #tpu.memory_space<vmem>>, %arg3: memref<2x672xbf16, #tpu.memory_space<vmem>>, %arg4: memref<2x1xf32, #tpu.memory_space<vmem>>, %arg5: memref<1x2x128xf32, #tpu.memory_space<vmem>>) attributes {dimension_semantics = [#tpu.dimension_semantics<parallel>, #tpu.dimension_semantics<parallel>], iteration_bounds = array<i64: 2, 1>, scalar_prefetch = 0 : i64, scratch_operands = 0 : i64, tpu.core_type = #tpu.core_type<tc>, window_params = [{transform_indices = @transform_0, window_bounds = array<i64: 1, 32, 190>}, {pipeline_mode = #tpu.pipeline_mode<synchronous>, transform_indices = @transform_1, window_bounds = array<i64: 2, 672>}, {pipeline_mode = #tpu.pipeline_mode<synchronous>, transform_indices = @transform_2, window_bounds = array<i64: 2, 1>}, {transform_indices = @transform_3, window_bounds = array<i64: 1, 2, 128>}]} {
    %c128_i32 = arith.constant 128 : i32
    %0 = arith.muli %arg1, %c128_i32 : i32
    %1 = tpu.assume_multiple %0, 128 : i32
    %c0 = arith.constant 0 : index
    %c0_0 = arith.constant 0 : index
    %2 = arith.index_cast %1 : i32 to index
    %3 = vector.load %arg2[%c0, %c0_0, %2] : memref<1x32x190xbf16, #tpu.memory_space<vmem>>, vector<1x32x190xbf16>
    %4 = vector.shape_cast %3 : vector<1x32x190xbf16> to vector<32x190xbf16>
    %5 = vector.extract_strided_slice %4 {offsets = [0, 0], sizes = [32, 128], strides = [1, 1]} : vector<32x190xbf16> to vector<32x128xbf16>
    %6 = vector.extract_strided_slice %4 {offsets = [0, 1], sizes = [32, 128], strides = [1, 1]} : vector<32x190xbf16> to vector<32x128xbf16>
    %7 = vector.extract_strided_slice %4 {offsets = [0, 2], sizes = [32, 128], strides = [1, 1]} : vector<32x190xbf16> to vector<32x128xbf16>
    %8 = vector.extract_strided_slice %4 {offsets = [0, 10], sizes = [32, 128], strides = [1, 1]} : vector<32x190xbf16> to vector<32x128xbf16>
    %9 = vector.extract_strided_slice %4 {offsets = [0, 11], sizes = [32, 128], strides = [1, 1]} : vector<32x190xbf16> to vector<32x128xbf16>
    %10 = vector.extract_strided_slice %4 {offsets = [0, 12], sizes = [32, 128], strides = [1, 1]} : vector<32x190xbf16> to vector<32x128xbf16>
    %11 = vector.extract_strided_slice %4 {offsets = [0, 20], sizes = [32, 128], strides = [1, 1]} : vector<32x190xbf16> to vector<32x128xbf16>
    %12 = vector.extract_strided_slice %4 {offsets = [0, 21], sizes = [32, 128], strides = [1, 1]} : vector<32x190xbf16> to vector<32x128xbf16>
    %13 = vector.extract_strided_slice %4 {offsets = [0, 22], sizes = [32, 128], strides = [1, 1]} : vector<32x190xbf16> to vector<32x128xbf16>
    %14 = vector.extract_strided_slice %4 {offsets = [0, 30], sizes = [32, 128], strides = [1, 1]} : vector<32x190xbf16> to vector<32x128xbf16>
    %15 = vector.extract_strided_slice %4 {offsets = [0, 31], sizes = [32, 128], strides = [1, 1]} : vector<32x190xbf16> to vector<32x128xbf16>
    %16 = vector.extract_strided_slice %4 {offsets = [0, 32], sizes = [32, 128], strides = [1, 1]} : vector<32x190xbf16> to vector<32x128xbf16>
    %17 = vector.extract_strided_slice %4 {offsets = [0, 40], sizes = [32, 128], strides = [1, 1]} : vector<32x190xbf16> to vector<32x128xbf16>
    %18 = vector.extract_strided_slice %4 {offsets = [0, 41], sizes = [32, 128], strides = [1, 1]} : vector<32x190xbf16> to vector<32x128xbf16>
    %19 = vector.extract_strided_slice %4 {offsets = [0, 42], sizes = [32, 128], strides = [1, 1]} : vector<32x190xbf16> to vector<32x128xbf16>
    %20 = vector.extract_strided_slice %4 {offsets = [0, 50], sizes = [32, 128], strides = [1, 1]} : vector<32x190xbf16> to vector<32x128xbf16>
    %21 = vector.extract_strided_slice %4 {offsets = [0, 51], sizes = [32, 128], strides = [1, 1]} : vector<32x190xbf16> to vector<32x128xbf16>
    %22 = vector.extract_strided_slice %4 {offsets = [0, 52], sizes = [32, 128], strides = [1, 1]} : vector<32x190xbf16> to vector<32x128xbf16>
    %23 = vector.extract_strided_slice %4 {offsets = [0, 60], sizes = [32, 128], strides = [1, 1]} : vector<32x190xbf16> to vector<32x128xbf16>
    %24 = vector.extract_strided_slice %4 {offsets = [0, 61], sizes = [32, 128], strides = [1, 1]} : vector<32x190xbf16> to vector<32x128xbf16>
    %25 = vector.extract_strided_slice %4 {offsets = [0, 62], sizes = [32, 128], strides = [1, 1]} : vector<32x190xbf16> to vector<32x128xbf16>
    %26 = tpu.concatenate %5, %6, %7, %8, %9, %10, %11, %12, %13, %14, %15, %16, %17, %18, %19, %20 in 0 : vector<32x128xbf16>, vector<32x128xbf16>, vector<32x128xbf16>, vector<32x128xbf16>, vector<32x128xbf16>, vector<32x128xbf16>, vector<32x128xbf16>, vector<32x128xbf16>, vector<32x128xbf16>, vector<32x128xbf16>, vector<32x128xbf16>, vector<32x128xbf16>, vector<32x128xbf16>, vector<32x128xbf16>, vector<32x128xbf16>, vector<32x128xbf16> -> vector<512x128xbf16>
    %27 = tpu.concatenate %21, %22, %23, %24, %25 in 0 : vector<32x128xbf16>, vector<32x128xbf16>, vector<32x128xbf16>, vector<32x128xbf16>, vector<32x128xbf16> -> vector<160x128xbf16>
    %28 = tpu.concatenate %26, %27 in 0 : vector<512x128xbf16>, vector<160x128xbf16> -> vector<672x128xbf16>
    %c0_1 = arith.constant 0 : index
    %c0_2 = arith.constant 0 : index
    %29 = vector.load %arg3[%c0_1, %c0_2] : memref<2x672xbf16, #tpu.memory_space<vmem>>, vector<2x672xbf16>
    %cst = arith.constant dense<0.000000e+00> : vector<2x128xf32>
    %30 = tpu.matmul %29, %28, %cst {dimension_numbers = #tpu.dot_dimension_numbers<[1], [0], [0], [1], [0, 0, 1, 1], [], []>} : vector<2x672xbf16>, vector<672x128xbf16>, vector<2x128xf32> -> vector<2x128xf32>
    %c0_3 = arith.constant 0 : index
    %c0_4 = arith.constant 0 : index
    %31 = vector.load %arg4[%c0_3, %c0_4] : memref<2x1xf32, #tpu.memory_space<vmem>>, vector<2x1xf32>
    %32 = vector.broadcast %31 : vector<2x1xf32> to vector<2x128xf32>
    %33 = arith.addf %30, %32 : vector<2x128xf32>
    %34 = vector.shape_cast %33 : vector<2x128xf32> to vector<1x2x128xf32>
    %c0_5 = arith.constant 0 : index
    %c0_6 = arith.constant 0 : index
    %c0_7 = arith.constant 0 : index
    %35 = vector.load %arg5[%c0_5, %c0_6, %c0_7] : memref<1x2x128xf32, #tpu.memory_space<vmem>>, vector<1x2x128xf32>
    tpu.vector_store %arg5[%c0_5, %c0_6, %c0_7], %34 {strides = array<i32>} : memref<1x2x128xf32, #tpu.memory_space<vmem>>, vector<1x2x128xf32>,
    return
  }
  func.func @transform_0(%arg0: i32, %arg1: i32) -> (i32, i32, i32) {
    %c0_i32 = arith.constant 0 : i32
    %c0_i32_0 = arith.constant 0 : i32
    %c0_i32_1 = arith.constant 0 : i32
    return %arg0, %c0_i32, %c0_i32_0 : i32, i32, i32
  }
  func.func @transform_1(%arg0: i32, %arg1: i32) -> (i32, i32) {
    %c0_i32 = arith.constant 0 : i32
    %c0_i32_0 = arith.constant 0 : i32
    %c0_i32_1 = arith.constant 0 : i32
    return %c0_i32, %c0_i32_0 : i32, i32
  }
  func.func @transform_2(%arg0: i32, %arg1: i32) -> (i32, i32) {
    %c0_i32 = arith.constant 0 : i32
    %c0_i32_0 = arith.constant 0 : i32
    %c0_i32_1 = arith.constant 0 : i32
    return %c0_i32, %c0_i32_0 : i32, i32
  }
  func.func @transform_3(%arg0: i32, %arg1: i32) -> (i32, i32, i32) {
    %c0_i32 = arith.constant 0 : i32
    %c0_i32_0 = arith.constant 0 : i32
    return %arg0, %c0_i32, %arg1 : i32, i32, i32
  }
}

</mosaic_0001>

<llo_original>
// kernel: custom-call
$region0: #{custom-call}
  %s0 = inlined_call_operand.vmem [shape: c64[2,1,9,8], index: 0, kind: input, shape index: {}]
  %s1 = inlined_call_operand.vmem [shape: f32[2,1,9,8], index: 1, kind: output, shape index: {}]
  %v2 = vld [vmem:[%s0] sm:$0xff]
  %3 = vst [vmem:[%s1] sm:$0xff] %v2
  %s4 = scalar_lea.vmem %s1, 8
  %s5 = scalar_lea.vmem %s0, 8
  %v6 = vld [vmem:[%s5] sm:$0xff]
  %7 = vst [vmem:[%s4] sm:$0xff] %v6
  %s8 = scalar_lea.vmem %s1, 16
  %s9 = scalar_lea.vmem %s0, 16
  %v10 = vld [vmem:[%s9] sm:$0xff]
  %11 = vst [vmem:[%s8] sm:$0xff] %v10
  %s12 = scalar_lea.vmem %s1, 24
  %s13 = scalar_lea.vmem %s0, 24
  %v14 = vld [vmem:[%s13] sm:$0xff]
  %15 = vst [vmem:[%s12] sm:$0xff] %v14

// kernel: custom-call.1
$region0: #{custom-call.1}
  %s0 = inlined_call_operand.vmem [shape: c64[2,1,9,8], index: 0, kind: input, shape index: {}]
  %s1 = inlined_call_operand.vmem [shape: f32[2,1,9,8], index: 1, kind: output, shape index: {}]
  %s2 = scalar_lea.vmem %s0, 32
  %v3 = vld [vmem:[%s2] sm:$0xff]
  %4 = vst [vmem:[%s1] sm:$0xff] %v3
  %s5 = scalar_lea.vmem %s1, 8
  %s6 = scalar_lea.vmem %s2, 8
  %v7 = vld [vmem:[%s6] sm:$0xff]
  %8 = vst [vmem:[%s5] sm:$0xff] %v7
  %s9 = scalar_lea.vmem %s1, 16
  %s10 = scalar_lea.vmem %s2, 16
  %v11 = vld [vmem:[%s10] sm:$0xff]
  %12 = vst [vmem:[%s9] sm:$0xff] %v11
  %s13 = scalar_lea.vmem %s1, 24
  %s14 = scalar_lea.vmem %s2, 24
  %v15 = vld [vmem:[%s14] sm:$0xff]
  %16 = vst [vmem:[%s13] sm:$0xff] %v15

// kernel: reverse.5
$region0: #{reverse.5}
  %s0 = inlined_call_operand.vmem [shape: f32[2,8,7], index: 0, kind: input, shape index: {}]
  %s1 = inlined_call_operand.vmem [shape: f32[2,8,7], index: 1, kind: output, shape index: {}]
  $region1: #{reverse.5} parent=0
    #allocation0 [shape = 'u8[16384]{0}', space=vmem, size = 0x4000, scoped, tag = 'operand span for operand 0']
    #allocation1 [shape = 'u8[8192]{0}', space=vmem, size = 0x2000, scoped, tag = 'operand span for operand 1']
    %s2 = scalar_lea.vmem [#allocation0], 8
    // Predicated region
    $region2: #{reverse.5} parent=1 // pred_check
      _
    $region3: #{reverse.5} parent=1 // pred_check_branch
      %4 = sbr.rel (0) target = $region5
    $region4: #{reverse.5} parent=1 // pred_region
      // Predicated region
      $region6: #{reverse.5} parent=4 // pred_check
        _
      $region7: #{reverse.5} parent=4 // pred_check_branch
        %6 = sbr.rel (0) target = $region9
      $region8: #{reverse.5} parent=4 // pred_region
        // Predicated region
        $region21: #{reverse.5} parent=8 // pred_check
          _
        $region22: #{reverse.5} parent=8 // pred_check_branch
          %23 = sbr.rel (0) target = $region24
        $region23: #{reverse.5} parent=8 // pred_region
          loop: start=0, step=1, limit=1
          $region25: #{reverse.5} parent=23 // loop_pre_header
            _
          $region26: #{reverse.5} parent=23 // loop_header
            %s25 = sphi 0, %s29
            %p26 = scmp.ge.s32.totalorder %s25, 1
            %s30 = sphi %s0, %s0
            %s31 = sphi %s2, %s2
          $region27: #{reverse.5} parent=23 // loop_header_branch
            %28 = sbr.rel (%p26) target = $region31
          $region28: #{reverse.5} parent=23 // loop_body
            %v32 = vld [vmem:[%s30] sm:$0xff]
            %33 = vst [vmem:[%s31] sm:$0xff] %v32
            %v34 = vld [vmem:[%s30 + $0x8] sm:$0xff]
            %35 = vst [vmem:[%s31 + $0x10] sm:$0xff] %v34
          $region29: #{reverse.5} parent=23 // loop_footer
            %s29 = sadd.s32 1, %s25
          $region30: #{reverse.5} parent=23 // loop_footer_branch
            %24 = sbr.rel target = $region26
          $region31: #{reverse.5} parent=23 // loop_exit
            _
        $region24: #{reverse.5} parent=8 // pred_fallthru
          _
        // Predicated region
        $region32: #{reverse.5} parent=8 // pred_check
          _
        $region33: #{reverse.5} parent=8 // pred_check_branch
          %37 = sbr.rel target = $region35
        $region34: #{reverse.5} parent=8 // pred_region
          _
        $region35: #{reverse.5} parent=8 // pred_fallthru
          _
      $region9: #{reverse.5} parent=4 // pred_fallthru
        _
      // Predicated region
      $region10: #{reverse.5} parent=4 // pred_check
        _
      $region11: #{reverse.5} parent=4 // pred_check_branch
        %8 = sbr.rel target = $region13
      $region12: #{reverse.5} parent=4 // pred_region
        loop: start=0, step=1, limit=1
        $region14: #{reverse.5} parent=12 // loop_pre_header
          _
        $region15: #{reverse.5} parent=12 // loop_header
          %s11 = sphi 0, %s15
          %p12 = scmp.ge.s32.totalorder %s11, 1
          %s16 = sphi %s0, %s0
          %s17 = sphi %s2, %s2
        $region16: #{reverse.5} parent=12 // loop_header_branch
          %14 = sbr.rel (%p12) target = $region20
        $region17: #{reverse.5} parent=12 // loop_body
          %v18 = vld [vmem:[%s16] sm:$0xff]
          %19 = vst [vmem:[%s17] sm:$0xff] %v18
          %v20 = vld [vmem:[%s16 + $0x8] sm:$0xff]
          %21 = vst [vmem:[%s17 + $0x10] sm:$0xff] %v20
        $region18: #{reverse.5} parent=12 // loop_footer
          %s15 = sadd.s32 1, %s11
        $region19: #{reverse.5} parent=12 // loop_footer_branch
          %10 = sbr.rel target = $region15
        $region20: #{reverse.5} parent=12 // loop_exit
          _
      $region13: #{reverse.5} parent=4 // pred_fallthru
        _
    $region5: #{reverse.5} parent=1 // pred_fallthru
      _
    %38 = vnop
    %s39 = scalar_lea.vmem [#allocation0], 7
    %v40 = vld [vmem:[%s39] ss:$-1 sm:$0xff]
    %v41 = vrot.slane %v40, 1
    %42 = vst [vmem:[#allocation1] sm:$0xff] %v41
    %s43 = scalar_lea.vmem [#allocation0], 8
    %s44 = scalar_lea.vmem %s43, 7 [#allocation0]
    %v45 = vld [vmem:[%s44] ss:$-1 sm:$0xff]
    %v46 = vrot.slane %v45, 1
    %v47 = vlaneseq
    %v48 = vshrl.u32 %v47, 7
    %vm49 = vcmp.lt.s32.totalorder %v48, 7
    %50 = vst.msk [vmem:[#allocation1] sm:$0xff] %vm49, %v46
    %s51 = scalar_lea.vmem [#allocation1], 8
    %s52 = scalar_lea.vmem [#allocation0], 16
    %s53 = scalar_lea.vmem %s52, 7 [#allocation0]
    %v54 = vld [vmem:[%s53] ss:$-1 sm:$0xff]
    %v55 = vrot.slane %v54, 1
    %56 = vst [vmem:[%s51] sm:$0xff] %v55
    %s57 = scalar_lea.vmem %s52, 8 [#allocation0]
    %s58 = scalar_lea.vmem %s57, 7 [#allocation0]
    %v59 = vld [vmem:[%s58] ss:$-1 sm:$0xff]
    %v60 = vrot.slane %v59, 1
    %v61 = vlaneseq
    %v62 = vshrl.u32 %v61, 7
    %vm63 = vcmp.lt.s32.totalorder %v62, 7
    %64 = vst.msk [vmem:[%s51] sm:$0xff] %vm63, %v60
    // Predicated region
    $region36: #{reverse.5} parent=1 // pred_check
      _
    $region37: #{reverse.5} parent=1 // pred_check_branch
      %66 = sbr.rel (0) target = $region39
    $region38: #{reverse.5} parent=1 // pred_region
      // Predicated region
      $region40: #{reverse.5} parent=38 // pred_check
        _
      $region41: #{reverse.5} parent=38 // pred_check_branch
        %68 = sbr.rel (0) target = $region43
      $region42: #{reverse.5} parent=38 // pred_region
        // Predicated region
        $region55: #{reverse.5} parent=42 // pred_check
          _
        $region56: #{reverse.5} parent=42 // pred_check_branch
          %85 = sbr.rel (0) target = $region58
        $region57: #{reverse.5} parent=42 // pred_region
          loop: start=0, step=1, limit=1
          $region59: #{reverse.5} parent=57 // loop_pre_header
            _
          $region60: #{reverse.5} parent=57 // loop_header
            %s87 = sphi 0, %s91
            %p88 = scmp.ge.s32.totalorder %s87, 1
            %s92 = sphi [#allocation1], [#allocation1]
            %s93 = sphi %s1, %s1
          $region61: #{reverse.5} parent=57 // loop_header_branch
            %90 = sbr.rel (%p88) target = $region65
          $region62: #{reverse.5} parent=57 // loop_body
            %v94 = vld [vmem:[%s92] sm:$0xff]
            %95 = vst [vmem:[%s93] sm:$0xff] %v94
            %v96 = vld [vmem:[%s92 + $0x8] sm:$0xff]
            %97 = vst [vmem:[%s93 + $0x8] sm:$0xff] %v96
          $region63: #{reverse.5} parent=57 // loop_footer
            %s91 = sadd.s32 1, %s87
          $region64: #{reverse.5} parent=57 // loop_footer_branch
            %86 = sbr.rel target = $region60
          $region65: #{reverse.5} parent=57 // loop_exit
            _
        $region58: #{reverse.5} parent=42 // pred_fallthru
          _
        // Predicated region
        $region66: #{reverse.5} parent=42 // pred_check
          _
        $region67: #{reverse.5} parent=42 // pred_check_branch
          %99 = sbr.rel target = $region69
        $region68: #{reverse.5} parent=42 // pred_region
          _
        $region69: #{reverse.5} parent=42 // pred_fallthru
          _
      $region43: #{reverse.5} parent=38 // pred_fallthru
        _
      // Predicated region
      $region44: #{reverse.5} parent=38 // pred_check
        _
      $region45: #{reverse.5} parent=38 // pred_check_branch
        %70 = sbr.rel target = $region47
      $region46: #{reverse.5} parent=38 // pred_region
        loop: start=0, step=1, limit=1
        $region48: #{reverse.5} parent=46 // loop_pre_header
          _
        $region49: #{reverse.5} parent=46 // loop_header
          %s73 = sphi 0, %s77
          %p74 = scmp.ge.s32.totalorder %s73, 1
          %s78 = sphi [#allocation1], [#allocation1]
          %s79 = sphi %s1, %s1
        $region50: #{reverse.5} parent=46 // loop_header_branch
          %76 = sbr.rel (%p74) target = $region54
        $region51: #{reverse.5} parent=46 // loop_body
          %v80 = vld [vmem:[%s78] sm:$0xff]
          %81 = vst [vmem:[%s79] sm:$0xff] %v80
          %v82 = vld [vmem:[%s78 + $0x8] sm:$0xff]
          %83 = vst [vmem:[%s79 + $0x8] sm:$0xff] %v82
        $region52: #{reverse.5} parent=46 // loop_footer
          %s77 = sadd.s32 1, %s73
        $region53: #{reverse.5} parent=46 // loop_footer_branch
          %72 = sbr.rel target = $region49
        $region54: #{reverse.5} parent=46 // loop_exit
          _
      $region47: #{reverse.5} parent=38 // pred_fallthru
        _
    $region39: #{reverse.5} parent=1 // pred_fallthru
      _
    %100 = vnop

// kernel: deep_griffin_lim_forward.15
$region0: #{deep_griffin_lim_forward.15}
  #allocation0 [shape = 'u32[]', space=smem, size = 0x4, offset = 0x4, fixed_abs, tag = 'smem constant byte address 0x4 - core index']
  #allocation1 [shape = 'u32[144,128]{1,0:T(1,128)}', space=vmem, size = 0x12000, scoped, tag = 'internal scratch']
  %s0 = inlined_call_operand.vmem [shape: f32[2,9,8], index: 0, kind: input, shape index: {}]
  %s1 = inlined_call_operand.vmem [shape: f32[2,9,8], index: 1, kind: input, shape index: {}]
  %s2 = inlined_call_operand.vmem [shape: f32[2,9,8], index: 2, kind: input, shape index: {}]
  %s3 = inlined_call_operand.vmem [shape: f32[2,9,8], index: 3, kind: output, shape index: {0}]
  %s4 = inlined_call_operand.vmem [shape: f32[2,9,8], index: 4, kind: output, shape index: {1}]
  %5 = xla_tuple %s3, %s4
  %s6 = sld [smem:[#allocation0]]
  $region53: #{deep_griffin_lim_forward.15} parent=0
    _
  %s8 = ssub.s32 1, %s6
  %s9 = scalar_select 0, %s8, %s6
  loop: start=0, step=1, limit=4
  $region2: #{deep_griffin_lim_forward.15} parent=0 // loop_pre_header
    _
  $region3: #{deep_griffin_lim_forward.15} parent=0 // loop_header
    %s11 = sphi 0, %s15
    %p12 = scmp.ge.s32.totalorder %s11, 4
    %s21 = sphi 0, %s23
    %s24 = sphi 0, %s21
    %s25 = sphi 0, %s24
    %s41 = sphi 0, %s25
    %s47 = sphi 0, %s49
    %s50 = sphi 0, %s47
    %s51 = sphi 0, %s50
    %s67 = sphi 0, %s51
    %s73 = sphi 0, %s75
    %s76 = sphi 0, %s73
    %s77 = sphi 0, %s76
    %s93 = sphi 0, %s77
    %s99 = sphi 0, %s101
    %s102 = sphi 0, %s99
    %s103 = sphi 0, %s102
    %s119 = sphi 0, %s103
    %s125 = sphi 0, %s127
    %s128 = sphi 0, %s125
    %s129 = sphi 0, %s128
    %s145 = sphi 0, %s129
  $region4: #{deep_griffin_lim_forward.15} parent=0 // loop_header_branch
    %14 = sbr.rel (%p12) target = $region8
  $region5: #{deep_griffin_lim_forward.15} parent=0 // loop_body
    %s16 = ssub.s32 %s11, 1
    %s17 = ssub.s32 %s11, 2
    %s18 = sadd.s32 %s11, 1
    %s19 = ssub.s32 %s11, %s18
    %p20 = scmp.eq.s32.totalorder %s19, 0
    %s22 = sadd.s32 %s21, 1
    %s23 = scalar_select %p20, %s21, %s22
    %p26 = pneg %p20
    %p27 = scmp.eq.s32.totalorder %s11, 1
    %p28 = por %p26, %p27
    %p29 = scmp.ne.s32.totalorder %s21, %s24
    %p30 = scmp.eq.s32.totalorder %s11, 0
    %p31 = por %p29, %p30
    %p32 = scmp.ne.s32.totalorder %s21, %s24
    %p33 = scmp.eq.s32.totalorder %s16, 1
    %p34 = por %p32, %p33
    %p35 = scmp.ne.s32.totalorder %s24, %s25
    %p36 = scmp.eq.s32.totalorder %s16, 0
    %p37 = por %p35, %p36
    %p38 = scmp.ne.s32.totalorder %s24, %s25
    %p39 = scmp.eq.s32.totalorder %s17, 1
    %p40 = por %p38, %p39
    %p42 = scmp.ne.s32.totalorder %s25, %s41
    %p43 = scmp.eq.s32.totalorder %s17, 0
    %p44 = por %p42, %p43
    %s45 = ssub.s32 %s11, %s18
    %p46 = scmp.eq.s32.totalorder %s45, 0
    %s48 = sadd.s32 %s47, 1
    %s49 = scalar_select %p46, %s47, %s48
    %p52 = pneg %p46
    %p53 = scmp.eq.s32.totalorder %s11, 1
    %p54 = por %p52, %p53
    %p55 = scmp.ne.s32.totalorder %s47, %s50
    %p56 = scmp.eq.s32.totalorder %s11, 0
    %p57 = por %p55, %p56
    %p58 = scmp.ne.s32.totalorder %s47, %s50
    %p59 = scmp.eq.s32.totalorder %s16, 1
    %p60 = por %p58, %p59
    %p61 = scmp.ne.s32.totalorder %s50, %s51
    %p62 = scmp.eq.s32.totalorder %s16, 0
    %p63 = por %p61, %p62
    %p64 = scmp.ne.s32.totalorder %s50, %s51
    %p65 = scmp.eq.s32.totalorder %s17, 1
    %p66 = por %p64, %p65
    %p68 = scmp.ne.s32.totalorder %s51, %s67
    %p69 = scmp.eq.s32.totalorder %s17, 0
    %p70 = por %p68, %p69
    %s71 = ssub.s32 %s11, %s18
    %p72 = scmp.eq.s32.totalorder %s71, 0
    %s74 = sadd.s32 %s73, 1
    %s75 = scalar_select %p72, %s73, %s74
    %p78 = pneg %p72
    %p79 = scmp.eq.s32.totalorder %s11, 1
    %p80 = por %p78, %p79
    %p81 = scmp.ne.s32.totalorder %s73, %s76
    %p82 = scmp.eq.s32.totalorder %s11, 0
    %p83 = por %p81, %p82
    %p84 = scmp.ne.s32.totalorder %s73, %s76
    %p85 = scmp.eq.s32.totalorder %s16, 1
    %p86 = por %p84, %p85
    %p87 = scmp.ne.s32.totalorder %s76, %s77
    %p88 = scmp.eq.s32.totalorder %s16, 0
    %p89 = por %p87, %p88
    %p90 = scmp.ne.s32.totalorder %s76, %s77
    %p91 = scmp.eq.s32.totalorder %s17, 1
    %p92 = por %p90, %p91
    %p94 = scmp.ne.s32.totalorder %s77, %s93
    %p95 = scmp.eq.s32.totalorder %s17, 0
    %p96 = por %p94, %p95
    %s97 = ssub.s32 %s11, %s18
    %p98 = scmp.eq.s32.totalorder %s97, 0
    %s100 = sadd.s32 %s99, 1
    %s101 = scalar_select %p98, %s99, %s100
    %p104 = pneg %p98
    %p105 = scmp.eq.s32.totalorder %s11, 1
    %p106 = por %p104, %p105
    %p107 = scmp.ne.s32.totalorder %s99, %s102
    %p108 = scmp.eq.s32.totalorder %s11, 0
    %p109 = por %p107, %p108
    %p110 = scmp.ne.s32.totalorder %s99, %s102
    %p111 = scmp.eq.s32.totalorder %s16, 1
    %p112 = por %p110, %p111
    %p113 = scmp.ne.s32.totalorder %s102, %s103
    %p114 = scmp.eq.s32.totalorder %s16, 0
    %p115 = por %p113, %p114
    %p116 = scmp.ne.s32.totalorder %s102, %s103
    %p117 = scmp.eq.s32.totalorder %s17, 1
    %p118 = por %p116, %p117
    %p120 = scmp.ne.s32.totalorder %s103, %s119
    %p121 = scmp.eq.s32.totalorder %s17, 0
    %p122 = por %p120, %p121
    %s123 = ssub.s32 %s11, %s18
    %p124 = scmp.eq.s32.totalorder %s123, 0
    %s126 = sadd.s32 %s125, 1
    %s127 = scalar_select %p124, %s125, %s126
    %p130 = pneg %p124
    %p131 = scmp.eq.s32.totalorder %s11, 1
    %p132 = por %p130, %p131
    %p133 = scmp.ne.s32.totalorder %s125, %s128
    %p134 = scmp.eq.s32.totalorder %s11, 0
    %p135 = por %p133, %p134
    %p136 = scmp.ne.s32.totalorder %s125, %s128
    %p137 = scmp.eq.s32.totalorder %s16, 1
    %p138 = por %p136, %p137
    %p139 = scmp.ne.s32.totalorder %s128, %s129
    %p140 = scmp.eq.s32.totalorder %s16, 0
    %p141 = por %p139, %p140
    %p142 = scmp.ne.s32.totalorder %s128, %s129
    %p143 = scmp.eq.s32.totalorder %s17, 1
    %p144 = por %p142, %p143
    %p146 = scmp.ne.s32.totalorder %s129, %s145
    %p147 = scmp.eq.s32.totalorder %s17, 0
    %p148 = por %p146, %p147
    %p149 = scmp.le.s32.totalorder 1, %s11
    %p150 = scmp.lt.s32.totalorder %s11, 3
    %p151 = pnand %p149, %p150
    %p152 = pneg %p151
    // Predicated region
    $region9: #{deep_griffin_lim_forward.15} parent=5 // pred_check
      _
    $region10: #{deep_griffin_lim_forward.15} parent=5 // pred_check_branch
      %154 = sbr.rel (%p151) target = $region12
    $region11: #{deep_griffin_lim_forward.15} parent=5 // pred_region
      %s155 = ssub.s32 %s11, 1
    $region12: #{deep_griffin_lim_forward.15} parent=5 // pred_fallthru
      _
    %p156 = scmp.lt.s32.totalorder %s11, 2
    // Predicated region
    $region13: #{deep_griffin_lim_forward.15} parent=5 // pred_check
      %p157 = pneg %p156
    $region14: #{deep_griffin_lim_forward.15} parent=5 // pred_check_branch
      %159 = sbr.rel (%p157) target = $region16
    $region15: #{deep_griffin_lim_forward.15} parent=5 // pred_region
      // Predicated region
      $region17: #{deep_griffin_lim_forward.15} parent=15 // pred_check
        %p160 = pneg %p31
      $region18: #{deep_griffin_lim_forward.15} parent=15 // pred_check_branch
        %162 = sbr.rel (%p160) target = $region20
      $region19: #{deep_griffin_lim_forward.15} parent=15 // pred_region
        %p163 = scmp.lt.s32.totalorder %s11, 1
        %s164 = scalar_select %p163, %s11, 1
        %s165 = smul.addr %s164, 2
        %s166 = smul.addr %s165, 8
        %s167 = scalar_lea.vmem %s0, %s166
      $region20: #{deep_griffin_lim_forward.15} parent=15 // pred_fallthru
        _
      // Predicated region
      $region21: #{deep_griffin_lim_forward.15} parent=15 // pred_check
        %p168 = pneg %p57
      $region22: #{deep_griffin_lim_forward.15} parent=15 // pred_check_branch
        %170 = sbr.rel (%p168) target = $region24
      $region23: #{deep_griffin_lim_forward.15} parent=15 // pred_region
        %p171 = scmp.lt.s32.totalorder %s11, 1
        %s172 = scalar_select %p171, %s11, 1
        %s173 = smul.addr %s172, 2
        %s174 = smul.addr %s173, 8
        %s175 = scalar_lea.vmem %s1, %s174
      $region24: #{deep_griffin_lim_forward.15} parent=15 // pred_fallthru
        _
      // Predicated region
      $region25: #{deep_griffin_lim_forward.15} parent=15 // pred_check
        %p176 = pneg %p83
      $region26: #{deep_griffin_lim_forward.15} parent=15 // pred_check_branch
        %178 = sbr.rel (%p176) target = $region28
      $region27: #{deep_griffin_lim_forward.15} parent=15 // pred_region
        %p179 = scmp.lt.s32.totalorder %s11, 1
        %s180 = scalar_select %p179, %s11, 1
        %s181 = smul.addr %s180, 2
        %s182 = smul.addr %s181, 8
        %s183 = scalar_lea.vmem %s2, %s182
      $region28: #{deep_griffin_lim_forward.15} parent=15 // pred_fallthru
        _
    $region16: #{deep_griffin_lim_forward.15} parent=5 // pred_fallthru
      _
    %p184 = scmp.le.s32.totalorder 1, %s11
    %p185 = scmp.lt.s32.totalorder %s11, 3
    %p186 = pnand %p184, %p185
    %p187 = pneg %p186
    // Predicated region
    $region29: #{deep_griffin_lim_forward.15} parent=5 // pred_check
      _
    $region30: #{deep_griffin_lim_forward.15} parent=5 // pred_check_branch
      %189 = sbr.rel (%p186) target = $region32
    $region31: #{deep_griffin_lim_forward.15} parent=5 // pred_region
      %s190 = ssub.s32 %s11, 1
      %p191 = scmp.lt.s32.totalorder %s16, 1
      %s192 = scalar_select %p191, %s16, 1
      %s193 = smul.addr %s192, 2
      %s194 = smul.addr %s193, 8
      %s195 = scalar_lea.vmem %s0, %s194
      %p196 = pneg %p37
      %p197 = pneg %p34
      %p198 = scmp.lt.s32.totalorder %s16, 1
      %s199 = scalar_select %p198, %s16, 1
      %s200 = smul.addr %s199, 2
      %s201 = smul.addr %s200, 8
      %s202 = scalar_lea.vmem %s1, %s201
      %p203 = pneg %p63
      %p204 = pneg %p60
      %p205 = scmp.lt.s32.totalorder %s16, 1
      %s206 = scalar_select %p205, %s16, 1
      %s207 = smul.addr %s206, 2
      %s208 = smul.addr %s207, 8
      %s209 = scalar_lea.vmem %s2, %s208
      %p210 = pneg %p89
      %p211 = pneg %p86
      %p212 = pneg %p115
      %p213 = pneg %p112
      %p214 = scmp.lt.s32.totalorder %s16, 1
      %s215 = scalar_select %p214, %s16, 1
      %s216 = smul.addr %s215, 2
      %s217 = smul.addr %s216, 8
      %s218 = scalar_lea.vmem %s3, %s217
      %p219 = pneg %p141
      %p220 = pneg %p138
      %p221 = scmp.lt.s32.totalorder %s16, 1
      %s222 = scalar_select %p221, %s16, 1
      %s223 = smul.addr %s222, 2
      %s224 = smul.addr %s223, 8
      %s225 = scalar_lea.vmem %s4, %s224
      %p226 = scmp.lt.s32.totalorder %s16, 1
      %s227 = scalar_select %p226, %s16, 1
      %s228 = smul.addr %s227, 2
      %s229 = smul.addr %s228, 8
      %s230 = scalar_lea.vmem %s0, %s229
      %p231 = scmp.lt.s32.totalorder %s16, 1
      %s232 = scalar_select %p231, %s16, 1
      %s233 = smul.addr %s232, 2
      %s234 = smul.addr %s233, 8
      %s235 = scalar_lea.vmem %s1, %s234
      %p236 = scmp.lt.s32.totalorder %s16, 1
      %s237 = scalar_select %p236, %s16, 1
      %s238 = smul.addr %s237, 2
      %s239 = smul.addr %s238, 8
      %s240 = scalar_lea.vmem %s2, %s239
      %p241 = scmp.lt.s32.totalorder %s16, 1
      %s242 = scalar_select %p241, %s16, 1
      %s243 = smul.addr %s242, 2
      %s244 = smul.addr %s243, 8
      %s245 = scalar_lea.vmem %s3, %s244
      %p246 = scmp.lt.s32.totalorder %s16, 1
      %s247 = scalar_select %p246, %s16, 1
      %s248 = smul.addr %s247, 2
      %s249 = smul.addr %s248, 8
      %s250 = scalar_lea.vmem %s4, %s249
      %v251 = vld [vmem:[%s230] sm:$0xff]
      %v252 = vld [vmem:[%s230 + $0x8] sm:$0x1]
      %v253 = vld [vmem:[%s235] sm:$0xff]
      %v254 = vld [vmem:[%s235 + $0x8] sm:$0x1]
      %v255 = vld [vmem:[%s240] sm:$0xff]
      %v256 = vld [vmem:[%s240 + $0x8] sm:$0x1]
      %v257 = vmul.f32 %v251, %v251
      %v258 = vmul.f32 %v252, %v252
      %v259 = vmul.f32 %v253, %v253
      %v260 = vmul.f32 %v254, %v254
      %v261 = vadd.f32 %v257, %v259
      %v262 = vadd.f32 %v258, %v260
      %v263 = vadd.f32 %v261, 1e-12
      %v264 = vadd.f32 %v262, 1e-12
      %v265 = vrsqrt.pop %v263
      %v266 = vrsqrt.pop %v264
      %v267 = vmul.f32 %v255, %v265
      %v268 = vmul.f32 %v256, %v266
      %v269 = vmul.f32 %v251, %v267
      %v270 = vmul.f32 %v252, %v268
      %vm271 = vcmask 64512
      %272 = vst.msk [vmem:[%s245] sm:$0xff] %vm271, %v269
      %vm273 = vcmask 57344
      %274 = vst.msk [vmem:[%s245 + $0x8] sm:$0x1] %vm273, %v270
      %v275 = vmul.f32 %v253, %v267
      %v276 = vmul.f32 %v254, %v268
      %277 = vst.msk [vmem:[%s250] sm:$0xff] %vm271, %v275
      %278 = vst.msk [vmem:[%s250 + $0x8] sm:$0x1] %vm273, %v276
      %p279 = scmp.lt.s32.totalorder %s16, 1
      %s280 = scalar_select %p279, %s16, 1
      %s281 = smul.addr %s280, 2
      %s282 = smul.addr %s281, 8
      %s283 = scalar_lea.vmem %s3, %s282
      %p284 = scmp.lt.s32.totalorder %s16, 1
      %s285 = scalar_select %p284, %s16, 1
      %s286 = smul.addr %s285, 2
      %s287 = smul.addr %s286, 8
      %s288 = scalar_lea.vmem %s4, %s287
      // Predicated region
      $region33: #{deep_griffin_lim_forward.15} parent=31 // pred_check
        %p289 = pneg %p112
      $region34: #{deep_griffin_lim_forward.15} parent=31 // pred_check_branch
        %291 = sbr.rel (%p289) target = $region36
      $region35: #{deep_griffin_lim_forward.15} parent=31 // pred_region
        _
      $region36: #{deep_griffin_lim_forward.15} parent=31 // pred_fallthru
        _
      // Predicated region
      $region37: #{deep_griffin_lim_forward.15} parent=31 // pred_check
        %p292 = pneg %p138
      $region38: #{deep_griffin_lim_forward.15} parent=31 // pred_check_branch
        %294 = sbr.rel (%p292) target = $region40
      $region39: #{deep_griffin_lim_forward.15} parent=31 // pred_region
        _
      $region40: #{deep_griffin_lim_forward.15} parent=31 // pred_fallthru
        _
    $region32: #{deep_griffin_lim_forward.15} parent=5 // pred_fallthru
      _
    %p295 = scmp.le.s32.totalorder 2, %s11
    // Predicated region
    $region41: #{deep_griffin_lim_forward.15} parent=5 // pred_check
      %p296 = pneg %p295
    $region42: #{deep_griffin_lim_forward.15} parent=5 // pred_check_branch
      %298 = sbr.rel (%p296) target = $region44
    $region43: #{deep_griffin_lim_forward.15} parent=5 // pred_region
      %s299 = ssub.s32 %s11, 2
      // Predicated region
      $region45: #{deep_griffin_lim_forward.15} parent=43 // pred_check
        %p300 = pneg %p118
      $region46: #{deep_griffin_lim_forward.15} parent=43 // pred_check_branch
        %302 = sbr.rel (%p300) target = $region48
      $region47: #{deep_griffin_lim_forward.15} parent=43 // pred_region
        %p303 = scmp.lt.s32.totalorder %s17, 1
        %s304 = scalar_select %p303, %s17, 1
        %s305 = smul.addr %s304, 2
        %s306 = smul.addr %s305, 8
        %s307 = scalar_lea.vmem %s3, %s306
      $region48: #{deep_griffin_lim_forward.15} parent=43 // pred_fallthru
        _
      // Predicated region
      $region49: #{deep_griffin_lim_forward.15} parent=43 // pred_check
        %p308 = pneg %p144
      $region50: #{deep_griffin_lim_forward.15} parent=43 // pred_check_branch
        %310 = sbr.rel (%p308) target = $region52
      $region51: #{deep_griffin_lim_forward.15} parent=43 // pred_region
        %p311 = scmp.lt.s32.totalorder %s17, 1
        %s312 = scalar_select %p311, %s17, 1
        %s313 = smul.addr %s312, 2
        %s314 = smul.addr %s313, 8
        %s315 = scalar_lea.vmem %s4, %s314
      $region52: #{deep_griffin_lim_forward.15} parent=43 // pred_fallthru
        _
    $region44: #{deep_griffin_lim_forward.15} parent=5 // pred_fallthru
      _
  $region6: #{deep_griffin_lim_forward.15} parent=0 // loop_footer
    %s15 = sadd.s32 1, %s11
  $region7: #{deep_griffin_lim_forward.15} parent=0 // loop_footer_branch
    %10 = sbr.rel target = $region3
  $region8: #{deep_griffin_lim_forward.15} parent=0 // loop_exit
    _

// kernel: deep_griffin_lim_forward.16
$region0: #{deep_griffin_lim_forward.16}
  #allocation0 [shape = 'u32[]', space=smem, size = 0x4, offset = 0x4, fixed_abs, tag = 'smem constant byte address 0x4 - core index']
  #allocation1 [shape = 'u32[144,128]{1,0:T(1,128)}', space=vmem, size = 0x12000, scoped, tag = 'internal scratch']
  %s0 = inlined_call_operand.vmem [shape: f32[2,9,8], index: 0, kind: input, shape index: {}]
  %s1 = inlined_call_operand.vmem [shape: f32[2,9,8], index: 1, kind: input, shape index: {}]
  %s2 = inlined_call_operand.vmem [shape: f32[2,9,8], index: 2, kind: input, shape index: {}]
  %s3 = inlined_call_operand.vmem [shape: f32[2,9,8], index: 3, kind: input, shape index: {}]
  %s4 = inlined_call_operand.vmem [shape: f32[2,9,8], index: 4, kind: input, shape index: {}]
  %s5 = inlined_call_operand.vmem [shape: bf16[2,7,9,8], index: 5, kind: output, shape index: {}]
  %s6 = sld [smem:[#allocation0]]
  $region53: #{deep_griffin_lim_forward.16} parent=0
    _
  %s8 = ssub.s32 1, %s6
  %s9 = scalar_select 0, %s8, %s6
  loop: start=0, step=1, limit=4
  $region2: #{deep_griffin_lim_forward.16} parent=0 // loop_pre_header
    _
  $region3: #{deep_griffin_lim_forward.16} parent=0 // loop_header
    %s11 = sphi 0, %s15
    %p12 = scmp.ge.s32.totalorder %s11, 4
    %s21 = sphi 0, %s23
    %s24 = sphi 0, %s21
    %s25 = sphi 0, %s24
    %s41 = sphi 0, %s25
    %s47 = sphi 0, %s49
    %s50 = sphi 0, %s47
    %s51 = sphi 0, %s50
    %s67 = sphi 0, %s51
    %s73 = sphi 0, %s75
    %s76 = sphi 0, %s73
    %s77 = sphi 0, %s76
    %s93 = sphi 0, %s77
    %s99 = sphi 0, %s101
    %s102 = sphi 0, %s99
    %s103 = sphi 0, %s102
    %s119 = sphi 0, %s103
    %s125 = sphi 0, %s127
    %s128 = sphi 0, %s125
    %s129 = sphi 0, %s128
    %s145 = sphi 0, %s129
    %s151 = sphi 0, %s153
    %s154 = sphi 0, %s151
    %s155 = sphi 0, %s154
    %s171 = sphi 0, %s155
  $region4: #{deep_griffin_lim_forward.16} parent=0 // loop_header_branch
    %14 = sbr.rel (%p12) target = $region8
  $region5: #{deep_griffin_lim_forward.16} parent=0 // loop_body
    %s16 = ssub.s32 %s11, 1
    %s17 = ssub.s32 %s11, 2
    %s18 = sadd.s32 %s11, 1
    %s19 = ssub.s32 %s11, %s18
    %p20 = scmp.eq.s32.totalorder %s19, 0
    %s22 = sadd.s32 %s21, 1
    %s23 = scalar_select %p20, %s21, %s22
    %p26 = pneg %p20
    %p27 = scmp.eq.s32.totalorder %s11, 1
    %p28 = por %p26, %p27
    %p29 = scmp.ne.s32.totalorder %s21, %s24
    %p30 = scmp.eq.s32.totalorder %s11, 0
    %p31 = por %p29, %p30
    %p32 = scmp.ne.s32.totalorder %s21, %s24
    %p33 = scmp.eq.s32.totalorder %s16, 1
    %p34 = por %p32, %p33
    %p35 = scmp.ne.s32.totalorder %s24, %s25
    %p36 = scmp.eq.s32.totalorder %s16, 0
    %p37 = por %p35, %p36
    %p38 = scmp.ne.s32.totalorder %s24, %s25
    %p39 = scmp.eq.s32.totalorder %s17, 1
    %p40 = por %p38, %p39
    %p42 = scmp.ne.s32.totalorder %s25, %s41
    %p43 = scmp.eq.s32.totalorder %s17, 0
    %p44 = por %p42, %p43
    %s45 = ssub.s32 %s11, %s18
    %p46 = scmp.eq.s32.totalorder %s45, 0
    %s48 = sadd.s32 %s47, 1
    %s49 = scalar_select %p46, %s47, %s48
    %p52 = pneg %p46
    %p53 = scmp.eq.s32.totalorder %s11, 1
    %p54 = por %p52, %p53
    %p55 = scmp.ne.s32.totalorder %s47, %s50
    %p56 = scmp.eq.s32.totalorder %s11, 0
    %p57 = por %p55, %p56
    %p58 = scmp.ne.s32.totalorder %s47, %s50
    %p59 = scmp.eq.s32.totalorder %s16, 1
    %p60 = por %p58, %p59
    %p61 = scmp.ne.s32.totalorder %s50, %s51
    %p62 = scmp.eq.s32.totalorder %s16, 0
    %p63 = por %p61, %p62
    %p64 = scmp.ne.s32.totalorder %s50, %s51
    %p65 = scmp.eq.s32.totalorder %s17, 1
    %p66 = por %p64, %p65
    %p68 = scmp.ne.s32.totalorder %s51, %s67
    %p69 = scmp.eq.s32.totalorder %s17, 0
    %p70 = por %p68, %p69
    %s71 = ssub.s32 %s11, %s18
    %p72 = scmp.eq.s32.totalorder %s71, 0
    %s74 = sadd.s32 %s73, 1
    %s75 = scalar_select %p72, %s73, %s74
    %p78 = pneg %p72
    %p79 = scmp.eq.s32.totalorder %s11, 1
    %p80 = por %p78, %p79
    %p81 = scmp.ne.s32.totalorder %s73, %s76
    %p82 = scmp.eq.s32.totalorder %s11, 0
    %p83 = por %p81, %p82
    %p84 = scmp.ne.s32.totalorder %s73, %s76
    %p85 = scmp.eq.s32.totalorder %s16, 1
    %p86 = por %p84, %p85
    %p87 = scmp.ne.s32.totalorder %s76, %s77
    %p88 = scmp.eq.s32.totalorder %s16, 0
    %p89 = por %p87, %p88
    %p90 = scmp.ne.s32.totalorder %s76, %s77
    %p91 = scmp.eq.s32.totalorder %s17, 1
    %p92 = por %p90, %p91
    %p94 = scmp.ne.s32.totalorder %s77, %s93
    %p95 = scmp.eq.s32.totalorder %s17, 0
    %p96 = por %p94, %p95
    %s97 = ssub.s32 %s11, %s18
    %p98 = scmp.eq.s32.totalorder %s97, 0
    %s100 = sadd.s32 %s99, 1
    %s101 = scalar_select %p98, %s99, %s100
    %p104 = pneg %p98
    %p105 = scmp.eq.s32.totalorder %s11, 1
    %p106 = por %p104, %p105
    %p107 = scmp.ne.s32.totalorder %s99, %s102
    %p108 = scmp.eq.s32.totalorder %s11, 0
    %p109 = por %p107, %p108
    %p110 = scmp.ne.s32.totalorder %s99, %s102
    %p111 = scmp.eq.s32.totalorder %s16, 1
    %p112 = por %p110, %p111
    %p113 = scmp.ne.s32.totalorder %s102, %s103
    %p114 = scmp.eq.s32.totalorder %s16, 0
    %p115 = por %p113, %p114
    %p116 = scmp.ne.s32.totalorder %s102, %s103
    %p117 = scmp.eq.s32.totalorder %s17, 1
    %p118 = por %p116, %p117
    %p120 = scmp.ne.s32.totalorder %s103, %s119
    %p121 = scmp.eq.s32.totalorder %s17, 0
    %p122 = por %p120, %p121
    %s123 = ssub.s32 %s11, %s18
    %p124 = scmp.eq.s32.totalorder %s123, 0
    %s126 = sadd.s32 %s125, 1
    %s127 = scalar_select %p124, %s125, %s126
    %p130 = pneg %p124
    %p131 = scmp.eq.s32.totalorder %s11, 1
    %p132 = por %p130, %p131
    %p133 = scmp.ne.s32.totalorder %s125, %s128
    %p134 = scmp.eq.s32.totalorder %s11, 0
    %p135 = por %p133, %p134
    %p136 = scmp.ne.s32.totalorder %s125, %s128
    %p137 = scmp.eq.s32.totalorder %s16, 1
    %p138 = por %p136, %p137
    %p139 = scmp.ne.s32.totalorder %s128, %s129
    %p140 = scmp.eq.s32.totalorder %s16, 0
    %p141 = por %p139, %p140
    %p142 = scmp.ne.s32.totalorder %s128, %s129
    %p143 = scmp.eq.s32.totalorder %s17, 1
    %p144 = por %p142, %p143
    %p146 = scmp.ne.s32.totalorder %s129, %s145
    %p147 = scmp.eq.s32.totalorder %s17, 0
    %p148 = por %p146, %p147
    %s149 = ssub.s32 %s11, %s18
    %p150 = scmp.eq.s32.totalorder %s149, 0
    %s152 = sadd.s32 %s151, 1
    %s153 = scalar_select %p150, %s151, %s152
    %p156 = pneg %p150
    %p157 = scmp.eq.s32.totalorder %s11, 1
    %p158 = por %p156, %p157
    %p159 = scmp.ne.s32.totalorder %s151, %s154
    %p160 = scmp.eq.s32.totalorder %s11, 0
    %p161 = por %p159, %p160
    %p162 = scmp.ne.s32.totalorder %s151, %s154
    %p163 = scmp.eq.s32.totalorder %s16, 1
    %p164 = por %p162, %p163
    %p165 = scmp.ne.s32.totalorder %s154, %s155
    %p166 = scmp.eq.s32.totalorder %s16, 0
    %p167 = por %p165, %p166
    %p168 = scmp.ne.s32.totalorder %s154, %s155
    %p169 = scmp.eq.s32.totalorder %s17, 1
    %p170 = por %p168, %p169
    %p172 = scmp.ne.s32.totalorder %s155, %s171
    %p173 = scmp.eq.s32.totalorder %s17, 0
    %p174 = por %p172, %p173
    %p175 = scmp.le.s32.totalorder 1, %s11
    %p176 = scmp.lt.s32.totalorder %s11, 3
    %p177 = pnand %p175, %p176
    %p178 = pneg %p177
    // Predicated region
    $region9: #{deep_griffin_lim_forward.16} parent=5 // pred_check
      _
    $region10: #{deep_griffin_lim_forward.16} parent=5 // pred_check_branch
      %180 = sbr.rel (%p177) target = $region12
    $region11: #{deep_griffin_lim_forward.16} parent=5 // pred_region
      %s181 = ssub.s32 %s11, 1
    $region12: #{deep_griffin_lim_forward.16} parent=5 // pred_fallthru
      _
    %p182 = scmp.lt.s32.totalorder %s11, 2
    // Predicated region
    $region13: #{deep_griffin_lim_forward.16} parent=5 // pred_check
      %p183 = pneg %p182
    $region14: #{deep_griffin_lim_forward.16} parent=5 // pred_check_branch
      %185 = sbr.rel (%p183) target = $region16
    $region15: #{deep_griffin_lim_forward.16} parent=5 // pred_region
      // Predicated region
      $region17: #{deep_griffin_lim_forward.16} parent=15 // pred_check
        %p186 = pneg %p31
      $region18: #{deep_griffin_lim_forward.16} parent=15 // pred_check_branch
        %188 = sbr.rel (%p186) target = $region20
      $region19: #{deep_griffin_lim_forward.16} parent=15 // pred_region
        %p189 = scmp.lt.s32.totalorder %s11, 1
        %s190 = scalar_select %p189, %s11, 1
        %s191 = smul.addr %s190, 2
        %s192 = smul.addr %s191, 8
        %s193 = scalar_lea.vmem %s0, %s192
      $region20: #{deep_griffin_lim_forward.16} parent=15 // pred_fallthru
        _
      // Predicated region
      $region21: #{deep_griffin_lim_forward.16} parent=15 // pred_check
        %p194 = pneg %p57
      $region22: #{deep_griffin_lim_forward.16} parent=15 // pred_check_branch
        %196 = sbr.rel (%p194) target = $region24
      $region23: #{deep_griffin_lim_forward.16} parent=15 // pred_region
        %p197 = scmp.lt.s32.totalorder %s11, 1
        %s198 = scalar_select %p197, %s11, 1
        %s199 = smul.addr %s198, 2
        %s200 = smul.addr %s199, 8
        %s201 = scalar_lea.vmem %s1, %s200
      $region24: #{deep_griffin_lim_forward.16} parent=15 // pred_fallthru
        _
      // Predicated region
      $region25: #{deep_griffin_lim_forward.16} parent=15 // pred_check
        %p202 = pneg %p83
      $region26: #{deep_griffin_lim_forward.16} parent=15 // pred_check_branch
        %204 = sbr.rel (%p202) target = $region28
      $region27: #{deep_griffin_lim_forward.16} parent=15 // pred_region
        %p205 = scmp.lt.s32.totalorder %s11, 1
        %s206 = scalar_select %p205, %s11, 1
        %s207 = smul.addr %s206, 2
        %s208 = smul.addr %s207, 8
        %s209 = scalar_lea.vmem %s2, %s208
      $region28: #{deep_griffin_lim_forward.16} parent=15 // pred_fallthru
        _
      // Predicated region
      $region29: #{deep_griffin_lim_forward.16} parent=15 // pred_check
        %p210 = pneg %p109
      $region30: #{deep_griffin_lim_forward.16} parent=15 // pred_check_branch
        %212 = sbr.rel (%p210) target = $region32
      $region31: #{deep_griffin_lim_forward.16} parent=15 // pred_region
        %p213 = scmp.lt.s32.totalorder %s11, 1
        %s214 = scalar_select %p213, %s11, 1
        %s215 = smul.addr %s214, 2
        %s216 = smul.addr %s215, 8
        %s217 = scalar_lea.vmem %s3, %s216
      $region32: #{deep_griffin_lim_forward.16} parent=15 // pred_fallthru
        _
      // Predicated region
      $region33: #{deep_griffin_lim_forward.16} parent=15 // pred_check
        %p218 = pneg %p135
      $region34: #{deep_griffin_lim_forward.16} parent=15 // pred_check_branch
        %220 = sbr.rel (%p218) target = $region36
      $region35: #{deep_griffin_lim_forward.16} parent=15 // pred_region
        %p221 = scmp.lt.s32.totalorder %s11, 1
        %s222 = scalar_select %p221, %s11, 1
        %s223 = smul.addr %s222, 2
        %s224 = smul.addr %s223, 8
        %s225 = scalar_lea.vmem %s4, %s224
      $region36: #{deep_griffin_lim_forward.16} parent=15 // pred_fallthru
        _
    $region16: #{deep_griffin_lim_forward.16} parent=5 // pred_fallthru
      _
    %p226 = scmp.le.s32.totalorder 1, %s11
    %p227 = scmp.lt.s32.totalorder %s11, 3
    %p228 = pnand %p226, %p227
    %p229 = pneg %p228
    // Predicated region
    $region37: #{deep_griffin_lim_forward.16} parent=5 // pred_check
      _
    $region38: #{deep_griffin_lim_forward.16} parent=5 // pred_check_branch
      %231 = sbr.rel (%p228) target = $region40
    $region39: #{deep_griffin_lim_forward.16} parent=5 // pred_region
      %s232 = ssub.s32 %s11, 1
      %p233 = scmp.lt.s32.totalorder %s16, 1
      %s234 = scalar_select %p233, %s16, 1
      %s235 = smul.addr %s234, 2
      %s236 = smul.addr %s235, 8
      %s237 = scalar_lea.vmem %s0, %s236
      %p238 = pneg %p37
      %p239 = pneg %p34
      %p240 = scmp.lt.s32.totalorder %s16, 1
      %s241 = scalar_select %p240, %s16, 1
      %s242 = smul.addr %s241, 2
      %s243 = smul.addr %s242, 8
      %s244 = scalar_lea.vmem %s1, %s243
      %p245 = pneg %p63
      %p246 = pneg %p60
      %p247 = scmp.lt.s32.totalorder %s16, 1
      %s248 = scalar_select %p247, %s16, 1
      %s249 = smul.addr %s248, 2
      %s250 = smul.addr %s249, 8
      %s251 = scalar_lea.vmem %s2, %s250
      %p252 = pneg %p89
      %p253 = pneg %p86
      %p254 = scmp.lt.s32.totalorder %s16, 1
      %s255 = scalar_select %p254, %s16, 1
      %s256 = smul.addr %s255, 2
      %s257 = smul.addr %s256, 8
      %s258 = scalar_lea.vmem %s3, %s257
      %p259 = pneg %p115
      %p260 = pneg %p112
      %p261 = scmp.lt.s32.totalorder %s16, 1
      %s262 = scalar_select %p261, %s16, 1
      %s263 = smul.addr %s262, 2
      %s264 = smul.addr %s263, 8
      %s265 = scalar_lea.vmem %s4, %s264
      %p266 = pneg %p141
      %p267 = pneg %p138
      %p268 = pneg %p167
      %p269 = pneg %p164
      %p270 = scmp.lt.s32.totalorder %s16, 1
      %s271 = scalar_select %p270, %s16, 1
      %s272 = smul.addr %s271, 14
      %s273 = smul.addr %s272, 4
      %s274 = scalar_lea.vmem %s5, %s273
      %p275 = scmp.lt.s32.totalorder %s16, 1
      %s276 = scalar_select %p275, %s16, 1
      %s277 = smul.addr %s276, 2
      %s278 = smul.addr %s277, 8
      %s279 = scalar_lea.vmem %s0, %s278
      %p280 = scmp.lt.s32.totalorder %s16, 1
      %s281 = scalar_select %p280, %s16, 1
      %s282 = smul.addr %s281, 2
      %s283 = smul.addr %s282, 8
      %s284 = scalar_lea.vmem %s1, %s283
      %p285 = scmp.lt.s32.totalorder %s16, 1
      %s286 = scalar_select %p285, %s16, 1
      %s287 = smul.addr %s286, 2
      %s288 = smul.addr %s287, 8
      %s289 = scalar_lea.vmem %s2, %s288
      %p290 = scmp.lt.s32.totalorder %s16, 1
      %s291 = scalar_select %p290, %s16, 1
      %s292 = smul.addr %s291, 2
      %s293 = smul.addr %s292, 8
      %s294 = scalar_lea.vmem %s3, %s293
      %p295 = scmp.lt.s32.totalorder %s16, 1
      %s296 = scalar_select %p295, %s16, 1
      %s297 = smul.addr %s296, 2
      %s298 = smul.addr %s297, 8
      %s299 = scalar_lea.vmem %s4, %s298
      %p300 = scmp.lt.s32.totalorder %s16, 1
      %s301 = scalar_select %p300, %s16, 1
      %s302 = smul.addr %s301, 14
      %s303 = smul.addr %s302, 4
      %s304 = scalar_lea.vmem %s5, %s303
      %v305 = vld [vmem:[%s279] sm:$0xff]
      %v306 = vld [vmem:[%s279 + $0x8] sm:$0x1]
      %v307 = vld [vmem:[%s284] sm:$0xff]
      %v308 = vld [vmem:[%s284 + $0x8] sm:$0x1]
      %v309 = vld [vmem:[%s299] sm:$0xff]
      %v310 = vld [vmem:[%s299 + $0x8] sm:$0x1]
      %v311 = vmul.f32 %v305, %v305
      %v312 = vmul.f32 %v306, %v306
      %v313 = vmul.f32 %v307, %v307
      %v314 = vmul.f32 %v308, %v308
      %v315 = vadd.f32 %v311, %v313
      %v316 = vadd.f32 %v312, %v314
      %v317 = vadd.f32 %v315, 1e-12
      %v318 = vadd.f32 %v316, 1e-12
      %v319 = vrsqrt.pop %v317
      %v320 = vrsqrt.pop %v318
      %v321 = vmul.f32 %v309, %v319
      %v322 = vmul.f32 %v310, %v320
      %v323 = vpack.c.bf16 %v306, %v305
      %v325 = vunpack.c.l.b16 %v323
      %v326 = vunpack.c.h.b16 %v323
      %v327 = vpack.c.b16 %v325, %v325
      %v328 = vpack.c.b16 %v326, %v326
      %vm331 = vcmask 60416
      %332 = vst.msk [vmem:[%s304] sm:$0xf] %vm331, %v327
      %vm333 = vcmask 57344
      %vm334 = vsmask.f32 256
      %vm335 = vmand %vm333, %vm334
      %v336 = vld [vmem:[%s304 + $0x4] sm:$0x1]
      %v337 = vsel %vm335, %v328, %v336
      %338 = vst [vmem:[%s304 + $0x4] sm:$0x1] %v337
      %v339 = vpack.c.bf16 %v308, %v307
      %v341 = vunpack.c.l.b16 %v339
      %v342 = vunpack.c.h.b16 %v339
      %v343 = vpack.c.b16 %v341, %v341
      %v344 = vpack.c.b16 %v342, %v342
      %s347 = scalar_lea.vmem %s304, 8
      %348 = vst.msk [vmem:[%s347] sm:$0xf] %vm331, %v343
      %v349 = vld [vmem:[%s347 + $0x4] sm:$0x1]
      %v350 = vsel %vm335, %v344, %v349
      %351 = vst [vmem:[%s347 + $0x4] sm:$0x1] %v350
      %v352 = vmul.f32 %v305, %v321
      %v353 = vmul.f32 %v306, %v322
      %v354 = vpack.c.bf16 %v353, %v352
      %v356 = vunpack.c.l.b16 %v354
      %v357 = vunpack.c.h.b16 %v354
      %v358 = vpack.c.b16 %v356, %v356
      %v359 = vpack.c.b16 %v357, %v357
      %s362 = scalar_lea.vmem %s304, 16
      %363 = vst.msk [vmem:[%s362] sm:$0xf] %vm331, %v358
      %v364 = vld [vmem:[%s362 + $0x4] sm:$0x1]
      %v365 = vsel %vm335, %v359, %v364
      %366 = vst [vmem:[%s362 + $0x4] sm:$0x1] %v365
      %v367 = vmul.f32 %v307, %v321
      %v368 = vmul.f32 %v308, %v322
      %v369 = vpack.c.bf16 %v368, %v367
      %v371 = vunpack.c.l.b16 %v369
      %v372 = vunpack.c.h.b16 %v369
      %v373 = vpack.c.b16 %v371, %v371
      %v374 = vpack.c.b16 %v372, %v372
      %s377 = scalar_lea.vmem %s304, 24
      %378 = vst.msk [vmem:[%s377] sm:$0xf] %vm331, %v373
      %v379 = vld [vmem:[%s377 + $0x4] sm:$0x1]
      %v380 = vsel %vm335, %v374, %v379
      %381 = vst [vmem:[%s377 + $0x4] sm:$0x1] %v380
      %v382 = vld [vmem:[%s289] sm:$0xff]
      %v383 = vld [vmem:[%s289 + $0x8] sm:$0x1]
      %v384 = vpack.c.bf16 %v383, %v382
      %v386 = vunpack.c.l.b16 %v384
      %v387 = vunpack.c.h.b16 %v384
      %v388 = vpack.c.b16 %v386, %v386
      %v389 = vpack.c.b16 %v387, %v387
      %s392 = scalar_lea.vmem %s304, 32
      %393 = vst.msk [vmem:[%s392] sm:$0xf] %vm331, %v388
      %v394 = vld [vmem:[%s392 + $0x4] sm:$0x1]
      %v395 = vsel %vm335, %v389, %v394
      %396 = vst [vmem:[%s392 + $0x4] sm:$0x1] %v395
      %v397 = vld [vmem:[%s294] sm:$0xff]
      %v398 = vld [vmem:[%s294 + $0x8] sm:$0x1]
      %v399 = vpack.c.bf16 %v398, %v397
      %v401 = vunpack.c.l.b16 %v399
      %v402 = vunpack.c.h.b16 %v399
      %v403 = vpack.c.b16 %v401, %v401
      %v404 = vpack.c.b16 %v402, %v402
      %s407 = scalar_lea.vmem %s304, 40
      %408 = vst.msk [vmem:[%s407] sm:$0xf] %vm331, %v403
      %v409 = vld [vmem:[%s407 + $0x4] sm:$0x1]
      %v410 = vsel %vm335, %v404, %v409
      %411 = vst [vmem:[%s407 + $0x4] sm:$0x1] %v410
      %v412 = vpack.c.bf16 %v310, %v309
      %v414 = vunpack.c.l.b16 %v412
      %v415 = vunpack.c.h.b16 %v412
      %v416 = vpack.c.b16 %v414, %v414
      %v417 = vpack.c.b16 %v415, %v415
      %s420 = scalar_lea.vmem %s304, 48
      %421 = vst.msk [vmem:[%s420] sm:$0xf] %vm331, %v416
      %v422 = vld [vmem:[%s420 + $0x4] sm:$0x1]
      %v423 = vsel %vm335, %v417, %v422
      %424 = vst [vmem:[%s420 + $0x4] sm:$0x1] %v423
      %p425 = scmp.lt.s32.totalorder %s16, 1
      %s426 = scalar_select %p425, %s16, 1
      %s427 = smul.addr %s426, 14
      %s428 = smul.addr %s427, 4
      %s429 = scalar_lea.vmem %s5, %s428
      // Predicated region
      $region41: #{deep_griffin_lim_forward.16} parent=39 // pred_check
        %p430 = pneg %p164
      $region42: #{deep_griffin_lim_forward.16} parent=39 // pred_check_branch
        %432 = sbr.rel (%p430) target = $region44
      $region43: #{deep_griffin_lim_forward.16} parent=39 // pred_region
        _
      $region44: #{deep_griffin_lim_forward.16} parent=39 // pred_fallthru
        _
    $region40: #{deep_griffin_lim_forward.16} parent=5 // pred_fallthru
      _
    %p433 = scmp.le.s32.totalorder 2, %s11
    // Predicated region
    $region45: #{deep_griffin_lim_forward.16} parent=5 // pred_check
      %p434 = pneg %p433
    $region46: #{deep_griffin_lim_forward.16} parent=5 // pred_check_branch
      %436 = sbr.rel (%p434) target = $region48
    $region47: #{deep_griffin_lim_forward.16} parent=5 // pred_region
      %s437 = ssub.s32 %s11, 2
      // Predicated region
      $region49: #{deep_griffin_lim_forward.16} parent=47 // pred_check
        %p438 = pneg %p170
      $region50: #{deep_griffin_lim_forward.16} parent=47 // pred_check_branch
        %440 = sbr.rel (%p438) target = $region52
      $region51: #{deep_griffin_lim_forward.16} parent=47 // pred_region
        %p441 = scmp.lt.s32.totalorder %s17, 1
        %s442 = scalar_select %p441, %s17, 1
        %s443 = smul.addr %s442, 14
        %s444 = smul.addr %s443, 4
        %s445 = scalar_lea.vmem %s5, %s444
      $region52: #{deep_griffin_lim_forward.16} parent=47 // pred_fallthru
        _
    $region48: #{deep_griffin_lim_forward.16} parent=5 // pred_fallthru
      _
  $region6: #{deep_griffin_lim_forward.16} parent=0 // loop_footer
    %s15 = sadd.s32 1, %s11
  $region7: #{deep_griffin_lim_forward.16} parent=0 // loop_footer_branch
    %10 = sbr.rel target = $region3
  $region8: #{deep_griffin_lim_forward.16} parent=0 // loop_exit
    _

// kernel: deep_griffin_lim_forward.18
$region0: #{deep_griffin_lim_forward.18}
  #allocation0 [shape = 'u32[]', space=smem, size = 0x4, offset = 0x4, fixed_abs, tag = 'smem constant byte address 0x4 - core index']
  #allocation1 [shape = 'u32[144,128]{1,0:T(1,128)}', space=vmem, size = 0x12000, scoped, tag = 'internal scratch']
  %s0 = inlined_call_operand.vmem [shape: bf16[2,32,190], index: 0, kind: input, shape index: {}]
  %s1 = inlined_call_operand.vmem [shape: bf16[64,672], index: 1, kind: input, shape index: {}]
  %s2 = inlined_call_operand.vmem [shape: f32[64,1], index: 2, kind: input, shape index: {}]
  %s3 = inlined_call_operand.vmem [shape: bf16[2,32,128], index: 3, kind: output, shape index: {}]
  %s4 = sld [smem:[#allocation0]]
  $region45: #{deep_griffin_lim_forward.18} parent=0
    _
  %s6 = ssub.s32 1, %s4
  %s7 = scalar_select 0, %s6, %s4
  loop: start=0, step=1, limit=4
  $region2: #{deep_griffin_lim_forward.18} parent=0 // loop_pre_header
    _
  $region3: #{deep_griffin_lim_forward.18} parent=0 // loop_header
    %s9 = sphi 0, %s13
    %p10 = scmp.ge.s32.totalorder %s9, 4
    %s16 = sphi 0, %s28
    %s17 = sphi 0, %s24
    %s18 = sphi 0, %s16
    %s19 = sphi 0, %s17
    %s20 = sphi 0, %s18
    %s21 = sphi 0, %s19
    %s31 = sphi 0, %s33
    %s34 = sphi 0, %s31
    %s35 = sphi 0, %s34
    %s51 = sphi 0, %s35
    %s55 = sphi 0, %s55
    %s57 = sphi 0, %s55
    %s58 = sphi 0, %s57
    %s72 = sphi 0, %s58
    %s76 = sphi 0, %s76
    %s78 = sphi 0, %s76
    %s79 = sphi 0, %s78
    %s93 = sphi 0, %s79
    %s101 = sphi 0, %s103
    %s104 = sphi 0, %s101
    %s105 = sphi 0, %s104
    %s121 = sphi 0, %s105
  $region4: #{deep_griffin_lim_forward.18} parent=0 // loop_header_branch
    %12 = sbr.rel (%p10) target = $region8
  $region5: #{deep_griffin_lim_forward.18} parent=0 // loop_body
    %s14 = ssub.s32 %s9, 1
    %s15 = ssub.s32 %s9, 2
    %s22 = sadd.s32 1, %s17
    %p23 = scmp.ge.s32.totalorder %s22, 1
    %s24 = scalar_select %p23, 0, %s22
    %s25 = sadd.s32 1, %s16
    %s26 = scalar_select %p23, %s25, %s16
    %p27 = scmp.ge.s32.totalorder %s26, 2
    %s28 = scalar_select %p27, 0, %s26
    %s29 = ssub.s32 %s16, %s28
    %p30 = scmp.eq.s32.totalorder %s29, 0
    %s32 = sadd.s32 %s31, 1
    %s33 = scalar_select %p30, %s31, %s32
    %p36 = pneg %p30
    %p37 = scmp.eq.s32.totalorder %s9, 1
    %p38 = por %p36, %p37
    %p39 = scmp.ne.s32.totalorder %s31, %s34
    %p40 = scmp.eq.s32.totalorder %s9, 0
    %p41 = por %p39, %p40
    %p42 = scmp.ne.s32.totalorder %s31, %s34
    %p43 = scmp.eq.s32.totalorder %s14, 1
    %p44 = por %p42, %p43
    %p45 = scmp.ne.s32.totalorder %s34, %s35
    %p46 = scmp.eq.s32.totalorder %s14, 0
    %p47 = por %p45, %p46
    %p48 = scmp.ne.s32.totalorder %s34, %s35
    %p49 = scmp.eq.s32.totalorder %s15, 1
    %p50 = por %p48, %p49
    %p52 = scmp.ne.s32.totalorder %s35, %s51
    %p53 = scmp.eq.s32.totalorder %s15, 0
    %p54 = por %p52, %p53
    %s56 = sadd.s32 %s55, 1
    %p59 = scmp.eq.s32.totalorder %s9, 1
    %p60 = scmp.ne.s32.totalorder %s55, %s57
    %p61 = scmp.eq.s32.totalorder %s9, 0
    %p62 = por %p60, %p61
    %p63 = scmp.ne.s32.totalorder %s55, %s57
    %p64 = scmp.eq.s32.totalorder %s14, 1
    %p65 = por %p63, %p64
    %p66 = scmp.ne.s32.totalorder %s57, %s58
    %p67 = scmp.eq.s32.totalorder %s14, 0
    %p68 = por %p66, %p67
    %p69 = scmp.ne.s32.totalorder %s57, %s58
    %p70 = scmp.eq.s32.totalorder %s15, 1
    %p71 = por %p69, %p70
    %p73 = scmp.ne.s32.totalorder %s58, %s72
    %p74 = scmp.eq.s32.totalorder %s15, 0
    %p75 = por %p73, %p74
    %s77 = sadd.s32 %s76, 1
    %p80 = scmp.eq.s32.totalorder %s9, 1
    %p81 = scmp.ne.s32.totalorder %s76, %s78
    %p82 = scmp.eq.s32.totalorder %s9, 0
    %p83 = por %p81, %p82
    %p84 = scmp.ne.s32.totalorder %s76, %s78
    %p85 = scmp.eq.s32.totalorder %s14, 1
    %p86 = por %p84, %p85
    %p87 = scmp.ne.s32.totalorder %s78, %s79
    %p88 = scmp.eq.s32.totalorder %s14, 0
    %p89 = por %p87, %p88
    %p90 = scmp.ne.s32.totalorder %s78, %s79
    %p91 = scmp.eq.s32.totalorder %s15, 1
    %p92 = por %p90, %p91
    %p94 = scmp.ne.s32.totalorder %s79, %s93
    %p95 = scmp.eq.s32.totalorder %s15, 0
    %p96 = por %p94, %p95
    %s97 = ssub.s32 %s16, %s28
    %s98 = ssub.s32 %s17, %s24
    %s99 = sor.u32 %s97, %s98
    %p100 = scmp.eq.s32.totalorder %s99, 0
    %s102 = sadd.s32 %s101, 1
    %s103 = scalar_select %p100, %s101, %s102
    %p106 = pneg %p100
    %p107 = scmp.eq.s32.totalorder %s9, 1
    %p108 = por %p106, %p107
    %p109 = scmp.ne.s32.totalorder %s101, %s104
    %p110 = scmp.eq.s32.totalorder %s9, 0
    %p111 = por %p109, %p110
    %p112 = scmp.ne.s32.totalorder %s101, %s104
    %p113 = scmp.eq.s32.totalorder %s14, 1
    %p114 = por %p112, %p113
    %p115 = scmp.ne.s32.totalorder %s104, %s105
    %p116 = scmp.eq.s32.totalorder %s14, 0
    %p117 = por %p115, %p116
    %p118 = scmp.ne.s32.totalorder %s104, %s105
    %p119 = scmp.eq.s32.totalorder %s15, 1
    %p120 = por %p118, %p119
    %p122 = scmp.ne.s32.totalorder %s105, %s121
    %p123 = scmp.eq.s32.totalorder %s15, 0
    %p124 = por %p122, %p123
    %p125 = scmp.le.s32.totalorder 1, %s9
    %p126 = scmp.lt.s32.totalorder %s9, 3
    %p127 = pnand %p125, %p126
    %p128 = pneg %p127
    // Predicated region
    $region9: #{deep_griffin_lim_forward.18} parent=5 // pred_check
      _
    $region10: #{deep_griffin_lim_forward.18} parent=5 // pred_check_branch
      %130 = sbr.rel (%p127) target = $region12
    $region11: #{deep_griffin_lim_forward.18} parent=5 // pred_region
      %s131 = ssub.s32 %s9, 1
      // Predicated region
      $region13: #{deep_griffin_lim_forward.18} parent=11 // pred_check
        %p132 = pneg %p68
      $region14: #{deep_griffin_lim_forward.18} parent=11 // pred_check_branch
        %134 = sbr.rel (%p132) target = $region16
      $region15: #{deep_griffin_lim_forward.18} parent=11 // pred_region
        _
      $region16: #{deep_griffin_lim_forward.18} parent=11 // pred_fallthru
        _
      // Predicated region
      $region17: #{deep_griffin_lim_forward.18} parent=11 // pred_check
        %p135 = pneg %p89
      $region18: #{deep_griffin_lim_forward.18} parent=11 // pred_check_branch
        %137 = sbr.rel (%p135) target = $region20
      $region19: #{deep_griffin_lim_forward.18} parent=11 // pred_region
        _
      $region20: #{deep_griffin_lim_forward.18} parent=11 // pred_fallthru
        _
    $region12: #{deep_griffin_lim_forward.18} parent=5 // pred_fallthru
      _
    %p138 = scmp.lt.s32.totalorder %s9, 2
    // Predicated region
    $region21: #{deep_griffin_lim_forward.18} parent=5 // pred_check
      %p139 = pneg %p138
    $region22: #{deep_griffin_lim_forward.18} parent=5 // pred_check_branch
      %141 = sbr.rel (%p139) target = $region24
    $region23: #{deep_griffin_lim_forward.18} parent=5 // pred_region
      // Predicated region
      $region25: #{deep_griffin_lim_forward.18} parent=23 // pred_check
        %p142 = pneg %p41
      $region26: #{deep_griffin_lim_forward.18} parent=23 // pred_check_branch
        %144 = sbr.rel (%p142) target = $region28
      $region27: #{deep_griffin_lim_forward.18} parent=23 // pred_region
        %p145 = scmp.lt.s32.totalorder %s16, 1
        %s146 = scalar_select %p145, %s16, 1
        %s147 = smul.addr %s146, 8
        %s148 = smul.addr %s147, 4
        %s149 = scalar_lea.vmem %s0, %s148
      $region28: #{deep_griffin_lim_forward.18} parent=23 // pred_fallthru
        _
    $region24: #{deep_griffin_lim_forward.18} parent=5 // pred_fallthru
      _
    %p150 = scmp.le.s32.totalorder 1, %s9
    %p151 = scmp.lt.s32.totalorder %s9, 3
    %p152 = pnand %p150, %p151
    %p153 = pneg %p152
    // Predicated region
    $region29: #{deep_griffin_lim_forward.18} parent=5 // pred_check
      _
    $region30: #{deep_griffin_lim_forward.18} parent=5 // pred_check_branch
      %155 = sbr.rel (%p152) target = $region32
    $region31: #{deep_griffin_lim_forward.18} parent=5 // pred_region
      %s156 = ssub.s32 %s9, 1
      %p157 = scmp.lt.s32.totalorder %s18, 1
      %s158 = scalar_select %p157, %s18, 1
      %s159 = smul.addr %s158, 8
      %s160 = smul.addr %s159, 4
      %s161 = scalar_lea.vmem %s0, %s160
      %p162 = pneg %p47
      %p163 = pneg %p44
      %p164 = pneg %p68
      %p165 = pneg %p65
      %p166 = pneg %p89
      %p167 = pneg %p86
      %p168 = pneg %p117
      %p169 = pneg %p114
      %p170 = scmp.lt.s32.totalorder %s18, 1
      %s171 = scalar_select %p170, %s18, 1
      %p172 = scmp.lt.s32.totalorder %s19, 0
      %s173 = scalar_select %p172, %s19, 0
      %s174 = smul.addr %s171, 4
      %s175 = sadd.s32 %s173, %s174
      %s176 = smul.addr %s175, 4
      %s177 = scalar_lea.vmem %s3, %s176
      %p178 = scmp.lt.s32.totalorder %s18, 1
      %s179 = scalar_select %p178, %s18, 1
      %s180 = smul.addr %s179, 8
      %s181 = smul.addr %s180, 4
      %s182 = scalar_lea.vmem %s0, %s181
      %p183 = scmp.lt.s32.totalorder %s18, 1
      %s184 = scalar_select %p183, %s18, 1
      %p185 = scmp.lt.s32.totalorder %s19, 0
      %s186 = scalar_select %p185, %s19, 0
      %s187 = smul.addr %s184, 4
      %s188 = sadd.s32 %s186, %s187
      %s189 = smul.addr %s188, 4
      %s190 = scalar_lea.vmem %s3, %s189
      %s192 = smul.u32 %s19, 128
      %s193 = sshra.s32 %s192, 7
      %s194 = sand.u32 %s192, 127
      %s195 = smul.addr %s193, 4
      %s196 = scalar_lea.vmem %s182, %s195
      %v197 = vld [vmem:[%s196] sm:$0xff]
      %v198 = vld [vmem:[%s196 + $0x8] sm:$0xff]
      %v199 = vld [vmem:[%s196 + $0x10] sm:$0xff]
      %v200 = vld [vmem:[%s196 + $0x18] sm:$0xff]
      %v205 = vunpack.c.l.b16 %v197
      %v206 = vunpack.c.l.b16 %v198
      %v207 = vunpack.c.l.b16 %v199
      %v208 = vunpack.c.l.b16 %v200
      %v209 = vpack.c.b16 %v206, %v205
      %v210 = vpack.c.b16 %v208, %v207
      %v213 = vunpack.c.h.b16 %v197
      %v214 = vunpack.c.h.b16 %v198
      %v215 = vunpack.c.h.b16 %v199
      %v216 = vunpack.c.h.b16 %v200
      %v217 = vpack.c.b16 %v214, %v213
      %v218 = vpack.c.b16 %v216, %v215
      %219 = vrot.lane.b32.xlu0 %v209, 127
      %v220 = vpop.permute.xlu0 %219
      %221 = vrot.lane.b32.xlu0 %v217, 127
      %v222 = vpop.permute.xlu0 %221
      %223 = vrot.lane.b32.xlu0 %v210, 127
      %v224 = vpop.permute.xlu0 %223
      %225 = vrot.lane.b32.xlu0 %v218, 127
      %v226 = vpop.permute.xlu0 %225
      %vm227 = vcmask 1039360
      %v228 = vsel %vm227, %v220, %v222
      %v229 = vsel %vm227, %v224, %v226
      %232 = vrot.lane.b32.xlu0 %v209, 126
      %v233 = vpop.permute.xlu0 %232
      %234 = vrot.lane.b32.xlu0 %v217, 126
      %v235 = vpop.permute.xlu0 %234
      %236 = vrot.lane.b32.xlu0 %v210, 126
      %v237 = vpop.permute.xlu0 %236
      %238 = vrot.lane.b32.xlu0 %v218, 126
      %v239 = vpop.permute.xlu0 %238
      %vm240 = vcmask 1031168
      %v241 = vsel %vm240, %v233, %v235
      %v242 = vsel %vm240, %v237, %v239
      %245 = vrot.lane.b32.xlu0 %v209, 118
      %v246 = vpop.permute.xlu0 %245
      %247 = vrot.lane.b32.xlu0 %v217, 118
      %v248 = vpop.permute.xlu0 %247
      %249 = vrot.lane.b32.xlu0 %v210, 118
      %v250 = vpop.permute.xlu0 %249
      %251 = vrot.lane.b32.xlu0 %v218, 118
      %v252 = vpop.permute.xlu0 %251
      %vm253 = vcmask 965632
      %v254 = vsel %vm253, %v246, %v248
      %v255 = vsel %vm253, %v250, %v252
      %258 = vrot.lane.b32.xlu0 %v209, 117
      %v259 = vpop.permute.xlu0 %258
      %260 = vrot.lane.b32.xlu0 %v217, 117
      %v261 = vpop.permute.xlu0 %260
      %262 = vrot.lane.b32.xlu0 %v210, 117
      %v263 = vpop.permute.xlu0 %262
      %264 = vrot.lane.b32.xlu0 %v218, 117
      %v265 = vpop.permute.xlu0 %264
      %vm266 = vcmask 957440
      %v267 = vsel %vm266, %v259, %v261
      %v268 = vsel %vm266, %v263, %v265
      %271 = vrot.lane.b32.xlu0 %v209, 116
      %v272 = vpop.permute.xlu0 %271
      %273 = vrot.lane.b32.xlu0 %v217, 116
      %v274 = vpop.permute.xlu0 %273
      %275 = vrot.lane.b32.xlu0 %v210, 116
      %v276 = vpop.permute.xlu0 %275
      %277 = vrot.lane.b32.xlu0 %v218, 116
      %v278 = vpop.permute.xlu0 %277
      %vm279 = vcmask 949248
      %v280 = vsel %vm279, %v272, %v274
      %v281 = vsel %vm279, %v276, %v278
      %284 = vrot.lane.b32.xlu0 %v209, 108
      %v285 = vpop.permute.xlu0 %284
      %286 = vrot.lane.b32.xlu0 %v217, 108
      %v287 = vpop.permute.xlu0 %286
      %288 = vrot.lane.b32.xlu0 %v210, 108
      %v289 = vpop.permute.xlu0 %288
      %290 = vrot.lane.b32.xlu0 %v218, 108
      %v291 = vpop.permute.xlu0 %290
      %vm292 = vcmask 883712
      %v293 = vsel %vm292, %v285, %v287
      %v294 = vsel %vm292, %v289, %v291
      %297 = vrot.lane.b32.xlu0 %v209, 107
      %v298 = vpop.permute.xlu0 %297
      %299 = vrot.lane.b32.xlu0 %v217, 107
      %v300 = vpop.permute.xlu0 %299
      %301 = vrot.lane.b32.xlu0 %v210, 107
      %v302 = vpop.permute.xlu0 %301
      %303 = vrot.lane.b32.xlu0 %v218, 107
      %v304 = vpop.permute.xlu0 %303
      %vm305 = vcmask 875520
      %v306 = vsel %vm305, %v298, %v300
      %v307 = vsel %vm305, %v302, %v304
      %310 = vrot.lane.b32.xlu0 %v209, 106
      %v311 = vpop.permute.xlu0 %310
      %312 = vrot.lane.b32.xlu0 %v217, 106
      %v313 = vpop.permute.xlu0 %312
      %314 = vrot.lane.b32.xlu0 %v210, 106
      %v315 = vpop.permute.xlu0 %314
      %316 = vrot.lane.b32.xlu0 %v218, 106
      %v317 = vpop.permute.xlu0 %316
      %vm318 = vcmask 867328
      %v319 = vsel %vm318, %v311, %v313
      %v320 = vsel %vm318, %v315, %v317
      %323 = vrot.lane.b32.xlu0 %v209, 98
      %v324 = vpop.permute.xlu0 %323
      %325 = vrot.lane.b32.xlu0 %v217, 98
      %v326 = vpop.permute.xlu0 %325
      %327 = vrot.lane.b32.xlu0 %v210, 98
      %v328 = vpop.permute.xlu0 %327
      %329 = vrot.lane.b32.xlu0 %v218, 98
      %v330 = vpop.permute.xlu0 %329
      %vm331 = vcmask 801792
      %v332 = vsel %vm331, %v324, %v326
      %v333 = vsel %vm331, %v328, %v330
      %336 = vrot.lane.b32.xlu0 %v209, 97
      %v337 = vpop.permute.xlu0 %336
      %338 = vrot.lane.b32.xlu0 %v217, 97
      %v339 = vpop.permute.xlu0 %338
      %340 = vrot.lane.b32.xlu0 %v210, 97
      %v341 = vpop.permute.xlu0 %340
      %342 = vrot.lane.b32.xlu0 %v218, 97
      %v343 = vpop.permute.xlu0 %342
      %vm344 = vcmask 793600
      %v345 = vsel %vm344, %v337, %v339
      %v346 = vsel %vm344, %v341, %v343
      %349 = vrot.lane.b32.xlu0 %v209, 96
      %v350 = vpop.permute.xlu0 %349
      %351 = vrot.lane.b32.xlu0 %v217, 96
      %v352 = vpop.permute.xlu0 %351
      %353 = vrot.lane.b32.xlu0 %v210, 96
      %v354 = vpop.permute.xlu0 %353
      %355 = vrot.lane.b32.xlu0 %v218, 96
      %v356 = vpop.permute.xlu0 %355
      %vm357 = vcmask 785408
      %v358 = vsel %vm357, %v350, %v352
      %v359 = vsel %vm357, %v354, %v356
      %362 = vrot.lane.b32.xlu0 %v209, 88
      %v363 = vpop.permute.xlu0 %362
      %364 = vrot.lane.b32.xlu0 %v217, 88
      %v365 = vpop.permute.xlu0 %364
      %366 = vrot.lane.b32.xlu0 %v210, 88
      %v367 = vpop.permute.xlu0 %366
      %368 = vrot.lane.b32.xlu0 %v218, 88
      %v369 = vpop.permute.xlu0 %368
      %vm370 = vcmask 719872
      %v371 = vsel %vm370, %v363, %v365
      %v372 = vsel %vm370, %v367, %v369
      %375 = vrot.lane.b32.xlu0 %v209, 87
      %v376 = vpop.permute.xlu0 %375
      %377 = vrot.lane.b32.xlu0 %v217, 87
      %v378 = vpop.permute.xlu0 %377
      %379 = vrot.lane.b32.xlu0 %v210, 87
      %v380 = vpop.permute.xlu0 %379
      %381 = vrot.lane.b32.xlu0 %v218, 87
      %v382 = vpop.permute.xlu0 %381
      %vm383 = vcmask 711680
      %v384 = vsel %vm383, %v376, %v378
      %v385 = vsel %vm383, %v380, %v382
      %388 = vrot.lane.b32.xlu0 %v209, 86
      %v389 = vpop.permute.xlu0 %388
      %390 = vrot.lane.b32.xlu0 %v217, 86
      %v391 = vpop.permute.xlu0 %390
      %392 = vrot.lane.b32.xlu0 %v210, 86
      %v393 = vpop.permute.xlu0 %392
      %394 = vrot.lane.b32.xlu0 %v218, 86
      %v395 = vpop.permute.xlu0 %394
      %vm396 = vcmask 703488
      %v397 = vsel %vm396, %v389, %v391
      %v398 = vsel %vm396, %v393, %v395
      %401 = vrot.lane.b32.xlu0 %v209, 78
      %v402 = vpop.permute.xlu0 %401
      %403 = vrot.lane.b32.xlu0 %v217, 78
      %v404 = vpop.permute.xlu0 %403
      %405 = vrot.lane.b32.xlu0 %v210, 78
      %v406 = vpop.permute.xlu0 %405
      %407 = vrot.lane.b32.xlu0 %v218, 78
      %v408 = vpop.permute.xlu0 %407
      %vm409 = vcmask 637952
      %v410 = vsel %vm409, %v402, %v404
      %v411 = vsel %vm409, %v406, %v408
      %414 = vrot.lane.b32.xlu0 %v209, 119
      %v415 = vpop.permute.xlu0 %414
      %416 = vrot.lane.b32.xlu0 %v217, 119
      %v417 = vpop.permute.xlu0 %416
      %418 = vrot.lane.b32.xlu0 %v210, 119
      %v419 = vpop.permute.xlu0 %418
      %420 = vrot.lane.b32.xlu0 %v218, 119
      %v421 = vpop.permute.xlu0 %420
      %vm422 = vcmask 973824
      %v423 = vsel %vm422, %v415, %v417
      %v424 = vsel %vm422, %v419, %v421
      %425 = vrot.lane.b32.xlu0 %v209, 77
      %v426 = vpop.permute.xlu0 %425
      %427 = vrot.lane.b32.xlu0 %v217, 77
      %v428 = vpop.permute.xlu0 %427
      %429 = vrot.lane.b32.xlu0 %v210, 77
      %v430 = vpop.permute.xlu0 %429
      %431 = vrot.lane.b32.xlu0 %v218, 77
      %v432 = vpop.permute.xlu0 %431
      %433 = vrot.lane.b32.xlu0 %v228, 77
      %v434 = vpop.permute.xlu0 %433
      %435 = vrot.lane.b32.xlu0 %v222, 77
      %v436 = vpop.permute.xlu0 %435
      %437 = vrot.lane.b32.xlu0 %v229, 77
      %v438 = vpop.permute.xlu0 %437
      %439 = vrot.lane.b32.xlu0 %v226, 77
      %v440 = vpop.permute.xlu0 %439
      %441 = vrot.lane.b32.xlu0 %v423, 77
      %v442 = vpop.permute.xlu0 %441
      %443 = vrot.lane.b32.xlu0 %v417, 77
      %v444 = vpop.permute.xlu0 %443
      %445 = vrot.lane.b32.xlu0 %v424, 77
      %v446 = vpop.permute.xlu0 %445
      %447 = vrot.lane.b32.xlu0 %v421, 77
      %v448 = vpop.permute.xlu0 %447
      %449 = vrot.lane.b32.xlu0 %v254, 77
      %v450 = vpop.permute.xlu0 %449
      %451 = vrot.lane.b32.xlu0 %v248, 77
      %v452 = vpop.permute.xlu0 %451
      %453 = vrot.lane.b32.xlu0 %v255, 77
      %v454 = vpop.permute.xlu0 %453
      %455 = vrot.lane.b32.xlu0 %v252, 77
      %v456 = vpop.permute.xlu0 %455
      %457 = vrot.lane.b32.xlu0 %v267, 77
      %v458 = vpop.permute.xlu0 %457
      %459 = vrot.lane.b32.xlu0 %v261, 77
      %v460 = vpop.permute.xlu0 %459
      %461 = vrot.lane.b32.xlu0 %v268, 77
      %v462 = vpop.permute.xlu0 %461
      %463 = vrot.lane.b32.xlu0 %v265, 77
      %v464 = vpop.permute.xlu0 %463
      %vm465 = vcmask 629760
      %v466 = vsel %vm465, %v426, %v428
      %v467 = vsel %vm465, %v430, %v432
      %v468 = vsel %vm465, %v434, %v436
      %v469 = vsel %vm465, %v438, %v440
      %v470 = vsel %vm465, %v442, %v444
      %v471 = vsel %vm465, %v446, %v448
      %v472 = vsel %vm465, %v450, %v452
      %v473 = vsel %vm465, %v454, %v456
      %v474 = vsel %vm465, %v458, %v460
      %v475 = vsel %vm465, %v462, %v464
      %v486 = vld [vmem:[%s1] sm:$0xff]
      %v487 = vld [vmem:[%s1 + $0x8] sm:$0xff]
      %v488 = vld [vmem:[%s1 + $0x10] sm:$0xff]
      %v489 = vld [vmem:[%s1 + $0x18] sm:$0xff]
      %v490 = vld [vmem:[%s1 + $0x20] sm:$0xff]
      %v491 = vld [vmem:[%s1 + $0x28] sm:$0xff]
      %v492 = vld [vmem:[%s1 + $0x30] sm:$0xff]
      %v493 = vld [vmem:[%s1 + $0x38] sm:$0xff]
      %v494 = vld [vmem:[%s1 + $0x40] sm:$0xff]
      %v495 = vld [vmem:[%s1 + $0x48] sm:$0xff]
      %v496 = vld [vmem:[%s1 + $0x50] sm:$0xff]
      %v497 = vld [vmem:[%s1 + $0x58] sm:$0xff]
      %v498 = vld [vmem:[%s1 + $0x60] sm:$0xff]
      %v499 = vld [vmem:[%s1 + $0x68] sm:$0xff]
      %v500 = vld [vmem:[%s1 + $0x70] sm:$0xff]
      %v501 = vld [vmem:[%s1 + $0x78] sm:$0xff]
      %v502 = vld [vmem:[%s1 + $0x80] sm:$0xff]
      %v503 = vld [vmem:[%s1 + $0x88] sm:$0xff]
      %v504 = vld [vmem:[%s1 + $0x90] sm:$0xff]
      %v505 = vld [vmem:[%s1 + $0x98] sm:$0xff]
      %v506 = vld [vmem:[%s1 + $0xa0] sm:$0xff]
      %v507 = vld [vmem:[%s1 + $0xa8] sm:$0xff]
      %v508 = vld [vmem:[%s1 + $0xb0] sm:$0xff]
      %v509 = vld [vmem:[%s1 + $0xb8] sm:$0xff]
      %v510 = vld [vmem:[%s2] sm:$0xff]
      %v511 = vld [vmem:[%s2 + $0x8] sm:$0xff]
      %v512 = vld [vmem:[%s2 + $0x10] sm:$0xff]
      %v513 = vld [vmem:[%s2 + $0x18] sm:$0xff]
      %v514 = vld [vmem:[%s2 + $0x20] sm:$0xff]
      %v515 = vld [vmem:[%s2 + $0x28] sm:$0xff]
      %v516 = vld [vmem:[%s2 + $0x30] sm:$0xff]
      %v517 = vld [vmem:[%s2 + $0x38] sm:$0xff]
      %519 = vset.pattern.permute.xlu0 0
      %520 = vperm.xlu0 %519, %v510
      %v521 = vpop.permute.xlu0 %520
      %524 = vset.pattern.permute.xlu0 0
      %525 = vperm.xlu0 %524, %v511
      %v526 = vpop.permute.xlu0 %525
      %529 = vset.pattern.permute.xlu0 0
      %530 = vperm.xlu0 %529, %v512
      %v531 = vpop.permute.xlu0 %530
      %534 = vset.pattern.permute.xlu0 0
      %535 = vperm.xlu0 %534, %v513
      %v536 = vpop.permute.xlu0 %535
      %539 = vset.pattern.permute.xlu0 0
      %540 = vperm.xlu0 %539, %v514
      %v541 = vpop.permute.xlu0 %540
      %544 = vset.pattern.permute.xlu0 0
      %545 = vperm.xlu0 %544, %v515
      %v546 = vpop.permute.xlu0 %545
      %549 = vset.pattern.permute.xlu0 0
      %550 = vperm.xlu0 %549, %v516
      %v551 = vpop.permute.xlu0 %550
      %554 = vset.pattern.permute.xlu0 0
      %555 = vperm.xlu0 %554, %v517
      %v556 = vpop.permute.xlu0 %555
      %v582 = vunpack.c.l.b16 %v486
      %v583 = vunpack.c.h.b16 %v486
      %v584 = vunpack.c.l.b16 %v487
      %v585 = vunpack.c.h.b16 %v487
      %v586 = vunpack.c.l.b16 %v488
      %v587 = vunpack.c.h.b16 %v488
      %v588 = vunpack.c.l.b16 %v489
      %v589 = vunpack.c.h.b16 %v489
      %v590 = vunpack.c.l.b16 %v490
      %v591 = vunpack.c.h.b16 %v490
      %v592 = vunpack.c.l.b16 %v491
      %v593 = vunpack.c.h.b16 %v491
      %v594 = vunpack.c.l.b16 %v492
      %v595 = vunpack.c.h.b16 %v492
      %v596 = vunpack.c.l.b16 %v493
      %v597 = vunpack.c.h.b16 %v493
      %v598 = vunpack.c.l.b16 %v494
      %v599 = vunpack.c.h.b16 %v494
      %v600 = vunpack.c.l.b16 %v495
      %v601 = vunpack.c.h.b16 %v495
      %v602 = vunpack.c.l.b16 %v496
      %v603 = vunpack.c.h.b16 %v496
      %v604 = vunpack.c.l.b16 %v497
      %v605 = vunpack.c.h.b16 %v497
      %v606 = vunpack.c.l.b16 %v498
      %v607 = vunpack.c.h.b16 %v498
      %v608 = vunpack.c.l.b16 %v499
      %v609 = vunpack.c.h.b16 %v499
      %v610 = vunpack.c.l.b16 %v500
      %v611 = vunpack.c.h.b16 %v500
      %v612 = vunpack.c.l.b16 %v501
      %v613 = vunpack.c.h.b16 %v501
      %v614 = vunpack.c.l.b16 %v502
      %v615 = vunpack.c.h.b16 %v502
      %v616 = vunpack.c.l.b16 %v503
      %v617 = vunpack.c.h.b16 %v503
      %v618 = vunpack.c.l.b16 %v504
      %v619 = vunpack.c.h.b16 %v504
      %v620 = vunpack.c.l.b16 %v505
      %v621 = vunpack.c.h.b16 %v505
      %v622 = vunpack.c.l.b16 %v506
      %v623 = vunpack.c.h.b16 %v506
      %v624 = vunpack.c.l.b16 %v507
      %v625 = vunpack.c.h.b16 %v507
      %v626 = vunpack.c.l.b16 %v508
      %v627 = vunpack.c.h.b16 %v508
      %v628 = vunpack.c.l.b16 %v509
      %v629 = vunpack.c.h.b16 %v509
      %v630 = vpack.c.b16 %v588, %v582
      %v631 = vpack.c.b16 %v589, %v583
      %v632 = vpack.c.b16 %v590, %v584
      %v633 = vpack.c.b16 %v591, %v585
      %v634 = vpack.c.b16 %v592, %v586
      %v635 = vpack.c.b16 %v593, %v587
      %v636 = vpack.c.b16 %v600, %v594
      %v637 = vpack.c.b16 %v601, %v595
      %v638 = vpack.c.b16 %v602, %v596
      %v639 = vpack.c.b16 %v603, %v597
      %v640 = vpack.c.b16 %v604, %v598
      %v641 = vpack.c.b16 %v605, %v599
      %v642 = vpack.c.b16 %v612, %v606
      %v643 = vpack.c.b16 %v613, %v607
      %v644 = vpack.c.b16 %v614, %v608
      %v645 = vpack.c.b16 %v615, %v609
      %v646 = vpack.c.b16 %v616, %v610
      %v647 = vpack.c.b16 %v617, %v611
      %v648 = vpack.c.b16 %v624, %v618
      %v649 = vpack.c.b16 %v625, %v619
      %v650 = vpack.c.b16 %v626, %v620
      %v651 = vpack.c.b16 %v627, %v621
      %v652 = vpack.c.b16 %v628, %v622
      %v653 = vpack.c.b16 %v629, %v623
      %vm674 = vcmask 261120
      %v676 = vsel %vm674, %v635, 0
      %v679 = vsel %vm674, %v641, 0
      %v682 = vsel %vm674, %v647, 0
      %v685 = vsel %vm674, %v653, 0
      %687 = vmatprep.subr.bf16.mxu0 0
      %688 = vmatpush1.bf16.msra.mxu0 %v209
      %689 = vmatprep.subr.bf16.mxu0 0
      %690 = vmatpush1.bf16.msra.mxu0 %v210
      %691 = vmatprep.subr.bf16.mxu0 0
      %692 = vmatpush1.bf16.msra.mxu0 %v228
      %693 = vmatprep.subr.bf16.mxu0 0
      %694 = vmatpush1.bf16.msra.mxu0 %v229
      %695 = vmatprep.subr.bf16.mxu0 0
      %696 = vmatpush1.bf16.msra.mxu0 %v241
      %697 = vmatprep.subr.bf16.mxu0 0
      %698 = vmatpush1.bf16.msra.mxu0 %v242
      %699 = vmatprep.subr.bf16.mxu0 0
      %700 = vmatpush1.bf16.msra.mxu0 %v254
      %701 = vmatprep.subr.bf16.mxu0 0
      %702 = vmatpush1.bf16.msra.mxu0 %v255
      %703 = vmatprep.subr.bf16.mxu0 0
      %704 = vmatpush1.bf16.msra.mxu0 %v267
      %705 = vmatprep.subr.bf16.mxu0 0
      %706 = vmatpush1.bf16.msra.mxu0 %v268
      %707 = vmatprep.subr.bf16.mxu0 0
      %708 = vmatpush1.bf16.msra.mxu0 %v280
      %709 = vmatprep.subr.bf16.mxu0 0
      %710 = vmatpush1.bf16.msra.mxu0 %v281
      %711 = vmatprep.subr.bf16.mxu0 0
      %712 = vmatpush1.bf16.msra.mxu0 %v293
      %713 = vmatprep.subr.bf16.mxu0 0
      %714 = vmatpush1.bf16.msra.mxu0 %v294
      %715 = vmatprep.subr.bf16.mxu0 0
      %716 = vmatpush1.bf16.msra.mxu0 %v306
      %717 = vmatprep.subr.bf16.mxu0 0
      %718 = vmatpush1.bf16.msra.mxu0 %v307
      %719 = vmatprep.mubr.bf16.mxu0 %v631
      %720 = vmatmul.mubr.bf16.gmra.mrb[0].mxu0 %v630
      %v721 = vpop.f32.mrb[0].mxu0
      %v722 = vadd.f32 %v521, %v721
      %v723 = vpop.f32.mrb[0].mxu0
      %v724 = vpop.f32.mrb[0].mxu0
      %v725 = vadd.f32 %v526, %v724
      %v726 = vpop.f32.mrb[0].mxu0
      %727 = vmatprep.mubr.bf16.mxu0 %v637
      %728 = vmatmul.mubr.bf16.gmra.mrb[0].mxu0 %v636
      %v729 = vpop.f32.mrb[0].mxu0
      %v730 = vadd.f32 %v531, %v729
      %v731 = vpop.f32.mrb[0].mxu0
      %v732 = vpop.f32.mrb[0].mxu0
      %v733 = vadd.f32 %v536, %v732
      %v734 = vpop.f32.mrb[0].mxu0
      %735 = vmatprep.mubr.bf16.mxu0 %v643
      %736 = vmatmul.mubr.bf16.gmra.mrb[0].mxu0 %v642
      %v737 = vpop.f32.mrb[0].mxu0
      %v738 = vadd.f32 %v541, %v737
      %v739 = vpop.f32.mrb[0].mxu0
      %v740 = vpop.f32.mrb[0].mxu0
      %v741 = vadd.f32 %v546, %v740
      %v742 = vpop.f32.mrb[0].mxu0
      %743 = vmatprep.mubr.bf16.mxu0 %v649
      %744 = vmatmul.mubr.bf16.gmra.mrb[0].mxu0 %v648
      %v745 = vpop.f32.mrb[0].mxu0
      %v746 = vadd.f32 %v551, %v745
      %v747 = vpop.f32.mrb[0].mxu0
      %v748 = vpop.f32.mrb[0].mxu0
      %v749 = vadd.f32 %v556, %v748
      %v750 = vpop.f32.mrb[0].mxu0
      %751 = vdwg.mxu0
      %752 = vmatprep.subr.bf16.mxu0 0
      %753 = vmatpush1.bf16.msra.mxu0 %v319
      %754 = vmatprep.subr.bf16.mxu0 0
      %755 = vmatpush1.bf16.msra.mxu0 %v320
      %756 = vmatprep.subr.bf16.mxu0 0
      %757 = vmatpush1.bf16.msra.mxu0 %v332
      %758 = vmatprep.subr.bf16.mxu0 0
      %759 = vmatpush1.bf16.msra.mxu0 %v333
      %760 = vmatprep.subr.bf16.mxu0 0
      %761 = vmatpush1.bf16.msra.mxu0 %v345
      %762 = vmatprep.subr.bf16.mxu0 0
      %763 = vmatpush1.bf16.msra.mxu0 %v346
      %764 = vmatprep.subr.bf16.mxu0 0
      %765 = vmatpush1.bf16.msra.mxu0 %v358
      %766 = vmatprep.subr.bf16.mxu0 0
      %767 = vmatpush1.bf16.msra.mxu0 %v359
      %768 = vmatprep.subr.bf16.mxu0 0
      %769 = vmatpush1.bf16.msra.mxu0 %v371
      %770 = vmatprep.subr.bf16.mxu0 0
      %771 = vmatpush1.bf16.msra.mxu0 %v372
      %772 = vmatprep.subr.bf16.mxu0 0
      %773 = vmatpush1.bf16.msra.mxu0 %v384
      %774 = vmatprep.subr.bf16.mxu0 0
      %775 = vmatpush1.bf16.msra.mxu0 %v385
      %776 = vmatprep.subr.bf16.mxu0 0
      %777 = vmatpush1.bf16.msra.mxu0 %v397
      %778 = vmatprep.subr.bf16.mxu0 0
      %779 = vmatpush1.bf16.msra.mxu0 %v398
      %780 = vmatprep.subr.bf16.mxu0 0
      %781 = vmatpush1.bf16.msra.mxu0 %v410
      %782 = vmatprep.subr.bf16.mxu0 0
      %783 = vmatpush1.bf16.msra.mxu0 %v411
      %784 = vmatprep.mubr.bf16.mxu0 %v633
      %785 = vmatmul.mubr.bf16.gmra.mrb[0].mxu0 %v632
      %v786 = vpop.f32.mrb[0].mxu0
      %v787 = vadd.f32 %v722, %v786
      %v788 = vpop.f32.mrb[0].mxu0
      %v789 = vpop.f32.mrb[0].mxu0
      %v790 = vadd.f32 %v725, %v789
      %v791 = vpop.f32.mrb[0].mxu0
      %792 = vmatprep.mubr.bf16.mxu0 %v639
      %793 = vmatmul.mubr.bf16.gmra.mrb[0].mxu0 %v638
      %v794 = vpop.f32.mrb[0].mxu0
      %v795 = vadd.f32 %v730, %v794
      %v796 = vpop.f32.mrb[0].mxu0
      %v797 = vpop.f32.mrb[0].mxu0
      %v798 = vadd.f32 %v733, %v797
      %v799 = vpop.f32.mrb[0].mxu0
      %800 = vmatprep.mubr.bf16.mxu0 %v645
      %801 = vmatmul.mubr.bf16.gmra.mrb[0].mxu0 %v644
      %v802 = vpop.f32.mrb[0].mxu0
      %v803 = vadd.f32 %v738, %v802
      %v804 = vpop.f32.mrb[0].mxu0
      %v805 = vpop.f32.mrb[0].mxu0
      %v806 = vadd.f32 %v741, %v805
      %v807 = vpop.f32.mrb[0].mxu0
      %808 = vmatprep.mubr.bf16.mxu0 %v651
      %809 = vmatmul.mubr.bf16.gmra.mrb[0].mxu0 %v650
      %v810 = vpop.f32.mrb[0].mxu0
      %v811 = vadd.f32 %v746, %v810
      %v812 = vpop.f32.mrb[0].mxu0
      %v813 = vpop.f32.mrb[0].mxu0
      %v814 = vadd.f32 %v749, %v813
      %v815 = vpop.f32.mrb[0].mxu0
      %816 = vdwg.mxu0
      %817 = vmatprep.subr.bf16.mxu0 0
      %818 = vmatpush1.bf16.msra.mxu0 %v466
      %819 = vmatprep.subr.bf16.mxu0 0
      %820 = vmatpush1.bf16.msra.mxu0 %v467
      %821 = vmatprep.subr.bf16.mxu0 0
      %822 = vmatpush1.bf16.msra.mxu0 %v468
      %823 = vmatprep.subr.bf16.mxu0 0
      %824 = vmatpush1.bf16.msra.mxu0 %v469
      %825 = vmatprep.subr.bf16.mxu0 0
      %826 = vmatpush1.bf16.msra.mxu0 %v470
      %827 = vmatprep.subr.bf16.mxu0 0
      %828 = vmatpush1.bf16.msra.mxu0 %v471
      %829 = vmatprep.subr.bf16.mxu0 0
      %830 = vmatpush1.bf16.msra.mxu0 %v472
      %831 = vmatprep.subr.bf16.mxu0 0
      %832 = vmatpush1.bf16.msra.mxu0 %v473
      %833 = vmatprep.subr.bf16.mxu0 0
      %834 = vmatpush1.bf16.msra.mxu0 %v474
      %835 = vmatprep.subr.bf16.mxu0 0
      %836 = vmatpush1.bf16.msra.mxu0 %v475
      %837 = vmatprep.subr.bf16.mxu0 0
      %838 = vmatpush1.bf16.msra.mxu0 0
      %839 = vmatprep.subr.bf16.mxu0 0
      %840 = vmatpush1.bf16.msra.mxu0 0
      %841 = vmatprep.subr.bf16.mxu0 0
      %842 = vmatpush1.bf16.msra.mxu0 0
      %843 = vmatprep.subr.bf16.mxu0 0
      %844 = vmatpush1.bf16.msra.mxu0 0
      %845 = vmatprep.subr.bf16.mxu0 0
      %846 = vmatpush1.bf16.msra.mxu0 0
      %847 = vmatprep.subr.bf16.mxu0 0
      %848 = vmatpush1.bf16.msra.mxu0 0
      %849 = vmatprep.mubr.bf16.mxu0 %v676
      %850 = vmatmul.mubr.bf16.gmra.mrb[0].mxu0 %v634
      %v851 = vpop.f32.mrb[0].mxu0
      %v852 = vadd.f32 %v787, %v851
      %v853 = vpop.f32.mrb[0].mxu0
      %v854 = vpop.f32.mrb[0].mxu0
      %v855 = vadd.f32 %v790, %v854
      %v856 = vpop.f32.mrb[0].mxu0
      %857 = vmatprep.mubr.bf16.mxu0 %v679
      %858 = vmatmul.mubr.bf16.gmra.mrb[0].mxu0 %v640
      %v859 = vpop.f32.mrb[0].mxu0
      %v860 = vadd.f32 %v795, %v859
      %v861 = vpop.f32.mrb[0].mxu0
      %v862 = vpop.f32.mrb[0].mxu0
      %v863 = vadd.f32 %v798, %v862
      %v864 = vpop.f32.mrb[0].mxu0
      %865 = vmatprep.mubr.bf16.mxu0 %v682
      %866 = vmatmul.mubr.bf16.gmra.mrb[0].mxu0 %v646
      %v867 = vpop.f32.mrb[0].mxu0
      %v868 = vadd.f32 %v803, %v867
      %v869 = vpop.f32.mrb[0].mxu0
      %v870 = vpop.f32.mrb[0].mxu0
      %v871 = vadd.f32 %v806, %v870
      %v872 = vpop.f32.mrb[0].mxu0
      %873 = vmatprep.mubr.bf16.mxu0 %v685
      %874 = vmatmul.mubr.bf16.gmra.mrb[0].mxu0 %v652
      %v875 = vpop.f32.mrb[0].mxu0
      %v876 = vadd.f32 %v811, %v875
      %v877 = vpop.f32.mrb[0].mxu0
      %v878 = vpop.f32.mrb[0].mxu0
      %v879 = vadd.f32 %v814, %v878
      %v880 = vpop.f32.mrb[0].mxu0
      %881 = vdwg.mxu0
      %v882 = vxor.u32 %v868, 2147483648
      %v883 = vxor.u32 %v871, 2147483648
      %v884 = vxor.u32 %v876, 2147483648
      %v885 = vxor.u32 %v879, 2147483648
      %v886 = vmul.f32 %v882, 1.442695
      %v887 = vpow.pop %v886
      %v888 = vmul.f32 %v883, 1.442695
      %v889 = vpow.pop %v888
      %v890 = vmul.f32 %v884, 1.442695
      %v891 = vpow.pop %v890
      %v892 = vmul.f32 %v885, 1.442695
      %v893 = vpow.pop %v892
      %v894 = vadd.f32 %v887, 1.0
      %v895 = vadd.f32 %v889, 1.0
      %v896 = vadd.f32 %v891, 1.0
      %v897 = vadd.f32 %v893, 1.0
      %v898 = vrcp.pop %v894
      %v899 = vmul.f32 1.0, %v898
      %v900 = vrcp.pop %v895
      %v901 = vmul.f32 1.0, %v900
      %v902 = vrcp.pop %v896
      %v903 = vmul.f32 1.0, %v902
      %v904 = vrcp.pop %v897
      %v905 = vmul.f32 1.0, %v904
      %v906 = vmul.f32 %v852, %v899
      %v907 = vmul.f32 %v855, %v901
      %v908 = vmul.f32 %v860, %v903
      %v909 = vmul.f32 %v863, %v905
      %v910 = vpack.c.bf16 %v907, %v906
      %v911 = vpack.c.bf16 %v909, %v908
      %v914 = vunpack.c.l.b16 %v910
      %v915 = vunpack.c.h.b16 %v910
      %v916 = vunpack.c.l.b16 %v911
      %v917 = vunpack.c.h.b16 %v911
      %v918 = vpack.c.b16 %v914, %v914
      %v919 = vpack.c.b16 %v915, %v915
      %v920 = vpack.c.b16 %v916, %v916
      %v921 = vpack.c.b16 %v917, %v917
      %926 = vst [vmem:[%s190] sm:$0xf] %v918
      %927 = vst [vmem:[%s190 + $0x4] sm:$0xf] %v919
      %928 = vst [vmem:[%s190 + $0x8] sm:$0xf] %v920
      %929 = vst [vmem:[%s190 + $0xc] sm:$0xf] %v921
      %p930 = scmp.lt.s32.totalorder %s18, 1
      %s931 = scalar_select %p930, %s18, 1
      %p932 = scmp.lt.s32.totalorder %s19, 0
      %s933 = scalar_select %p932, %s19, 0
      %s934 = smul.addr %s931, 4
      %s935 = sadd.s32 %s933, %s934
      %s936 = smul.addr %s935, 4
      %s937 = scalar_lea.vmem %s3, %s936
      // Predicated region
      $region33: #{deep_griffin_lim_forward.18} parent=31 // pred_check
        %p938 = pneg %p114
      $region34: #{deep_griffin_lim_forward.18} parent=31 // pred_check_branch
        %940 = sbr.rel (%p938) target = $region36
      $region35: #{deep_griffin_lim_forward.18} parent=31 // pred_region
        _
      $region36: #{deep_griffin_lim_forward.18} parent=31 // pred_fallthru
        _
    $region32: #{deep_griffin_lim_forward.18} parent=5 // pred_fallthru
      _
    %p941 = scmp.le.s32.totalorder 2, %s9
    // Predicated region
    $region37: #{deep_griffin_lim_forward.18} parent=5 // pred_check
      %p942 = pneg %p941
    $region38: #{deep_griffin_lim_forward.18} parent=5 // pred_check_branch
      %944 = sbr.rel (%p942) target = $region40
    $region39: #{deep_griffin_lim_forward.18} parent=5 // pred_region
      %s945 = ssub.s32 %s9, 2
      // Predicated region
      $region41: #{deep_griffin_lim_forward.18} parent=39 // pred_check
        %p946 = pneg %p120
      $region42: #{deep_griffin_lim_forward.18} parent=39 // pred_check_branch
        %948 = sbr.rel (%p946) target = $region44
      $region43: #{deep_griffin_lim_forward.18} parent=39 // pred_region
        %p949 = scmp.lt.s32.totalorder %s20, 1
        %s950 = scalar_select %p949, %s20, 1
        %p951 = scmp.lt.s32.totalorder %s21, 0
        %s952 = scalar_select %p951, %s21, 0
        %s953 = smul.addr %s950, 4
        %s954 = sadd.s32 %s952, %s953
        %s955 = smul.addr %s954, 4
        %s956 = scalar_lea.vmem %s3, %s955
      $region44: #{deep_griffin_lim_forward.18} parent=39 // pred_fallthru
        _
    $region40: #{deep_griffin_lim_forward.18} parent=5 // pred_fallthru
      _
  $region6: #{deep_griffin_lim_forward.18} parent=0 // loop_footer
    %s13 = sadd.s32 1, %s9
  $region7: #{deep_griffin_lim_forward.18} parent=0 // loop_footer_branch
    %8 = sbr.rel target = $region3
  $region8: #{deep_griffin_lim_forward.18} parent=0 // loop_exit
    _

// kernel: deep_griffin_lim_forward.21
$region0: #{deep_griffin_lim_forward.21}
  #allocation0 [shape = 'u32[]', space=smem, size = 0x4, offset = 0x4, fixed_abs, tag = 'smem constant byte address 0x4 - core index']
  #allocation1 [shape = 'u32[144,128]{1,0:T(1,128)}', space=vmem, size = 0x12000, scoped, tag = 'internal scratch']
  %s0 = inlined_call_operand.vmem [shape: bf16[2,32,190], index: 0, kind: input, shape index: {}]
  %s1 = inlined_call_operand.vmem [shape: bf16[2,672], index: 1, kind: input, shape index: {}]
  %s2 = inlined_call_operand.vmem [shape: f32[2,1], index: 2, kind: input, shape index: {}]
  %s3 = inlined_call_operand.vmem [shape: f32[2,2,128], index: 3, kind: output, shape index: {}]
  %s4 = sld [smem:[#allocation0]]
  $region45: #{deep_griffin_lim_forward.21} parent=0
    _
  %s6 = ssub.s32 1, %s4
  %s7 = scalar_select 0, %s6, %s4
  loop: start=0, step=1, limit=4
  $region2: #{deep_griffin_lim_forward.21} parent=0 // loop_pre_header
    _
  $region3: #{deep_griffin_lim_forward.21} parent=0 // loop_header
    %s9 = sphi 0, %s13
    %p10 = scmp.ge.s32.totalorder %s9, 4
    %s16 = sphi 0, %s28
    %s17 = sphi 0, %s24
    %s18 = sphi 0, %s16
    %s19 = sphi 0, %s17
    %s20 = sphi 0, %s18
    %s21 = sphi 0, %s19
    %s31 = sphi 0, %s33
    %s34 = sphi 0, %s31
    %s35 = sphi 0, %s34
    %s51 = sphi 0, %s35
    %s55 = sphi 0, %s55
    %s57 = sphi 0, %s55
    %s58 = sphi 0, %s57
    %s72 = sphi 0, %s58
    %s76 = sphi 0, %s76
    %s78 = sphi 0, %s76
    %s79 = sphi 0, %s78
    %s93 = sphi 0, %s79
    %s101 = sphi 0, %s103
    %s104 = sphi 0, %s101
    %s105 = sphi 0, %s104
    %s121 = sphi 0, %s105
  $region4: #{deep_griffin_lim_forward.21} parent=0 // loop_header_branch
    %12 = sbr.rel (%p10) target = $region8
  $region5: #{deep_griffin_lim_forward.21} parent=0 // loop_body
    %s14 = ssub.s32 %s9, 1
    %s15 = ssub.s32 %s9, 2
    %s22 = sadd.s32 1, %s17
    %p23 = scmp.ge.s32.totalorder %s22, 1
    %s24 = scalar_select %p23, 0, %s22
    %s25 = sadd.s32 1, %s16
    %s26 = scalar_select %p23, %s25, %s16
    %p27 = scmp.ge.s32.totalorder %s26, 2
    %s28 = scalar_select %p27, 0, %s26
    %s29 = ssub.s32 %s16, %s28
    %p30 = scmp.eq.s32.totalorder %s29, 0
    %s32 = sadd.s32 %s31, 1
    %s33 = scalar_select %p30, %s31, %s32
    %p36 = pneg %p30
    %p37 = scmp.eq.s32.totalorder %s9, 1
    %p38 = por %p36, %p37
    %p39 = scmp.ne.s32.totalorder %s31, %s34
    %p40 = scmp.eq.s32.totalorder %s9, 0
    %p41 = por %p39, %p40
    %p42 = scmp.ne.s32.totalorder %s31, %s34
    %p43 = scmp.eq.s32.totalorder %s14, 1
    %p44 = por %p42, %p43
    %p45 = scmp.ne.s32.totalorder %s34, %s35
    %p46 = scmp.eq.s32.totalorder %s14, 0
    %p47 = por %p45, %p46
    %p48 = scmp.ne.s32.totalorder %s34, %s35
    %p49 = scmp.eq.s32.totalorder %s15, 1
    %p50 = por %p48, %p49
    %p52 = scmp.ne.s32.totalorder %s35, %s51
    %p53 = scmp.eq.s32.totalorder %s15, 0
    %p54 = por %p52, %p53
    %s56 = sadd.s32 %s55, 1
    %p59 = scmp.eq.s32.totalorder %s9, 1
    %p60 = scmp.ne.s32.totalorder %s55, %s57
    %p61 = scmp.eq.s32.totalorder %s9, 0
    %p62 = por %p60, %p61
    %p63 = scmp.ne.s32.totalorder %s55, %s57
    %p64 = scmp.eq.s32.totalorder %s14, 1
    %p65 = por %p63, %p64
    %p66 = scmp.ne.s32.totalorder %s57, %s58
    %p67 = scmp.eq.s32.totalorder %s14, 0
    %p68 = por %p66, %p67
    %p69 = scmp.ne.s32.totalorder %s57, %s58
    %p70 = scmp.eq.s32.totalorder %s15, 1
    %p71 = por %p69, %p70
    %p73 = scmp.ne.s32.totalorder %s58, %s72
    %p74 = scmp.eq.s32.totalorder %s15, 0
    %p75 = por %p73, %p74
    %s77 = sadd.s32 %s76, 1
    %p80 = scmp.eq.s32.totalorder %s9, 1
    %p81 = scmp.ne.s32.totalorder %s76, %s78
    %p82 = scmp.eq.s32.totalorder %s9, 0
    %p83 = por %p81, %p82
    %p84 = scmp.ne.s32.totalorder %s76, %s78
    %p85 = scmp.eq.s32.totalorder %s14, 1
    %p86 = por %p84, %p85
    %p87 = scmp.ne.s32.totalorder %s78, %s79
    %p88 = scmp.eq.s32.totalorder %s14, 0
    %p89 = por %p87, %p88
    %p90 = scmp.ne.s32.totalorder %s78, %s79
    %p91 = scmp.eq.s32.totalorder %s15, 1
    %p92 = por %p90, %p91
    %p94 = scmp.ne.s32.totalorder %s79, %s93
    %p95 = scmp.eq.s32.totalorder %s15, 0
    %p96 = por %p94, %p95
    %s97 = ssub.s32 %s16, %s28
    %s98 = ssub.s32 %s17, %s24
    %s99 = sor.u32 %s97, %s98
    %p100 = scmp.eq.s32.totalorder %s99, 0
    %s102 = sadd.s32 %s101, 1
    %s103 = scalar_select %p100, %s101, %s102
    %p106 = pneg %p100
    %p107 = scmp.eq.s32.totalorder %s9, 1
    %p108 = por %p106, %p107
    %p109 = scmp.ne.s32.totalorder %s101, %s104
    %p110 = scmp.eq.s32.totalorder %s9, 0
    %p111 = por %p109, %p110
    %p112 = scmp.ne.s32.totalorder %s101, %s104
    %p113 = scmp.eq.s32.totalorder %s14, 1
    %p114 = por %p112, %p113
    %p115 = scmp.ne.s32.totalorder %s104, %s105
    %p116 = scmp.eq.s32.totalorder %s14, 0
    %p117 = por %p115, %p116
    %p118 = scmp.ne.s32.totalorder %s104, %s105
    %p119 = scmp.eq.s32.totalorder %s15, 1
    %p120 = por %p118, %p119
    %p122 = scmp.ne.s32.totalorder %s105, %s121
    %p123 = scmp.eq.s32.totalorder %s15, 0
    %p124 = por %p122, %p123
    %p125 = scmp.le.s32.totalorder 1, %s9
    %p126 = scmp.lt.s32.totalorder %s9, 3
    %p127 = pnand %p125, %p126
    %p128 = pneg %p127
    // Predicated region
    $region9: #{deep_griffin_lim_forward.21} parent=5 // pred_check
      _
    $region10: #{deep_griffin_lim_forward.21} parent=5 // pred_check_branch
      %130 = sbr.rel (%p127) target = $region12
    $region11: #{deep_griffin_lim_forward.21} parent=5 // pred_region
      %s131 = ssub.s32 %s9, 1
      // Predicated region
      $region13: #{deep_griffin_lim_forward.21} parent=11 // pred_check
        %p132 = pneg %p68
      $region14: #{deep_griffin_lim_forward.21} parent=11 // pred_check_branch
        %134 = sbr.rel (%p132) target = $region16
      $region15: #{deep_griffin_lim_forward.21} parent=11 // pred_region
        _
      $region16: #{deep_griffin_lim_forward.21} parent=11 // pred_fallthru
        _
      // Predicated region
      $region17: #{deep_griffin_lim_forward.21} parent=11 // pred_check
        %p135 = pneg %p89
      $region18: #{deep_griffin_lim_forward.21} parent=11 // pred_check_branch
        %137 = sbr.rel (%p135) target = $region20
      $region19: #{deep_griffin_lim_forward.21} parent=11 // pred_region
        _
      $region20: #{deep_griffin_lim_forward.21} parent=11 // pred_fallthru
        _
    $region12: #{deep_griffin_lim_forward.21} parent=5 // pred_fallthru
      _
    %p138 = scmp.lt.s32.totalorder %s9, 2
    // Predicated region
    $region21: #{deep_griffin_lim_forward.21} parent=5 // pred_check
      %p139 = pneg %p138
    $region22: #{deep_griffin_lim_forward.21} parent=5 // pred_check_branch
      %141 = sbr.rel (%p139) target = $region24
    $region23: #{deep_griffin_lim_forward.21} parent=5 // pred_region
      // Predicated region
      $region25: #{deep_griffin_lim_forward.21} parent=23 // pred_check
        %p142 = pneg %p41
      $region26: #{deep_griffin_lim_forward.21} parent=23 // pred_check_branch
        %144 = sbr.rel (%p142) target = $region28
      $region27: #{deep_griffin_lim_forward.21} parent=23 // pred_region
        %p145 = scmp.lt.s32.totalorder %s16, 1
        %s146 = scalar_select %p145, %s16, 1
        %s147 = smul.addr %s146, 8
        %s148 = smul.addr %s147, 4
        %s149 = scalar_lea.vmem %s0, %s148
      $region28: #{deep_griffin_lim_forward.21} parent=23 // pred_fallthru
        _
    $region24: #{deep_griffin_lim_forward.21} parent=5 // pred_fallthru
      _
    %p150 = scmp.le.s32.totalorder 1, %s9
    %p151 = scmp.lt.s32.totalorder %s9, 3
    %p152 = pnand %p150, %p151
    %p153 = pneg %p152
    // Predicated region
    $region29: #{deep_griffin_lim_forward.21} parent=5 // pred_check
      _
    $region30: #{deep_griffin_lim_forward.21} parent=5 // pred_check_branch
      %155 = sbr.rel (%p152) target = $region32
    $region31: #{deep_griffin_lim_forward.21} parent=5 // pred_region
      %s156 = ssub.s32 %s9, 1
      %p157 = scmp.lt.s32.totalorder %s18, 1
      %s158 = scalar_select %p157, %s18, 1
      %s159 = smul.addr %s158, 8
      %s160 = smul.addr %s159, 4
      %s161 = scalar_lea.vmem %s0, %s160
      %p162 = pneg %p47
      %p163 = pneg %p44
      %p164 = pneg %p68
      %p165 = pneg %p65
      %p166 = pneg %p89
      %p167 = pneg %p86
      %p168 = pneg %p117
      %p169 = pneg %p114
      %p170 = scmp.lt.s32.totalorder %s18, 1
      %s171 = scalar_select %p170, %s18, 1
      %p172 = scmp.lt.s32.totalorder %s19, 0
      %s173 = scalar_select %p172, %s19, 0
      %s174 = sadd.s32 %s173, %s171
      %s175 = smul.addr %s174, 2
      %s176 = scalar_lea.vmem %s3, %s175
      %p177 = scmp.lt.s32.totalorder %s18, 1
      %s178 = scalar_select %p177, %s18, 1
      %s179 = smul.addr %s178, 8
      %s180 = smul.addr %s179, 4
      %s181 = scalar_lea.vmem %s0, %s180
      %p182 = scmp.lt.s32.totalorder %s18, 1
      %s183 = scalar_select %p182, %s18, 1
      %p184 = scmp.lt.s32.totalorder %s19, 0
      %s185 = scalar_select %p184, %s19, 0
      %s186 = sadd.s32 %s185, %s183
      %s187 = smul.addr %s186, 2
      %s188 = scalar_lea.vmem %s3, %s187
      %s190 = smul.u32 %s19, 128
      %s191 = sshra.s32 %s190, 7
      %s192 = sand.u32 %s190, 127
      %s193 = smul.addr %s191, 4
      %s194 = scalar_lea.vmem %s181, %s193
      %v195 = vld [vmem:[%s194] sm:$0xff]
      %v196 = vld [vmem:[%s194 + $0x8] sm:$0xff]
      %v197 = vld [vmem:[%s194 + $0x10] sm:$0xff]
      %v198 = vld [vmem:[%s194 + $0x18] sm:$0xff]
      %v203 = vunpack.c.l.b16 %v195
      %v204 = vunpack.c.l.b16 %v196
      %v205 = vunpack.c.l.b16 %v197
      %v206 = vunpack.c.l.b16 %v198
      %v207 = vpack.c.b16 %v204, %v203
      %v208 = vpack.c.b16 %v206, %v205
      %v211 = vunpack.c.h.b16 %v195
      %v212 = vunpack.c.h.b16 %v196
      %v213 = vunpack.c.h.b16 %v197
      %v214 = vunpack.c.h.b16 %v198
      %v215 = vpack.c.b16 %v212, %v211
      %v216 = vpack.c.b16 %v214, %v213
      %217 = vrot.lane.b32.xlu0 %v207, 127
      %v218 = vpop.permute.xlu0 %217
      %219 = vrot.lane.b32.xlu0 %v215, 127
      %v220 = vpop.permute.xlu0 %219
      %221 = vrot.lane.b32.xlu0 %v208, 127
      %v222 = vpop.permute.xlu0 %221
      %223 = vrot.lane.b32.xlu0 %v216, 127
      %v224 = vpop.permute.xlu0 %223
      %vm225 = vcmask 1039360
      %v226 = vsel %vm225, %v218, %v220
      %v227 = vsel %vm225, %v222, %v224
      %230 = vrot.lane.b32.xlu0 %v207, 126
      %v231 = vpop.permute.xlu0 %230
      %232 = vrot.lane.b32.xlu0 %v215, 126
      %v233 = vpop.permute.xlu0 %232
      %234 = vrot.lane.b32.xlu0 %v208, 126
      %v235 = vpop.permute.xlu0 %234
      %236 = vrot.lane.b32.xlu0 %v216, 126
      %v237 = vpop.permute.xlu0 %236
      %vm238 = vcmask 1031168
      %v239 = vsel %vm238, %v231, %v233
      %v240 = vsel %vm238, %v235, %v237
      %243 = vrot.lane.b32.xlu0 %v207, 118
      %v244 = vpop.permute.xlu0 %243
      %245 = vrot.lane.b32.xlu0 %v215, 118
      %v246 = vpop.permute.xlu0 %245
      %247 = vrot.lane.b32.xlu0 %v208, 118
      %v248 = vpop.permute.xlu0 %247
      %249 = vrot.lane.b32.xlu0 %v216, 118
      %v250 = vpop.permute.xlu0 %249
      %vm251 = vcmask 965632
      %v252 = vsel %vm251, %v244, %v246
      %v253 = vsel %vm251, %v248, %v250
      %256 = vrot.lane.b32.xlu0 %v207, 117
      %v257 = vpop.permute.xlu0 %256
      %258 = vrot.lane.b32.xlu0 %v215, 117
      %v259 = vpop.permute.xlu0 %258
      %260 = vrot.lane.b32.xlu0 %v208, 117
      %v261 = vpop.permute.xlu0 %260
      %262 = vrot.lane.b32.xlu0 %v216, 117
      %v263 = vpop.permute.xlu0 %262
      %vm264 = vcmask 957440
      %v265 = vsel %vm264, %v257, %v259
      %v266 = vsel %vm264, %v261, %v263
      %269 = vrot.lane.b32.xlu0 %v207, 116
      %v270 = vpop.permute.xlu0 %269
      %271 = vrot.lane.b32.xlu0 %v215, 116
      %v272 = vpop.permute.xlu0 %271
      %273 = vrot.lane.b32.xlu0 %v208, 116
      %v274 = vpop.permute.xlu0 %273
      %275 = vrot.lane.b32.xlu0 %v216, 116
      %v276 = vpop.permute.xlu0 %275
      %vm277 = vcmask 949248
      %v278 = vsel %vm277, %v270, %v272
      %v279 = vsel %vm277, %v274, %v276
      %282 = vrot.lane.b32.xlu0 %v207, 108
      %v283 = vpop.permute.xlu0 %282
      %284 = vrot.lane.b32.xlu0 %v215, 108
      %v285 = vpop.permute.xlu0 %284
      %286 = vrot.lane.b32.xlu0 %v208, 108
      %v287 = vpop.permute.xlu0 %286
      %288 = vrot.lane.b32.xlu0 %v216, 108
      %v289 = vpop.permute.xlu0 %288
      %vm290 = vcmask 883712
      %v291 = vsel %vm290, %v283, %v285
      %v292 = vsel %vm290, %v287, %v289
      %295 = vrot.lane.b32.xlu0 %v207, 107
      %v296 = vpop.permute.xlu0 %295
      %297 = vrot.lane.b32.xlu0 %v215, 107
      %v298 = vpop.permute.xlu0 %297
      %299 = vrot.lane.b32.xlu0 %v208, 107
      %v300 = vpop.permute.xlu0 %299
      %301 = vrot.lane.b32.xlu0 %v216, 107
      %v302 = vpop.permute.xlu0 %301
      %vm303 = vcmask 875520
      %v304 = vsel %vm303, %v296, %v298
      %v305 = vsel %vm303, %v300, %v302
      %308 = vrot.lane.b32.xlu0 %v207, 106
      %v309 = vpop.permute.xlu0 %308
      %310 = vrot.lane.b32.xlu0 %v215, 106
      %v311 = vpop.permute.xlu0 %310
      %312 = vrot.lane.b32.xlu0 %v208, 106
      %v313 = vpop.permute.xlu0 %312
      %314 = vrot.lane.b32.xlu0 %v216, 106
      %v315 = vpop.permute.xlu0 %314
      %vm316 = vcmask 867328
      %v317 = vsel %vm316, %v309, %v311
      %v318 = vsel %vm316, %v313, %v315
      %321 = vrot.lane.b32.xlu0 %v207, 98
      %v322 = vpop.permute.xlu0 %321
      %323 = vrot.lane.b32.xlu0 %v215, 98
      %v324 = vpop.permute.xlu0 %323
      %325 = vrot.lane.b32.xlu0 %v208, 98
      %v326 = vpop.permute.xlu0 %325
      %327 = vrot.lane.b32.xlu0 %v216, 98
      %v328 = vpop.permute.xlu0 %327
      %vm329 = vcmask 801792
      %v330 = vsel %vm329, %v322, %v324
      %v331 = vsel %vm329, %v326, %v328
      %334 = vrot.lane.b32.xlu0 %v207, 97
      %v335 = vpop.permute.xlu0 %334
      %336 = vrot.lane.b32.xlu0 %v215, 97
      %v337 = vpop.permute.xlu0 %336
      %338 = vrot.lane.b32.xlu0 %v208, 97
      %v339 = vpop.permute.xlu0 %338
      %340 = vrot.lane.b32.xlu0 %v216, 97
      %v341 = vpop.permute.xlu0 %340
      %vm342 = vcmask 793600
      %v343 = vsel %vm342, %v335, %v337
      %v344 = vsel %vm342, %v339, %v341
      %347 = vrot.lane.b32.xlu0 %v207, 96
      %v348 = vpop.permute.xlu0 %347
      %349 = vrot.lane.b32.xlu0 %v215, 96
      %v350 = vpop.permute.xlu0 %349
      %351 = vrot.lane.b32.xlu0 %v208, 96
      %v352 = vpop.permute.xlu0 %351
      %353 = vrot.lane.b32.xlu0 %v216, 96
      %v354 = vpop.permute.xlu0 %353
      %vm355 = vcmask 785408
      %v356 = vsel %vm355, %v348, %v350
      %v357 = vsel %vm355, %v352, %v354
      %360 = vrot.lane.b32.xlu0 %v207, 88
      %v361 = vpop.permute.xlu0 %360
      %362 = vrot.lane.b32.xlu0 %v215, 88
      %v363 = vpop.permute.xlu0 %362
      %364 = vrot.lane.b32.xlu0 %v208, 88
      %v365 = vpop.permute.xlu0 %364
      %366 = vrot.lane.b32.xlu0 %v216, 88
      %v367 = vpop.permute.xlu0 %366
      %vm368 = vcmask 719872
      %v369 = vsel %vm368, %v361, %v363
      %v370 = vsel %vm368, %v365, %v367
      %373 = vrot.lane.b32.xlu0 %v207, 87
      %v374 = vpop.permute.xlu0 %373
      %375 = vrot.lane.b32.xlu0 %v215, 87
      %v376 = vpop.permute.xlu0 %375
      %377 = vrot.lane.b32.xlu0 %v208, 87
      %v378 = vpop.permute.xlu0 %377
      %379 = vrot.lane.b32.xlu0 %v216, 87
      %v380 = vpop.permute.xlu0 %379
      %vm381 = vcmask 711680
      %v382 = vsel %vm381, %v374, %v376
      %v383 = vsel %vm381, %v378, %v380
      %386 = vrot.lane.b32.xlu0 %v207, 86
      %v387 = vpop.permute.xlu0 %386
      %388 = vrot.lane.b32.xlu0 %v215, 86
      %v389 = vpop.permute.xlu0 %388
      %390 = vrot.lane.b32.xlu0 %v208, 86
      %v391 = vpop.permute.xlu0 %390
      %392 = vrot.lane.b32.xlu0 %v216, 86
      %v393 = vpop.permute.xlu0 %392
      %vm394 = vcmask 703488
      %v395 = vsel %vm394, %v387, %v389
      %v396 = vsel %vm394, %v391, %v393
      %399 = vrot.lane.b32.xlu0 %v207, 78
      %v400 = vpop.permute.xlu0 %399
      %401 = vrot.lane.b32.xlu0 %v215, 78
      %v402 = vpop.permute.xlu0 %401
      %403 = vrot.lane.b32.xlu0 %v208, 78
      %v404 = vpop.permute.xlu0 %403
      %405 = vrot.lane.b32.xlu0 %v216, 78
      %v406 = vpop.permute.xlu0 %405
      %vm407 = vcmask 637952
      %v408 = vsel %vm407, %v400, %v402
      %v409 = vsel %vm407, %v404, %v406
      %412 = vrot.lane.b32.xlu0 %v207, 119
      %v413 = vpop.permute.xlu0 %412
      %414 = vrot.lane.b32.xlu0 %v215, 119
      %v415 = vpop.permute.xlu0 %414
      %416 = vrot.lane.b32.xlu0 %v208, 119
      %v417 = vpop.permute.xlu0 %416
      %418 = vrot.lane.b32.xlu0 %v216, 119
      %v419 = vpop.permute.xlu0 %418
      %vm420 = vcmask 973824
      %v421 = vsel %vm420, %v413, %v415
      %v422 = vsel %vm420, %v417, %v419
      %423 = vrot.lane.b32.xlu0 %v207, 77
      %v424 = vpop.permute.xlu0 %423
      %425 = vrot.lane.b32.xlu0 %v215, 77
      %v426 = vpop.permute.xlu0 %425
      %427 = vrot.lane.b32.xlu0 %v208, 77
      %v428 = vpop.permute.xlu0 %427
      %429 = vrot.lane.b32.xlu0 %v216, 77
      %v430 = vpop.permute.xlu0 %429
      %431 = vrot.lane.b32.xlu0 %v226, 77
      %v432 = vpop.permute.xlu0 %431
      %433 = vrot.lane.b32.xlu0 %v220, 77
      %v434 = vpop.permute.xlu0 %433
      %435 = vrot.lane.b32.xlu0 %v227, 77
      %v436 = vpop.permute.xlu0 %435
      %437 = vrot.lane.b32.xlu0 %v224, 77
      %v438 = vpop.permute.xlu0 %437
      %439 = vrot.lane.b32.xlu0 %v421, 77
      %v440 = vpop.permute.xlu0 %439
      %441 = vrot.lane.b32.xlu0 %v415, 77
      %v442 = vpop.permute.xlu0 %441
      %443 = vrot.lane.b32.xlu0 %v422, 77
      %v444 = vpop.permute.xlu0 %443
      %445 = vrot.lane.b32.xlu0 %v419, 77
      %v446 = vpop.permute.xlu0 %445
      %447 = vrot.lane.b32.xlu0 %v252, 77
      %v448 = vpop.permute.xlu0 %447
      %449 = vrot.lane.b32.xlu0 %v246, 77
      %v450 = vpop.permute.xlu0 %449
      %451 = vrot.lane.b32.xlu0 %v253, 77
      %v452 = vpop.permute.xlu0 %451
      %453 = vrot.lane.b32.xlu0 %v250, 77
      %v454 = vpop.permute.xlu0 %453
      %455 = vrot.lane.b32.xlu0 %v265, 77
      %v456 = vpop.permute.xlu0 %455
      %457 = vrot.lane.b32.xlu0 %v259, 77
      %v458 = vpop.permute.xlu0 %457
      %459 = vrot.lane.b32.xlu0 %v266, 77
      %v460 = vpop.permute.xlu0 %459
      %461 = vrot.lane.b32.xlu0 %v263, 77
      %v462 = vpop.permute.xlu0 %461
      %vm463 = vcmask 629760
      %v464 = vsel %vm463, %v424, %v426
      %v465 = vsel %vm463, %v428, %v430
      %v466 = vsel %vm463, %v432, %v434
      %v467 = vsel %vm463, %v436, %v438
      %v468 = vsel %vm463, %v440, %v442
      %v469 = vsel %vm463, %v444, %v446
      %v470 = vsel %vm463, %v448, %v450
      %v471 = vsel %vm463, %v452, %v454
      %v472 = vsel %vm463, %v456, %v458
      %v473 = vsel %vm463, %v460, %v462
      %v484 = vld [vmem:[%s1] sm:$0x3f]
      %v485 = vld [vmem:[%s2] sm:$0x3]
      %487 = vset.pattern.permute.xlu0 0
      %488 = vperm.xlu0 %487, %v485
      %v489 = vpop.permute.xlu0 %488
      %v492 = vcombine.high %v484, %v484
      %v494 = vunpack.c.l.s4 1966171168
      %v495 = vunpack.c.0.s8 %v494
      %v496 = vlaneseq
      %v497 = vshrl.u32 %v496, 7
      %v498 = vsub.s32 %v495, %v497
      %v499 = vrot.slane %v484, %v498
      %v501 = vunpack.c.l.s4 1966171168
      %v502 = vunpack.c.0.s8 %v501
      %v503 = vlaneseq
      %v504 = vshrl.u32 %v503, 7
      %v505 = vsub.s32 %v502, %v504
      %v506 = vrot.slane %v492, %v505
      %v507 = vcombine.high %v499, %v499
      %v508 = vcombine.high %v506, %v506
      %v510 = vunpack.c.l.s4 1966171168
      %v511 = vunpack.c.0.s8 %v510
      %v512 = vlaneseq
      %v513 = vshrl.u32 %v512, 7
      %v514 = vsub.s32 %v511, %v513
      %v515 = vrot.slane %v499, %v514
      %v517 = vunpack.c.l.s4 1966171168
      %v518 = vunpack.c.0.s8 %v517
      %v519 = vlaneseq
      %v520 = vshrl.u32 %v519, 7
      %v521 = vsub.s32 %v518, %v520
      %v522 = vrot.slane %v506, %v521
      %v524 = vunpack.c.l.s4 1966171168
      %v525 = vunpack.c.0.s8 %v524
      %v526 = vlaneseq
      %v527 = vshrl.u32 %v526, 7
      %v528 = vsub.s32 %v525, %v527
      %v529 = vrot.slane %v507, %v528
      %v531 = vunpack.c.l.s4 1966171168
      %v532 = vunpack.c.0.s8 %v531
      %v533 = vlaneseq
      %v534 = vshrl.u32 %v533, 7
      %v535 = vsub.s32 %v532, %v534
      %v536 = vrot.slane %v508, %v535
      %v537 = vcombine.high %v515, %v515
      %v538 = vcombine.high %v529, %v529
      %vm544 = vcmask 261120
      %v546 = vsel %vm544, %v536, 0
      %548 = vmatprep.subr.bf16.mxu0 0
      %549 = vmatpush1.bf16.msra.mxu0 %v207
      %550 = vmatprep.subr.bf16.mxu0 0
      %551 = vmatpush1.bf16.msra.mxu0 %v208
      %552 = vmatprep.subr.bf16.mxu0 0
      %553 = vmatpush1.bf16.msra.mxu0 %v226
      %554 = vmatprep.subr.bf16.mxu0 0
      %555 = vmatpush1.bf16.msra.mxu0 %v227
      %556 = vmatprep.subr.bf16.mxu0 0
      %557 = vmatpush1.bf16.msra.mxu0 %v239
      %558 = vmatprep.subr.bf16.mxu0 0
      %559 = vmatpush1.bf16.msra.mxu0 %v240
      %560 = vmatprep.subr.bf16.mxu0 0
      %561 = vmatpush1.bf16.msra.mxu0 %v252
      %562 = vmatprep.subr.bf16.mxu0 0
      %563 = vmatpush1.bf16.msra.mxu0 %v253
      %564 = vmatprep.subr.bf16.mxu0 0
      %565 = vmatpush1.bf16.msra.mxu0 %v265
      %566 = vmatprep.subr.bf16.mxu0 0
      %567 = vmatpush1.bf16.msra.mxu0 %v266
      %568 = vmatprep.subr.bf16.mxu0 0
      %569 = vmatpush1.bf16.msra.mxu0 %v278
      %570 = vmatprep.subr.bf16.mxu0 0
      %571 = vmatpush1.bf16.msra.mxu0 %v279
      %572 = vmatprep.subr.bf16.mxu0 0
      %573 = vmatpush1.bf16.msra.mxu0 %v291
      %574 = vmatprep.subr.bf16.mxu0 0
      %575 = vmatpush1.bf16.msra.mxu0 %v292
      %576 = vmatprep.subr.bf16.mxu0 0
      %577 = vmatpush1.bf16.msra.mxu0 %v304
      %578 = vmatprep.subr.bf16.mxu0 0
      %579 = vmatpush1.bf16.msra.mxu0 %v305
      %580 = vmatprep.mubr.bf16.mxu0 %v529
      %581 = vmatmul.mubr.bf16.gmra.mrb[0].mxu0 %v515
      %v582 = vpop.f32.mrb[0].mxu0
      %v583 = vadd.f32 %v489, %v582
      %v584 = vpop.f32.mrb[0].mxu0
      %v585 = vpop.f32.mrb[0].mxu0
      %v586 = vpop.f32.mrb[0].mxu0
      %587 = vdwg.mxu0
      %588 = vmatprep.subr.bf16.mxu0 0
      %589 = vmatpush1.bf16.msra.mxu0 %v317
      %590 = vmatprep.subr.bf16.mxu0 0
      %591 = vmatpush1.bf16.msra.mxu0 %v318
      %592 = vmatprep.subr.bf16.mxu0 0
      %593 = vmatpush1.bf16.msra.mxu0 %v330
      %594 = vmatprep.subr.bf16.mxu0 0
      %595 = vmatpush1.bf16.msra.mxu0 %v331
      %596 = vmatprep.subr.bf16.mxu0 0
      %597 = vmatpush1.bf16.msra.mxu0 %v343
      %598 = vmatprep.subr.bf16.mxu0 0
      %599 = vmatpush1.bf16.msra.mxu0 %v344
      %600 = vmatprep.subr.bf16.mxu0 0
      %601 = vmatpush1.bf16.msra.mxu0 %v356
      %602 = vmatprep.subr.bf16.mxu0 0
      %603 = vmatpush1.bf16.msra.mxu0 %v357
      %604 = vmatprep.subr.bf16.mxu0 0
      %605 = vmatpush1.bf16.msra.mxu0 %v369
      %606 = vmatprep.subr.bf16.mxu0 0
      %607 = vmatpush1.bf16.msra.mxu0 %v370
      %608 = vmatprep.subr.bf16.mxu0 0
      %609 = vmatpush1.bf16.msra.mxu0 %v382
      %610 = vmatprep.subr.bf16.mxu0 0
      %611 = vmatpush1.bf16.msra.mxu0 %v383
      %612 = vmatprep.subr.bf16.mxu0 0
      %613 = vmatpush1.bf16.msra.mxu0 %v395
      %614 = vmatprep.subr.bf16.mxu0 0
      %615 = vmatpush1.bf16.msra.mxu0 %v396
      %616 = vmatprep.subr.bf16.mxu0 0
      %617 = vmatpush1.bf16.msra.mxu0 %v408
      %618 = vmatprep.subr.bf16.mxu0 0
      %619 = vmatpush1.bf16.msra.mxu0 %v409
      %620 = vmatprep.mubr.bf16.mxu0 %v538
      %621 = vmatmul.mubr.bf16.gmra.mrb[0].mxu0 %v537
      %v622 = vpop.f32.mrb[0].mxu0
      %v623 = vadd.f32 %v583, %v622
      %v624 = vpop.f32.mrb[0].mxu0
      %v625 = vpop.f32.mrb[0].mxu0
      %v626 = vpop.f32.mrb[0].mxu0
      %627 = vdwg.mxu0
      %628 = vmatprep.subr.bf16.mxu0 0
      %629 = vmatpush1.bf16.msra.mxu0 %v464
      %630 = vmatprep.subr.bf16.mxu0 0
      %631 = vmatpush1.bf16.msra.mxu0 %v465
      %632 = vmatprep.subr.bf16.mxu0 0
      %633 = vmatpush1.bf16.msra.mxu0 %v466
      %634 = vmatprep.subr.bf16.mxu0 0
      %635 = vmatpush1.bf16.msra.mxu0 %v467
      %636 = vmatprep.subr.bf16.mxu0 0
      %637 = vmatpush1.bf16.msra.mxu0 %v468
      %638 = vmatprep.subr.bf16.mxu0 0
      %639 = vmatpush1.bf16.msra.mxu0 %v469
      %640 = vmatprep.subr.bf16.mxu0 0
      %641 = vmatpush1.bf16.msra.mxu0 %v470
      %642 = vmatprep.subr.bf16.mxu0 0
      %643 = vmatpush1.bf16.msra.mxu0 %v471
      %644 = vmatprep.subr.bf16.mxu0 0
      %645 = vmatpush1.bf16.msra.mxu0 %v472
      %646 = vmatprep.subr.bf16.mxu0 0
      %647 = vmatpush1.bf16.msra.mxu0 %v473
      %648 = vmatprep.subr.bf16.mxu0 0
      %649 = vmatpush1.bf16.msra.mxu0 0
      %650 = vmatprep.subr.bf16.mxu0 0
      %651 = vmatpush1.bf16.msra.mxu0 0
      %652 = vmatprep.subr.bf16.mxu0 0
      %653 = vmatpush1.bf16.msra.mxu0 0
      %654 = vmatprep.subr.bf16.mxu0 0
      %655 = vmatpush1.bf16.msra.mxu0 0
      %656 = vmatprep.subr.bf16.mxu0 0
      %657 = vmatpush1.bf16.msra.mxu0 0
      %658 = vmatprep.subr.bf16.mxu0 0
      %659 = vmatpush1.bf16.msra.mxu0 0
      %660 = vmatprep.mubr.bf16.mxu0 %v546
      %661 = vmatmul.mubr.bf16.gmra.mrb[0].mxu0 %v522
      %v662 = vpop.f32.mrb[0].mxu0
      %v663 = vadd.f32 %v623, %v662
      %v664 = vpop.f32.mrb[0].mxu0
      %v665 = vpop.f32.mrb[0].mxu0
      %v666 = vpop.f32.mrb[0].mxu0
      %667 = vdwg.mxu0
      %668 = vst [vmem:[%s188] sm:$0x3] %v663
      %p669 = scmp.lt.s32.totalorder %s18, 1
      %s670 = scalar_select %p669, %s18, 1
      %p671 = scmp.lt.s32.totalorder %s19, 0
      %s672 = scalar_select %p671, %s19, 0
      %s673 = sadd.s32 %s672, %s670
      %s674 = smul.addr %s673, 2
      %s675 = scalar_lea.vmem %s3, %s674
      // Predicated region
      $region33: #{deep_griffin_lim_forward.21} parent=31 // pred_check
        %p676 = pneg %p114
      $region34: #{deep_griffin_lim_forward.21} parent=31 // pred_check_branch
        %678 = sbr.rel (%p676) target = $region36
      $region35: #{deep_griffin_lim_forward.21} parent=31 // pred_region
        _
      $region36: #{deep_griffin_lim_forward.21} parent=31 // pred_fallthru
        _
    $region32: #{deep_griffin_lim_forward.21} parent=5 // pred_fallthru
      _
    %p679 = scmp.le.s32.totalorder 2, %s9
    // Predicated region
    $region37: #{deep_griffin_lim_forward.21} parent=5 // pred_check
      %p680 = pneg %p679
    $region38: #{deep_griffin_lim_forward.21} parent=5 // pred_check_branch
      %682 = sbr.rel (%p680) target = $region40
    $region39: #{deep_griffin_lim_forward.21} parent=5 // pred_region
      %s683 = ssub.s32 %s9, 2
      // Predicated region
      $region41: #{deep_griffin_lim_forward.21} parent=39 // pred_check
        %p684 = pneg %p120
      $region42: #{deep_griffin_lim_forward.21} parent=39 // pred_check_branch
        %686 = sbr.rel (%p684) target = $region44
      $region43: #{deep_griffin_lim_forward.21} parent=39 // pred_region
        %p687 = scmp.lt.s32.totalorder %s20, 1
        %s688 = scalar_select %p687, %s20, 1
        %p689 = scmp.lt.s32.totalorder %s21, 0
        %s690 = scalar_select %p689, %s21, 0
        %s691 = sadd.s32 %s690, %s688
        %s692 = smul.addr %s691, 2
        %s693 = scalar_lea.vmem %s3, %s692
      $region44: #{deep_griffin_lim_forward.21} parent=39 // pred_fallthru
        _
    $region40: #{deep_griffin_lim_forward.21} parent=5 // pred_fallthru
      _
  $region6: #{deep_griffin_lim_forward.21} parent=0 // loop_footer
    %s13 = sadd.s32 1, %s9
  $region7: #{deep_griffin_lim_forward.21} parent=0 // loop_footer_branch
    %8 = sbr.rel target = $region3
  $region8: #{deep_griffin_lim_forward.21} parent=0 // loop_exit
    _

// kernel: custom-call.2
$region0: #{custom-call.2}
  %s0 = inlined_call_operand.vmem [shape: f32[2,1,9,8], index: 0, kind: input, shape index: {}]
  %s1 = inlined_call_operand.vmem [shape: f32[2,1,9,8], index: 1, kind: input, shape index: {}]
  %s2 = inlined_call_operand.vmem [shape: c64[2,1,9,8], index: 2, kind: output, shape index: {}]
  %s4 = scalar_lea.vmem %s2, 32
  %v5 = vld [vmem:[%s0] sm:$0xff]
  %6 = vst [vmem:[%s2] sm:$0xff] %v5
  %s7 = scalar_lea.vmem %s2, 8
  %s8 = scalar_lea.vmem %s0, 8
  %v9 = vld [vmem:[%s8] sm:$0xff]
  %10 = vst [vmem:[%s7] sm:$0xff] %v9
  %s11 = scalar_lea.vmem %s2, 16
  %s12 = scalar_lea.vmem %s0, 16
  %v13 = vld [vmem:[%s12] sm:$0xff]
  %14 = vst [vmem:[%s11] sm:$0xff] %v13
  %s15 = scalar_lea.vmem %s2, 24
  %s16 = scalar_lea.vmem %s0, 24
  %v17 = vld [vmem:[%s16] sm:$0xff]
  %18 = vst [vmem:[%s15] sm:$0xff] %v17
  %v19 = vld [vmem:[%s1] sm:$0xff]
  %20 = vst [vmem:[%s4] sm:$0xff] %v19
  %s21 = scalar_lea.vmem %s4, 8
  %s22 = scalar_lea.vmem %s1, 8
  %v23 = vld [vmem:[%s22] sm:$0xff]
  %24 = vst [vmem:[%s21] sm:$0xff] %v23
  %s25 = scalar_lea.vmem %s4, 16
  %s26 = scalar_lea.vmem %s1, 16
  %v27 = vld [vmem:[%s26] sm:$0xff]
  %28 = vst [vmem:[%s25] sm:$0xff] %v27
  %s29 = scalar_lea.vmem %s4, 24
  %s30 = scalar_lea.vmem %s1, 24
  %v31 = vld [vmem:[%s30] sm:$0xff]
  %32 = vst [vmem:[%s29] sm:$0xff] %v31

// kernel: custom-call.5
$region0: #{custom-call.5}
  %s0 = inlined_call_operand.vmem [shape: f32[2,9,8], index: 0, kind: input, shape index: {}]
  %s1 = inlined_call_operand.vmem [shape: f32[2,9,8], index: 1, kind: input, shape index: {}]
  %s2 = inlined_call_operand.vmem [shape: c64[2,9,8], index: 2, kind: output, shape index: {}]
  %s4 = scalar_lea.vmem %s2, 32
  %v5 = vld [vmem:[%s0] sm:$0xff]
  %6 = vst [vmem:[%s2] sm:$0xff] %v5
  %s7 = scalar_lea.vmem %s2, 8
  %s8 = scalar_lea.vmem %s0, 8
  %v9 = vld [vmem:[%s8] sm:$0xff]
  %10 = vst [vmem:[%s7] sm:$0xff] %v9
  %s11 = scalar_lea.vmem %s2, 16
  %s12 = scalar_lea.vmem %s0, 16
  %v13 = vld [vmem:[%s12] sm:$0xff]
  %14 = vst [vmem:[%s11] sm:$0xff] %v13
  %s15 = scalar_lea.vmem %s2, 24
  %s16 = scalar_lea.vmem %s0, 24
  %v17 = vld [vmem:[%s16] sm:$0xff]
  %18 = vst [vmem:[%s15] sm:$0xff] %v17
  %v19 = vld [vmem:[%s1] sm:$0xff]
  %20 = vst [vmem:[%s4] sm:$0xff] %v19
  %s21 = scalar_lea.vmem %s4, 8
  %s22 = scalar_lea.vmem %s1, 8
  %v23 = vld [vmem:[%s22] sm:$0xff]
  %24 = vst [vmem:[%s21] sm:$0xff] %v23
  %s25 = scalar_lea.vmem %s4, 16
  %s26 = scalar_lea.vmem %s1, 16
  %v27 = vld [vmem:[%s26] sm:$0xff]
  %28 = vst [vmem:[%s25] sm:$0xff] %v27
  %s29 = scalar_lea.vmem %s4, 24
  %s30 = scalar_lea.vmem %s1, 24
  %v31 = vld [vmem:[%s30] sm:$0xff]
  %32 = vst [vmem:[%s29] sm:$0xff] %v31

// kernel: deep_griffin_lim_forward.17
$region0: #{deep_griffin_lim_forward.17}
  #allocation0 [shape = 'u32[]', space=smem, size = 0x4, offset = 0x4, fixed_abs, tag = 'smem constant byte address 0x4 - core index']
  #allocation1 [shape = 'u32[144,128]{1,0:T(1,128)}', space=vmem, size = 0x12000, scoped, tag = 'internal scratch']
  %s0 = inlined_call_operand.vmem [shape: bf16[2,8,446], index: 0, kind: input, shape index: {}]
  %s1 = inlined_call_operand.vmem [shape: bf16[64,968], index: 1, kind: input, shape index: {}]
  %s2 = inlined_call_operand.vmem [shape: f32[64,1], index: 2, kind: input, shape index: {}]
  %s3 = inlined_call_operand.vmem [shape: bf16[2,32,256], index: 3, kind: output, shape index: {}]
  %s4 = sld [smem:[#allocation0]]
  $region45: #{deep_griffin_lim_forward.17} parent=0
    _
  %s6 = ssub.s32 1, %s4
  %s7 = scalar_select 0, %s6, %s4
  loop: start=0, step=1, limit=4
  $region2: #{deep_griffin_lim_forward.17} parent=0 // loop_pre_header
    _
  $region3: #{deep_griffin_lim_forward.17} parent=0 // loop_header
    %s9 = sphi 0, %s13
    %p10 = scmp.ge.s32.totalorder %s9, 4
    %s16 = sphi 0, %s28
    %s17 = sphi 0, %s24
    %s18 = sphi 0, %s16
    %s19 = sphi 0, %s17
    %s20 = sphi 0, %s18
    %s21 = sphi 0, %s19
    %s31 = sphi 0, %s33
    %s34 = sphi 0, %s31
    %s35 = sphi 0, %s34
    %s51 = sphi 0, %s35
    %s55 = sphi 0, %s55
    %s57 = sphi 0, %s55
    %s58 = sphi 0, %s57
    %s72 = sphi 0, %s58
    %s76 = sphi 0, %s76
    %s78 = sphi 0, %s76
    %s79 = sphi 0, %s78
    %s93 = sphi 0, %s79
    %s101 = sphi 0, %s103
    %s104 = sphi 0, %s101
    %s105 = sphi 0, %s104
    %s121 = sphi 0, %s105
  $region4: #{deep_griffin_lim_forward.17} parent=0 // loop_header_branch
    %12 = sbr.rel (%p10) target = $region8
  $region5: #{deep_griffin_lim_forward.17} parent=0 // loop_body
    %s14 = ssub.s32 %s9, 1
    %s15 = ssub.s32 %s9, 2
    %s22 = sadd.s32 1, %s17
    %p23 = scmp.ge.s32.totalorder %s22, 1
    %s24 = scalar_select %p23, 0, %s22
    %s25 = sadd.s32 1, %s16
    %s26 = scalar_select %p23, %s25, %s16
    %p27 = scmp.ge.s32.totalorder %s26, 2
    %s28 = scalar_select %p27, 0, %s26
    %s29 = ssub.s32 %s16, %s28
    %p30 = scmp.eq.s32.totalorder %s29, 0
    %s32 = sadd.s32 %s31, 1
    %s33 = scalar_select %p30, %s31, %s32
    %p36 = pneg %p30
    %p37 = scmp.eq.s32.totalorder %s9, 1
    %p38 = por %p36, %p37
    %p39 = scmp.ne.s32.totalorder %s31, %s34
    %p40 = scmp.eq.s32.totalorder %s9, 0
    %p41 = por %p39, %p40
    %p42 = scmp.ne.s32.totalorder %s31, %s34
    %p43 = scmp.eq.s32.totalorder %s14, 1
    %p44 = por %p42, %p43
    %p45 = scmp.ne.s32.totalorder %s34, %s35
    %p46 = scmp.eq.s32.totalorder %s14, 0
    %p47 = por %p45, %p46
    %p48 = scmp.ne.s32.totalorder %s34, %s35
    %p49 = scmp.eq.s32.totalorder %s15, 1
    %p50 = por %p48, %p49
    %p52 = scmp.ne.s32.totalorder %s35, %s51
    %p53 = scmp.eq.s32.totalorder %s15, 0
    %p54 = por %p52, %p53
    %s56 = sadd.s32 %s55, 1
    %p59 = scmp.eq.s32.totalorder %s9, 1
    %p60 = scmp.ne.s32.totalorder %s55, %s57
    %p61 = scmp.eq.s32.totalorder %s9, 0
    %p62 = por %p60, %p61
    %p63 = scmp.ne.s32.totalorder %s55, %s57
    %p64 = scmp.eq.s32.totalorder %s14, 1
    %p65 = por %p63, %p64
    %p66 = scmp.ne.s32.totalorder %s57, %s58
    %p67 = scmp.eq.s32.totalorder %s14, 0
    %p68 = por %p66, %p67
    %p69 = scmp.ne.s32.totalorder %s57, %s58
    %p70 = scmp.eq.s32.totalorder %s15, 1
    %p71 = por %p69, %p70
    %p73 = scmp.ne.s32.totalorder %s58, %s72
    %p74 = scmp.eq.s32.totalorder %s15, 0
    %p75 = por %p73, %p74
    %s77 = sadd.s32 %s76, 1
    %p80 = scmp.eq.s32.totalorder %s9, 1
    %p81 = scmp.ne.s32.totalorder %s76, %s78
    %p82 = scmp.eq.s32.totalorder %s9, 0
    %p83 = por %p81, %p82
    %p84 = scmp.ne.s32.totalorder %s76, %s78
    %p85 = scmp.eq.s32.totalorder %s14, 1
    %p86 = por %p84, %p85
    %p87 = scmp.ne.s32.totalorder %s78, %s79
    %p88 = scmp.eq.s32.totalorder %s14, 0
    %p89 = por %p87, %p88
    %p90 = scmp.ne.s32.totalorder %s78, %s79
    %p91 = scmp.eq.s32.totalorder %s15, 1
    %p92 = por %p90, %p91
    %p94 = scmp.ne.s32.totalorder %s79, %s93
    %p95 = scmp.eq.s32.totalorder %s15, 0
    %p96 = por %p94, %p95
    %s97 = ssub.s32 %s16, %s28
    %s98 = ssub.s32 %s17, %s24
    %s99 = sor.u32 %s97, %s98
    %p100 = scmp.eq.s32.totalorder %s99, 0
    %s102 = sadd.s32 %s101, 1
    %s103 = scalar_select %p100, %s101, %s102
    %p106 = pneg %p100
    %p107 = scmp.eq.s32.totalorder %s9, 1
    %p108 = por %p106, %p107
    %p109 = scmp.ne.s32.totalorder %s101, %s104
    %p110 = scmp.eq.s32.totalorder %s9, 0
    %p111 = por %p109, %p110
    %p112 = scmp.ne.s32.totalorder %s101, %s104
    %p113 = scmp.eq.s32.totalorder %s14, 1
    %p114 = por %p112, %p113
    %p115 = scmp.ne.s32.totalorder %s104, %s105
    %p116 = scmp.eq.s32.totalorder %s14, 0
    %p117 = por %p115, %p116
    %p118 = scmp.ne.s32.totalorder %s104, %s105
    %p119 = scmp.eq.s32.totalorder %s15, 1
    %p120 = por %p118, %p119
    %p122 = scmp.ne.s32.totalorder %s105, %s121
    %p123 = scmp.eq.s32.totalorder %s15, 0
    %p124 = por %p122, %p123
    %p125 = scmp.le.s32.totalorder 1, %s9
    %p126 = scmp.lt.s32.totalorder %s9, 3
    %p127 = pnand %p125, %p126
    %p128 = pneg %p127
    // Predicated region
    $region9: #{deep_griffin_lim_forward.17} parent=5 // pred_check
      _
    $region10: #{deep_griffin_lim_forward.17} parent=5 // pred_check_branch
      %130 = sbr.rel (%p127) target = $region12
    $region11: #{deep_griffin_lim_forward.17} parent=5 // pred_region
      %s131 = ssub.s32 %s9, 1
      // Predicated region
      $region13: #{deep_griffin_lim_forward.17} parent=11 // pred_check
        %p132 = pneg %p68
      $region14: #{deep_griffin_lim_forward.17} parent=11 // pred_check_branch
        %134 = sbr.rel (%p132) target = $region16
      $region15: #{deep_griffin_lim_forward.17} parent=11 // pred_region
        _
      $region16: #{deep_griffin_lim_forward.17} parent=11 // pred_fallthru
        _
      // Predicated region
      $region17: #{deep_griffin_lim_forward.17} parent=11 // pred_check
        %p135 = pneg %p89
      $region18: #{deep_griffin_lim_forward.17} parent=11 // pred_check_branch
        %137 = sbr.rel (%p135) target = $region20
      $region19: #{deep_griffin_lim_forward.17} parent=11 // pred_region
        _
      $region20: #{deep_griffin_lim_forward.17} parent=11 // pred_fallthru
        _
    $region12: #{deep_griffin_lim_forward.17} parent=5 // pred_fallthru
      _
    %p138 = scmp.lt.s32.totalorder %s9, 2
    // Predicated region
    $region21: #{deep_griffin_lim_forward.17} parent=5 // pred_check
      %p139 = pneg %p138
    $region22: #{deep_griffin_lim_forward.17} parent=5 // pred_check_branch
      %141 = sbr.rel (%p139) target = $region24
    $region23: #{deep_griffin_lim_forward.17} parent=5 // pred_region
      // Predicated region
      $region25: #{deep_griffin_lim_forward.17} parent=23 // pred_check
        %p142 = pneg %p41
      $region26: #{deep_griffin_lim_forward.17} parent=23 // pred_check_branch
        %144 = sbr.rel (%p142) target = $region28
      $region27: #{deep_griffin_lim_forward.17} parent=23 // pred_region
        %p145 = scmp.lt.s32.totalorder %s16, 1
        %s146 = scalar_select %p145, %s16, 1
        %s147 = smul.addr %s146, 4
        %s148 = smul.addr %s147, 4
        %s149 = scalar_lea.vmem %s0, %s148
      $region28: #{deep_griffin_lim_forward.17} parent=23 // pred_fallthru
        _
    $region24: #{deep_griffin_lim_forward.17} parent=5 // pred_fallthru
      _
    %p150 = scmp.le.s32.totalorder 1, %s9
    %p151 = scmp.lt.s32.totalorder %s9, 3
    %p152 = pnand %p150, %p151
    %p153 = pneg %p152
    // Predicated region
    $region29: #{deep_griffin_lim_forward.17} parent=5 // pred_check
      _
    $region30: #{deep_griffin_lim_forward.17} parent=5 // pred_check_branch
      %155 = sbr.rel (%p152) target = $region32
    $region31: #{deep_griffin_lim_forward.17} parent=5 // pred_region
      %s156 = ssub.s32 %s9, 1
      %p157 = scmp.lt.s32.totalorder %s18, 1
      %s158 = scalar_select %p157, %s18, 1
      %s159 = smul.addr %s158, 4
      %s160 = smul.addr %s159, 4
      %s161 = scalar_lea.vmem %s0, %s160
      %p162 = pneg %p47
      %p163 = pneg %p44
      %p164 = pneg %p68
      %p165 = pneg %p65
      %p166 = pneg %p89
      %p167 = pneg %p86
      %p168 = pneg %p117
      %p169 = pneg %p114
      %s170 = smul.u32 2, %s19
      %p171 = scmp.lt.s32.totalorder %s18, 1
      %s172 = scalar_select %p171, %s18, 1
      %p173 = scmp.lt.s32.totalorder %s170, 1
      %s174 = scalar_select %p173, %s170, 1
      %s175 = smul.addr %s172, 8
      %s176 = sadd.s32 %s174, %s175
      %s177 = smul.addr %s176, 4
      %s178 = scalar_lea.vmem %s3, %s177
      %p179 = scmp.lt.s32.totalorder %s18, 1
      %s180 = scalar_select %p179, %s18, 1
      %s181 = smul.addr %s180, 4
      %s182 = smul.addr %s181, 4
      %s183 = scalar_lea.vmem %s0, %s182
      %s184 = smul.u32 2, %s19
      %p185 = scmp.lt.s32.totalorder %s18, 1
      %s186 = scalar_select %p185, %s18, 1
      %p187 = scmp.lt.s32.totalorder %s184, 1
      %s188 = scalar_select %p187, %s184, 1
      %s189 = smul.addr %s186, 8
      %s190 = sadd.s32 %s188, %s189
      %s191 = smul.addr %s190, 4
      %s192 = scalar_lea.vmem %s3, %s191
      %s193 = smul.u32 2, %s19
      %s195 = smul.u32 %s19, 256
      %s196 = sshra.s32 %s195, 7
      %s197 = sand.u32 %s195, 127
      %s198 = smul.addr %s196, 4
      %s199 = scalar_lea.vmem %s183, %s198
      %v200 = vld [vmem:[%s199] sm:$0xff]
      %v201 = vld [vmem:[%s199 + $0x8] sm:$0xff]
      %v203 = vunpack.c.l.b16 %v200
      %v204 = vunpack.c.h.b16 %v200
      %v205 = vpack.c.b16 %v203, %v203
      %v206 = vpack.c.b16 %v204, %v204
      %v208 = vunpack.c.l.b16 %v201
      %v209 = vpack.c.b16 %v208, %v208
      %210 = vrot.lane.b32.xlu0 %v205, 127
      %v211 = vpop.permute.xlu0 %210
      %212 = vrot.lane.b32.xlu0 %v206, 127
      %v213 = vpop.permute.xlu0 %212
      %214 = vrot.lane.b32.xlu0 %v209, 127
      %v215 = vpop.permute.xlu0 %214
      %vm216 = vcmask 1039360
      %v217 = vsel %vm216, %v211, %v213
      %v218 = vsel %vm216, %v213, %v215
      %219 = vrot.lane.b32.xlu0 %v205, 126
      %v220 = vpop.permute.xlu0 %219
      %221 = vrot.lane.b32.xlu0 %v206, 126
      %v222 = vpop.permute.xlu0 %221
      %223 = vrot.lane.b32.xlu0 %v209, 126
      %v224 = vpop.permute.xlu0 %223
      %vm225 = vcmask 1031168
      %v226 = vsel %vm225, %v220, %v222
      %v227 = vsel %vm225, %v222, %v224
      %228 = vrot.lane.b32.xlu0 %v205, 125
      %v229 = vpop.permute.xlu0 %228
      %230 = vrot.lane.b32.xlu0 %v206, 125
      %v231 = vpop.permute.xlu0 %230
      %232 = vrot.lane.b32.xlu0 %v209, 125
      %v233 = vpop.permute.xlu0 %232
      %vm234 = vcmask 1022976
      %v235 = vsel %vm234, %v229, %v231
      %v236 = vsel %vm234, %v231, %v233
      %237 = vrot.lane.b32.xlu0 %v205, 124
      %v238 = vpop.permute.xlu0 %237
      %239 = vrot.lane.b32.xlu0 %v206, 124
      %v240 = vpop.permute.xlu0 %239
      %241 = vrot.lane.b32.xlu0 %v209, 124
      %v242 = vpop.permute.xlu0 %241
      %vm243 = vcmask 1014784
      %v244 = vsel %vm243, %v238, %v240
      %v245 = vsel %vm243, %v240, %v242
      %246 = vrot.lane.b32.xlu0 %v205, 123
      %v247 = vpop.permute.xlu0 %246
      %248 = vrot.lane.b32.xlu0 %v206, 123
      %v249 = vpop.permute.xlu0 %248
      %250 = vrot.lane.b32.xlu0 %v209, 123
      %v251 = vpop.permute.xlu0 %250
      %vm252 = vcmask 1006592
      %v253 = vsel %vm252, %v247, %v249
      %v254 = vsel %vm252, %v249, %v251
      %255 = vrot.lane.b32.xlu0 %v205, 122
      %v256 = vpop.permute.xlu0 %255
      %257 = vrot.lane.b32.xlu0 %v206, 122
      %v258 = vpop.permute.xlu0 %257
      %259 = vrot.lane.b32.xlu0 %v209, 122
      %v260 = vpop.permute.xlu0 %259
      %vm261 = vcmask 998400
      %v262 = vsel %vm261, %v256, %v258
      %v263 = vsel %vm261, %v258, %v260
      %264 = vrot.lane.b32.xlu0 %v205, 121
      %v265 = vpop.permute.xlu0 %264
      %266 = vrot.lane.b32.xlu0 %v206, 121
      %v267 = vpop.permute.xlu0 %266
      %268 = vrot.lane.b32.xlu0 %v209, 121
      %v269 = vpop.permute.xlu0 %268
      %vm270 = vcmask 990208
      %v271 = vsel %vm270, %v265, %v267
      %v272 = vsel %vm270, %v267, %v269
      %273 = vrot.lane.b32.xlu0 %v205, 120
      %v274 = vpop.permute.xlu0 %273
      %275 = vrot.lane.b32.xlu0 %v206, 120
      %v276 = vpop.permute.xlu0 %275
      %277 = vrot.lane.b32.xlu0 %v209, 120
      %v278 = vpop.permute.xlu0 %277
      %vm279 = vcmask 982016
      %v280 = vsel %vm279, %v274, %v276
      %v281 = vsel %vm279, %v276, %v278
      %282 = vrot.lane.b32.xlu0 %v205, 119
      %v283 = vpop.permute.xlu0 %282
      %284 = vrot.lane.b32.xlu0 %v206, 119
      %v285 = vpop.permute.xlu0 %284
      %286 = vrot.lane.b32.xlu0 %v209, 119
      %v287 = vpop.permute.xlu0 %286
      %vm288 = vcmask 973824
      %v289 = vsel %vm288, %v283, %v285
      %v290 = vsel %vm288, %v285, %v287
      %291 = vrot.lane.b32.xlu0 %v205, 118
      %v292 = vpop.permute.xlu0 %291
      %293 = vrot.lane.b32.xlu0 %v206, 118
      %v294 = vpop.permute.xlu0 %293
      %295 = vrot.lane.b32.xlu0 %v209, 118
      %v296 = vpop.permute.xlu0 %295
      %vm297 = vcmask 965632
      %v298 = vsel %vm297, %v292, %v294
      %v299 = vsel %vm297, %v294, %v296
      %300 = vrot.lane.b32.xlu0 %v205, 110
      %v301 = vpop.permute.xlu0 %300
      %302 = vrot.lane.b32.xlu0 %v206, 110
      %v303 = vpop.permute.xlu0 %302
      %304 = vrot.lane.b32.xlu0 %v209, 110
      %v305 = vpop.permute.xlu0 %304
      %vm306 = vcmask 900096
      %v307 = vsel %vm306, %v301, %v303
      %v308 = vsel %vm306, %v303, %v305
      %309 = vrot.lane.b32.xlu0 %v205, 109
      %v310 = vpop.permute.xlu0 %309
      %311 = vrot.lane.b32.xlu0 %v206, 109
      %v312 = vpop.permute.xlu0 %311
      %313 = vrot.lane.b32.xlu0 %v209, 109
      %v314 = vpop.permute.xlu0 %313
      %vm315 = vcmask 891904
      %v316 = vsel %vm315, %v310, %v312
      %v317 = vsel %vm315, %v312, %v314
      %318 = vrot.lane.b32.xlu0 %v205, 108
      %v319 = vpop.permute.xlu0 %318
      %320 = vrot.lane.b32.xlu0 %v206, 108
      %v321 = vpop.permute.xlu0 %320
      %322 = vrot.lane.b32.xlu0 %v209, 108
      %v323 = vpop.permute.xlu0 %322
      %vm324 = vcmask 883712
      %v325 = vsel %vm324, %v319, %v321
      %v326 = vsel %vm324, %v321, %v323
      %327 = vrot.lane.b32.xlu0 %v205, 107
      %v328 = vpop.permute.xlu0 %327
      %329 = vrot.lane.b32.xlu0 %v206, 107
      %v330 = vpop.permute.xlu0 %329
      %331 = vrot.lane.b32.xlu0 %v209, 107
      %v332 = vpop.permute.xlu0 %331
      %vm333 = vcmask 875520
      %v334 = vsel %vm333, %v328, %v330
      %v335 = vsel %vm333, %v330, %v332
      %336 = vrot.lane.b32.xlu0 %v205, 106
      %v337 = vpop.permute.xlu0 %336
      %338 = vrot.lane.b32.xlu0 %v206, 106
      %v339 = vpop.permute.xlu0 %338
      %340 = vrot.lane.b32.xlu0 %v209, 106
      %v341 = vpop.permute.xlu0 %340
      %vm342 = vcmask 867328
      %v343 = vsel %vm342, %v337, %v339
      %v344 = vsel %vm342, %v339, %v341
      %vm345 = vcmask 1043456
      %v348 = vsel %vm345, %v205, %v217
      %v352 = vsel %vm345, %v206, %v218
      %v356 = vsel %vm345, %v226, %v235
      %v360 = vsel %vm345, %v227, %v236
      %v364 = vsel %vm345, %v244, %v253
      %v368 = vsel %vm345, %v245, %v254
      %v372 = vsel %vm345, %v262, %v271
      %v376 = vsel %vm345, %v263, %v272
      %v380 = vsel %vm345, %v280, %v289
      %v384 = vsel %vm345, %v281, %v290
      %v388 = vsel %vm345, %v298, %v307
      %v392 = vsel %vm345, %v299, %v308
      %v396 = vsel %vm345, %v316, %v325
      %v400 = vsel %vm345, %v317, %v326
      %v404 = vsel %vm345, %v334, %v343
      %v408 = vsel %vm345, %v335, %v344
      %410 = vrot.lane.b32.xlu0 %v205, 115
      %v411 = vpop.permute.xlu0 %410
      %412 = vrot.lane.b32.xlu0 %v206, 115
      %v413 = vpop.permute.xlu0 %412
      %414 = vrot.lane.b32.xlu0 %v209, 115
      %v415 = vpop.permute.xlu0 %414
      %vm416 = vcmask 941056
      %v417 = vsel %vm416, %v411, %v413
      %v418 = vsel %vm416, %v413, %v415
      %419 = vrot.lane.b32.xlu0 %v205, 114
      %v420 = vpop.permute.xlu0 %419
      %421 = vrot.lane.b32.xlu0 %v206, 114
      %v422 = vpop.permute.xlu0 %421
      %423 = vrot.lane.b32.xlu0 %v209, 114
      %v424 = vpop.permute.xlu0 %423
      %vm425 = vcmask 932864
      %v426 = vsel %vm425, %v420, %v422
      %v427 = vsel %vm425, %v422, %v424
      %428 = vrot.lane.b32.xlu0 %v205, 113
      %v429 = vpop.permute.xlu0 %428
      %430 = vrot.lane.b32.xlu0 %v206, 113
      %v431 = vpop.permute.xlu0 %430
      %432 = vrot.lane.b32.xlu0 %v209, 113
      %v433 = vpop.permute.xlu0 %432
      %vm434 = vcmask 924672
      %v435 = vsel %vm434, %v429, %v431
      %v436 = vsel %vm434, %v431, %v433
      %437 = vrot.lane.b32.xlu0 %v205, 112
      %v438 = vpop.permute.xlu0 %437
      %439 = vrot.lane.b32.xlu0 %v206, 112
      %v440 = vpop.permute.xlu0 %439
      %441 = vrot.lane.b32.xlu0 %v209, 112
      %v442 = vpop.permute.xlu0 %441
      %vm443 = vcmask 916480
      %v444 = vsel %vm443, %v438, %v440
      %v445 = vsel %vm443, %v440, %v442
      %446 = vrot.lane.b32.xlu0 %v205, 111
      %v447 = vpop.permute.xlu0 %446
      %448 = vrot.lane.b32.xlu0 %v206, 111
      %v449 = vpop.permute.xlu0 %448
      %450 = vrot.lane.b32.xlu0 %v209, 111
      %v451 = vpop.permute.xlu0 %450
      %vm452 = vcmask 908288
      %v453 = vsel %vm452, %v447, %v449
      %v454 = vsel %vm452, %v449, %v451
      %v457 = vsel %vm345, %v209, %v215
      %v460 = vsel %vm345, %v224, %v233
      %v463 = vsel %vm345, %v242, %v251
      %v466 = vsel %vm345, %v417, %v426
      %v469 = vsel %vm345, %v418, %v427
      %v472 = vsel %vm345, %v415, %v424
      %v475 = vsel %vm345, %v435, %v444
      %v478 = vsel %vm345, %v436, %v445
      %v481 = vsel %vm345, %v433, %v442
      %v483 = vsel %vm345, %v453, %v307
      %v485 = vsel %vm345, %v454, %v308
      %v488 = vsel %vm345, %v451, %v305
      %v491 = vsel %vm345, %v314, %v323
      %v494 = vsel %vm345, %v332, %v341
      %495 = vrot.lane.b32.xlu0 %v205, 117
      %v496 = vpop.permute.xlu0 %495
      %497 = vrot.lane.b32.xlu0 %v206, 117
      %v498 = vpop.permute.xlu0 %497
      %499 = vrot.lane.b32.xlu0 %v209, 117
      %v500 = vpop.permute.xlu0 %499
      %vm501 = vcmask 957440
      %v502 = vsel %vm501, %v496, %v498
      %v503 = vsel %vm501, %v498, %v500
      %504 = vrot.lane.b32.xlu0 %v205, 116
      %v505 = vpop.permute.xlu0 %504
      %506 = vrot.lane.b32.xlu0 %v206, 116
      %v507 = vpop.permute.xlu0 %506
      %508 = vrot.lane.b32.xlu0 %v209, 116
      %v509 = vpop.permute.xlu0 %508
      %vm510 = vcmask 949248
      %v511 = vsel %vm510, %v505, %v507
      %v512 = vsel %vm510, %v507, %v509
      %513 = vrot.lane.b32.xlu0 %v205, 102
      %v514 = vpop.permute.xlu0 %513
      %515 = vrot.lane.b32.xlu0 %v206, 102
      %v516 = vpop.permute.xlu0 %515
      %517 = vrot.lane.b32.xlu0 %v209, 102
      %v518 = vpop.permute.xlu0 %517
      %vm519 = vcmask 834560
      %v520 = vsel %vm519, %v514, %v516
      %v521 = vsel %vm519, %v516, %v518
      %522 = vrot.lane.b32.xlu0 %v205, 101
      %v523 = vpop.permute.xlu0 %522
      %524 = vrot.lane.b32.xlu0 %v206, 101
      %v525 = vpop.permute.xlu0 %524
      %526 = vrot.lane.b32.xlu0 %v209, 101
      %v527 = vpop.permute.xlu0 %526
      %vm528 = vcmask 826368
      %v529 = vsel %vm528, %v523, %v525
      %v530 = vsel %vm528, %v525, %v527
      %531 = vrot.lane.b32.xlu0 %v205, 100
      %v532 = vpop.permute.xlu0 %531
      %533 = vrot.lane.b32.xlu0 %v206, 100
      %v534 = vpop.permute.xlu0 %533
      %535 = vrot.lane.b32.xlu0 %v209, 100
      %v536 = vpop.permute.xlu0 %535
      %vm537 = vcmask 818176
      %v538 = vsel %vm537, %v532, %v534
      %v539 = vsel %vm537, %v534, %v536
      %540 = vrot.lane.b32.xlu0 %v205, 99
      %v541 = vpop.permute.xlu0 %540
      %542 = vrot.lane.b32.xlu0 %v206, 99
      %v543 = vpop.permute.xlu0 %542
      %544 = vrot.lane.b32.xlu0 %v209, 99
      %v545 = vpop.permute.xlu0 %544
      %vm546 = vcmask 809984
      %v547 = vsel %vm546, %v541, %v543
      %v548 = vsel %vm546, %v543, %v545
      %v549 = vsel %vm345, %v205, %v280
      %v550 = vsel %vm345, %v206, %v281
      %v552 = vsel %vm345, %v209, %v278
      %v553 = vsel %vm345, %v289, %v298
      %v554 = vsel %vm345, %v290, %v299
      %v557 = vsel %vm345, %v287, %v296
      %v560 = vsel %vm345, %v502, %v511
      %v563 = vsel %vm345, %v503, %v512
      %v566 = vsel %vm345, %v500, %v509
      %v569 = vsel %vm345, %v520, %v529
      %v572 = vsel %vm345, %v521, %v530
      %v575 = vsel %vm345, %v518, %v527
      %v578 = vsel %vm345, %v538, %v547
      %v581 = vsel %vm345, %v539, %v548
      %v584 = vsel %vm345, %v536, %v545
      %v585 = vsel %vm345, %v262, %v426
      %v586 = vsel %vm345, %v263, %v427
      %v588 = vsel %vm345, %v260, %v424
      %v589 = vsel %vm345, %v316, %v529
      %v590 = vsel %vm345, %v317, %v530
      %v591 = vsel %vm345, %v314, %v527
      %v593 = vsel %vm345, %v538, %v543
      %v594 = vunpack.c.h.b16 %v201
      %v595 = vpack.c.b16 %v594, %v594
      %596 = vrot.lane.b32.xlu0 %v595, 127
      %v597 = vpop.permute.xlu0 %596
      %v598 = vsel %vm216, %v215, %v597
      %599 = vrot.lane.b32.xlu0 %v595, 126
      %v600 = vpop.permute.xlu0 %599
      %v601 = vsel %vm225, %v224, %v600
      %602 = vrot.lane.b32.xlu0 %v595, 125
      %v603 = vpop.permute.xlu0 %602
      %v604 = vsel %vm234, %v233, %v603
      %605 = vrot.lane.b32.xlu0 %v595, 124
      %v606 = vpop.permute.xlu0 %605
      %v607 = vsel %vm243, %v242, %v606
      %608 = vrot.lane.b32.xlu0 %v595, 123
      %v609 = vpop.permute.xlu0 %608
      %v610 = vsel %vm252, %v251, %v609
      %611 = vrot.lane.b32.xlu0 %v595, 122
      %v612 = vpop.permute.xlu0 %611
      %v613 = vsel %vm261, %v260, %v612
      %614 = vrot.lane.b32.xlu0 %v595, 121
      %v615 = vpop.permute.xlu0 %614
      %v616 = vsel %vm270, %v269, %v615
      %617 = vrot.lane.b32.xlu0 %v595, 120
      %v618 = vpop.permute.xlu0 %617
      %v619 = vsel %vm279, %v278, %v618
      %620 = vrot.lane.b32.xlu0 %v595, 112
      %v621 = vpop.permute.xlu0 %620
      %v622 = vsel %vm443, %v442, %v621
      %623 = vrot.lane.b32.xlu0 %v595, 111
      %v624 = vpop.permute.xlu0 %623
      %v625 = vsel %vm452, %v451, %v624
      %626 = vrot.lane.b32.xlu0 %v595, 110
      %v627 = vpop.permute.xlu0 %626
      %v628 = vsel %vm306, %v305, %v627
      %629 = vrot.lane.b32.xlu0 %v595, 109
      %v630 = vpop.permute.xlu0 %629
      %v631 = vsel %vm315, %v314, %v630
      %632 = vrot.lane.b32.xlu0 %v595, 108
      %v633 = vpop.permute.xlu0 %632
      %v634 = vsel %vm324, %v323, %v633
      %635 = vrot.lane.b32.xlu0 %v595, 107
      %v636 = vpop.permute.xlu0 %635
      %v637 = vsel %vm333, %v332, %v636
      %638 = vrot.lane.b32.xlu0 %v595, 106
      %v639 = vpop.permute.xlu0 %638
      %v640 = vsel %vm342, %v341, %v639
      %641 = vrot.lane.b32.xlu0 %v206, 105
      %v642 = vpop.permute.xlu0 %641
      %643 = vrot.lane.b32.xlu0 %v209, 105
      %v644 = vpop.permute.xlu0 %643
      %645 = vrot.lane.b32.xlu0 %v595, 105
      %v646 = vpop.permute.xlu0 %645
      %vm647 = vcmask 859136
      %v648 = vsel %vm647, %v642, %v644
      %v649 = vsel %vm647, %v644, %v646
      %v650 = vsel %vm345, %v218, %v227
      %v654 = vsel %vm345, %v598, %v601
      %v656 = vsel %vm345, %v236, %v245
      %v660 = vsel %vm345, %v604, %v607
      %v662 = vsel %vm345, %v254, %v263
      %v666 = vsel %vm345, %v610, %v613
      %v668 = vsel %vm345, %v272, %v281
      %v672 = vsel %vm345, %v616, %v619
      %v674 = vsel %vm345, %v445, %v454
      %v678 = vsel %vm345, %v622, %v625
      %v680 = vsel %vm345, %v308, %v317
      %v684 = vsel %vm345, %v628, %v631
      %v686 = vsel %vm345, %v326, %v335
      %v690 = vsel %vm345, %v634, %v637
      %v693 = vsel %vm345, %v344, %v648
      %v697 = vsel %vm345, %v640, %v649
      %699 = vrot.lane.b32.xlu0 %v206, 104
      %v700 = vpop.permute.xlu0 %699
      %701 = vrot.lane.b32.xlu0 %v209, 104
      %v702 = vpop.permute.xlu0 %701
      %703 = vrot.lane.b32.xlu0 %v595, 104
      %v704 = vpop.permute.xlu0 %703
      %vm705 = vcmask 850944
      %v706 = vsel %vm705, %v700, %v702
      %v707 = vsel %vm705, %v702, %v704
      %708 = vrot.lane.b32.xlu0 %v206, 103
      %v709 = vpop.permute.xlu0 %708
      %710 = vrot.lane.b32.xlu0 %v209, 103
      %v711 = vpop.permute.xlu0 %710
      %712 = vrot.lane.b32.xlu0 %v595, 103
      %v713 = vpop.permute.xlu0 %712
      %vm714 = vcmask 842752
      %v715 = vsel %vm714, %v709, %v711
      %v716 = vsel %vm714, %v711, %v713
      %717 = vrot.lane.b32.xlu0 %v595, 102
      %v718 = vpop.permute.xlu0 %717
      %v719 = vsel %vm519, %v518, %v718
      %720 = vrot.lane.b32.xlu0 %v206, 94
      %v721 = vpop.permute.xlu0 %720
      %722 = vrot.lane.b32.xlu0 %v209, 94
      %v723 = vpop.permute.xlu0 %722
      %724 = vrot.lane.b32.xlu0 %v595, 94
      %v725 = vpop.permute.xlu0 %724
      %vm726 = vcmask 769024
      %v727 = vsel %vm726, %v721, %v723
      %v728 = vsel %vm726, %v723, %v725
      %729 = vrot.lane.b32.xlu0 %v206, 93
      %v730 = vpop.permute.xlu0 %729
      %731 = vrot.lane.b32.xlu0 %v209, 93
      %v732 = vpop.permute.xlu0 %731
      %733 = vrot.lane.b32.xlu0 %v595, 93
      %v734 = vpop.permute.xlu0 %733
      %vm735 = vcmask 760832
      %v736 = vsel %vm735, %v730, %v732
      %v737 = vsel %vm735, %v732, %v734
      %738 = vrot.lane.b32.xlu0 %v206, 92
      %v739 = vpop.permute.xlu0 %738
      %740 = vrot.lane.b32.xlu0 %v209, 92
      %v741 = vpop.permute.xlu0 %740
      %742 = vrot.lane.b32.xlu0 %v595, 92
      %v743 = vpop.permute.xlu0 %742
      %vm744 = vcmask 752640
      %v745 = vsel %vm744, %v739, %v741
      %v746 = vsel %vm744, %v741, %v743
      %747 = vrot.lane.b32.xlu0 %v206, 91
      %v748 = vpop.permute.xlu0 %747
      %749 = vrot.lane.b32.xlu0 %v209, 91
      %v750 = vpop.permute.xlu0 %749
      %751 = vrot.lane.b32.xlu0 %v595, 91
      %v752 = vpop.permute.xlu0 %751
      %vm753 = vcmask 744448
      %v754 = vsel %vm753, %v748, %v750
      %v755 = vsel %vm753, %v750, %v752
      %756 = vrot.lane.b32.xlu0 %v206, 90
      %v757 = vpop.permute.xlu0 %756
      %758 = vrot.lane.b32.xlu0 %v209, 90
      %v759 = vpop.permute.xlu0 %758
      %760 = vrot.lane.b32.xlu0 %v595, 90
      %v761 = vpop.permute.xlu0 %760
      %vm762 = vcmask 736256
      %v763 = vsel %vm762, %v757, %v759
      %v764 = vsel %vm762, %v759, %v761
      %765 = vrot.lane.b32.xlu0 %v206, 89
      %v766 = vpop.permute.xlu0 %765
      %767 = vrot.lane.b32.xlu0 %v209, 89
      %v768 = vpop.permute.xlu0 %767
      %769 = vrot.lane.b32.xlu0 %v595, 89
      %v770 = vpop.permute.xlu0 %769
      %vm771 = vcmask 728064
      %v772 = vsel %vm771, %v766, %v768
      %v773 = vsel %vm771, %v768, %v770
      %774 = vrot.lane.b32.xlu0 %v206, 88
      %v775 = vpop.permute.xlu0 %774
      %776 = vrot.lane.b32.xlu0 %v209, 88
      %v777 = vpop.permute.xlu0 %776
      %778 = vrot.lane.b32.xlu0 %v595, 88
      %v779 = vpop.permute.xlu0 %778
      %vm780 = vcmask 719872
      %v781 = vsel %vm780, %v775, %v777
      %v782 = vsel %vm780, %v777, %v779
      %783 = vrot.lane.b32.xlu0 %v206, 87
      %v784 = vpop.permute.xlu0 %783
      %785 = vrot.lane.b32.xlu0 %v209, 87
      %v786 = vpop.permute.xlu0 %785
      %787 = vrot.lane.b32.xlu0 %v595, 87
      %v788 = vpop.permute.xlu0 %787
      %vm789 = vcmask 711680
      %v790 = vsel %vm789, %v784, %v786
      %v791 = vsel %vm789, %v786, %v788
      %792 = vrot.lane.b32.xlu0 %v206, 86
      %v793 = vpop.permute.xlu0 %792
      %794 = vrot.lane.b32.xlu0 %v209, 86
      %v795 = vpop.permute.xlu0 %794
      %796 = vrot.lane.b32.xlu0 %v595, 86
      %v797 = vpop.permute.xlu0 %796
      %vm798 = vcmask 703488
      %v799 = vsel %vm798, %v793, %v795
      %v800 = vsel %vm798, %v795, %v797
      %801 = vrot.lane.b32.xlu0 %v206, 85
      %v802 = vpop.permute.xlu0 %801
      %803 = vrot.lane.b32.xlu0 %v209, 85
      %v804 = vpop.permute.xlu0 %803
      %805 = vrot.lane.b32.xlu0 %v595, 85
      %v806 = vpop.permute.xlu0 %805
      %vm807 = vcmask 695296
      %v808 = vsel %vm807, %v802, %v804
      %v809 = vsel %vm807, %v804, %v806
      %810 = vrot.lane.b32.xlu0 %v206, 84
      %v811 = vpop.permute.xlu0 %810
      %812 = vrot.lane.b32.xlu0 %v209, 84
      %v813 = vpop.permute.xlu0 %812
      %814 = vrot.lane.b32.xlu0 %v595, 84
      %v815 = vpop.permute.xlu0 %814
      %vm816 = vcmask 687104
      %v817 = vsel %vm816, %v811, %v813
      %v818 = vsel %vm816, %v813, %v815
      %819 = vrot.lane.b32.xlu0 %v206, 76
      %v820 = vpop.permute.xlu0 %819
      %821 = vrot.lane.b32.xlu0 %v209, 76
      %v822 = vpop.permute.xlu0 %821
      %823 = vrot.lane.b32.xlu0 %v595, 76
      %v824 = vpop.permute.xlu0 %823
      %vm825 = vcmask 621568
      %v826 = vsel %vm825, %v820, %v822
      %v827 = vsel %vm825, %v822, %v824
      %828 = vrot.lane.b32.xlu0 %v206, 75
      %v829 = vpop.permute.xlu0 %828
      %830 = vrot.lane.b32.xlu0 %v209, 75
      %v831 = vpop.permute.xlu0 %830
      %832 = vrot.lane.b32.xlu0 %v595, 75
      %v833 = vpop.permute.xlu0 %832
      %vm834 = vcmask 613376
      %v835 = vsel %vm834, %v829, %v831
      %v836 = vsel %vm834, %v831, %v833
      %v839 = vsel %vm345, %v706, %v715
      %v843 = vsel %vm345, %v707, %v716
      %v846 = vsel %vm345, %v521, %v727
      %v850 = vsel %vm345, %v719, %v728
      %v854 = vsel %vm345, %v736, %v745
      %v858 = vsel %vm345, %v737, %v746
      %v862 = vsel %vm345, %v754, %v763
      %v866 = vsel %vm345, %v755, %v764
      %v870 = vsel %vm345, %v772, %v781
      %v874 = vsel %vm345, %v773, %v782
      %v878 = vsel %vm345, %v790, %v799
      %v882 = vsel %vm345, %v791, %v800
      %v886 = vsel %vm345, %v808, %v817
      %v890 = vsel %vm345, %v809, %v818
      %v894 = vsel %vm345, %v826, %v835
      %v898 = vsel %vm345, %v827, %v836
      %900 = vrot.lane.b32.xlu0 %v206, 74
      %v901 = vpop.permute.xlu0 %900
      %902 = vrot.lane.b32.xlu0 %v209, 74
      %v903 = vpop.permute.xlu0 %902
      %904 = vrot.lane.b32.xlu0 %v595, 74
      %v905 = vpop.permute.xlu0 %904
      %vm906 = vcmask 605184
      %v907 = vsel %vm906, %v901, %v903
      %v908 = vsel %vm906, %v903, %v905
      %909 = vrot.lane.b32.xlu0 %v206, 73
      %v910 = vpop.permute.xlu0 %909
      %911 = vrot.lane.b32.xlu0 %v209, 73
      %v912 = vpop.permute.xlu0 %911
      %913 = vrot.lane.b32.xlu0 %v595, 73
      %v914 = vpop.permute.xlu0 %913
      %vm915 = vcmask 596992
      %v916 = vsel %vm915, %v910, %v912
      %v917 = vsel %vm915, %v912, %v914
      %918 = vrot.lane.b32.xlu0 %v206, 72
      %v919 = vpop.permute.xlu0 %918
      %920 = vrot.lane.b32.xlu0 %v209, 72
      %v921 = vpop.permute.xlu0 %920
      %922 = vrot.lane.b32.xlu0 %v595, 72
      %v923 = vpop.permute.xlu0 %922
      %vm924 = vcmask 588800
      %v925 = vsel %vm924, %v919, %v921
      %v926 = vsel %vm924, %v921, %v923
      %927 = vrot.lane.b32.xlu0 %v206, 71
      %v928 = vpop.permute.xlu0 %927
      %929 = vrot.lane.b32.xlu0 %v209, 71
      %v930 = vpop.permute.xlu0 %929
      %931 = vrot.lane.b32.xlu0 %v595, 71
      %v932 = vpop.permute.xlu0 %931
      %vm933 = vcmask 580608
      %v934 = vsel %vm933, %v928, %v930
      %v935 = vsel %vm933, %v930, %v932
      %936 = vrot.lane.b32.xlu0 %v206, 70
      %v937 = vpop.permute.xlu0 %936
      %938 = vrot.lane.b32.xlu0 %v209, 70
      %v939 = vpop.permute.xlu0 %938
      %940 = vrot.lane.b32.xlu0 %v595, 70
      %v941 = vpop.permute.xlu0 %940
      %vm942 = vcmask 572416
      %v943 = vsel %vm942, %v937, %v939
      %v944 = vsel %vm942, %v939, %v941
      %945 = vrot.lane.b32.xlu0 %v206, 69
      %v946 = vpop.permute.xlu0 %945
      %947 = vrot.lane.b32.xlu0 %v209, 69
      %v948 = vpop.permute.xlu0 %947
      %949 = vrot.lane.b32.xlu0 %v595, 69
      %v950 = vpop.permute.xlu0 %949
      %vm951 = vcmask 564224
      %v952 = vsel %vm951, %v946, %v948
      %v953 = vsel %vm951, %v948, %v950
      %954 = vrot.lane.b32.xlu0 %v206, 68
      %v955 = vpop.permute.xlu0 %954
      %956 = vrot.lane.b32.xlu0 %v209, 68
      %v957 = vpop.permute.xlu0 %956
      %958 = vrot.lane.b32.xlu0 %v595, 68
      %v959 = vpop.permute.xlu0 %958
      %vm960 = vcmask 556032
      %v961 = vsel %vm960, %v955, %v957
      %v962 = vsel %vm960, %v957, %v959
      %963 = vrot.lane.b32.xlu0 %v206, 67
      %v964 = vpop.permute.xlu0 %963
      %965 = vrot.lane.b32.xlu0 %v209, 67
      %v966 = vpop.permute.xlu0 %965
      %967 = vrot.lane.b32.xlu0 %v595, 67
      %v968 = vpop.permute.xlu0 %967
      %vm969 = vcmask 547840
      %v970 = vsel %vm969, %v964, %v966
      %v971 = vsel %vm969, %v966, %v968
      %972 = vrot.lane.b32.xlu0 %v206, 66
      %v973 = vpop.permute.xlu0 %972
      %974 = vrot.lane.b32.xlu0 %v209, 66
      %v975 = vpop.permute.xlu0 %974
      %976 = vrot.lane.b32.xlu0 %v595, 66
      %v977 = vpop.permute.xlu0 %976
      %vm978 = vcmask 539648
      %v979 = vsel %vm978, %v973, %v975
      %v980 = vsel %vm978, %v975, %v977
      %v983 = vsel %vm345, %v907, %v916
      %v987 = vsel %vm345, %v908, %v917
      %v991 = vsel %vm345, %v925, %v934
      %v995 = vsel %vm345, %v926, %v935
      %v999 = vsel %vm345, %v943, %v952
      %v1003 = vsel %vm345, %v944, %v953
      %v1007 = vsel %vm345, %v961, %v970
      %v1011 = vsel %vm345, %v962, %v971
      %1037 = vrot.lane.b32.xlu0 %v348, 105
      %v1038 = vpop.permute.xlu0 %1037
      %1039 = vrot.lane.b32.xlu0 %v352, 105
      %v1040 = vpop.permute.xlu0 %1039
      %1041 = vrot.lane.b32.xlu0 %v457, 105
      %v1042 = vpop.permute.xlu0 %1041
      %1043 = vrot.lane.b32.xlu0 %v356, 105
      %v1044 = vpop.permute.xlu0 %1043
      %1045 = vrot.lane.b32.xlu0 %v360, 105
      %v1046 = vpop.permute.xlu0 %1045
      %1047 = vrot.lane.b32.xlu0 %v460, 105
      %v1048 = vpop.permute.xlu0 %1047
      %1049 = vrot.lane.b32.xlu0 %v364, 105
      %v1050 = vpop.permute.xlu0 %1049
      %1051 = vrot.lane.b32.xlu0 %v368, 105
      %v1052 = vpop.permute.xlu0 %1051
      %1053 = vrot.lane.b32.xlu0 %v463, 105
      %v1054 = vpop.permute.xlu0 %1053
      %1055 = vrot.lane.b32.xlu0 %v466, 105
      %v1056 = vpop.permute.xlu0 %1055
      %1057 = vrot.lane.b32.xlu0 %v469, 105
      %v1058 = vpop.permute.xlu0 %1057
      %1059 = vrot.lane.b32.xlu0 %v472, 105
      %v1060 = vpop.permute.xlu0 %1059
      %1061 = vrot.lane.b32.xlu0 %v475, 105
      %v1062 = vpop.permute.xlu0 %1061
      %1063 = vrot.lane.b32.xlu0 %v478, 105
      %v1064 = vpop.permute.xlu0 %1063
      %1065 = vrot.lane.b32.xlu0 %v481, 105
      %v1066 = vpop.permute.xlu0 %1065
      %1067 = vrot.lane.b32.xlu0 %v483, 105
      %v1068 = vpop.permute.xlu0 %1067
      %1069 = vrot.lane.b32.xlu0 %v485, 105
      %v1070 = vpop.permute.xlu0 %1069
      %1071 = vrot.lane.b32.xlu0 %v488, 105
      %v1072 = vpop.permute.xlu0 %1071
      %1073 = vrot.lane.b32.xlu0 %v396, 105
      %v1074 = vpop.permute.xlu0 %1073
      %1075 = vrot.lane.b32.xlu0 %v400, 105
      %v1076 = vpop.permute.xlu0 %1075
      %1077 = vrot.lane.b32.xlu0 %v491, 105
      %v1078 = vpop.permute.xlu0 %1077
      %1079 = vrot.lane.b32.xlu0 %v404, 105
      %v1080 = vpop.permute.xlu0 %1079
      %1081 = vrot.lane.b32.xlu0 %v408, 105
      %v1082 = vpop.permute.xlu0 %1081
      %1083 = vrot.lane.b32.xlu0 %v494, 105
      %v1084 = vpop.permute.xlu0 %1083
      %v1085 = vsel %vm647, %v1038, %v1040
      %v1086 = vsel %vm647, %v1040, %v1042
      %v1087 = vsel %vm647, %v1044, %v1046
      %v1088 = vsel %vm647, %v1046, %v1048
      %v1089 = vsel %vm647, %v1050, %v1052
      %v1090 = vsel %vm647, %v1052, %v1054
      %v1091 = vsel %vm647, %v1056, %v1058
      %v1092 = vsel %vm647, %v1058, %v1060
      %v1093 = vsel %vm647, %v1062, %v1064
      %v1094 = vsel %vm647, %v1064, %v1066
      %v1095 = vsel %vm647, %v1068, %v1070
      %v1096 = vsel %vm647, %v1070, %v1072
      %v1097 = vsel %vm647, %v1074, %v1076
      %v1098 = vsel %vm647, %v1076, %v1078
      %v1099 = vsel %vm647, %v1080, %v1082
      %v1100 = vsel %vm647, %v1082, %v1084
      %1132 = vrot.lane.b32.xlu0 %v549, 82
      %v1133 = vpop.permute.xlu0 %1132
      %1134 = vrot.lane.b32.xlu0 %v550, 82
      %v1135 = vpop.permute.xlu0 %1134
      %1136 = vrot.lane.b32.xlu0 %v552, 82
      %v1137 = vpop.permute.xlu0 %1136
      %1138 = vrot.lane.b32.xlu0 %v553, 82
      %v1139 = vpop.permute.xlu0 %1138
      %1140 = vrot.lane.b32.xlu0 %v554, 82
      %v1141 = vpop.permute.xlu0 %1140
      %1142 = vrot.lane.b32.xlu0 %v557, 82
      %v1143 = vpop.permute.xlu0 %1142
      %1144 = vrot.lane.b32.xlu0 %v560, 82
      %v1145 = vpop.permute.xlu0 %1144
      %1146 = vrot.lane.b32.xlu0 %v563, 82
      %v1147 = vpop.permute.xlu0 %1146
      %1148 = vrot.lane.b32.xlu0 %v566, 82
      %v1149 = vpop.permute.xlu0 %1148
      %1150 = vrot.lane.b32.xlu0 %v466, 82
      %v1151 = vpop.permute.xlu0 %1150
      %1152 = vrot.lane.b32.xlu0 %v469, 82
      %v1153 = vpop.permute.xlu0 %1152
      %1154 = vrot.lane.b32.xlu0 %v472, 82
      %v1155 = vpop.permute.xlu0 %1154
      %1156 = vrot.lane.b32.xlu0 %v475, 82
      %v1157 = vpop.permute.xlu0 %1156
      %1158 = vrot.lane.b32.xlu0 %v478, 82
      %v1159 = vpop.permute.xlu0 %1158
      %1160 = vrot.lane.b32.xlu0 %v481, 82
      %v1161 = vpop.permute.xlu0 %1160
      %1162 = vrot.lane.b32.xlu0 %v483, 82
      %v1163 = vpop.permute.xlu0 %1162
      %1164 = vrot.lane.b32.xlu0 %v485, 82
      %v1165 = vpop.permute.xlu0 %1164
      %1166 = vrot.lane.b32.xlu0 %v488, 82
      %v1167 = vpop.permute.xlu0 %1166
      %1168 = vrot.lane.b32.xlu0 %v569, 82
      %v1169 = vpop.permute.xlu0 %1168
      %1170 = vrot.lane.b32.xlu0 %v572, 82
      %v1171 = vpop.permute.xlu0 %1170
      %1172 = vrot.lane.b32.xlu0 %v575, 82
      %v1173 = vpop.permute.xlu0 %1172
      %1174 = vrot.lane.b32.xlu0 %v578, 82
      %v1175 = vpop.permute.xlu0 %1174
      %1176 = vrot.lane.b32.xlu0 %v581, 82
      %v1177 = vpop.permute.xlu0 %1176
      %1178 = vrot.lane.b32.xlu0 %v584, 82
      %v1179 = vpop.permute.xlu0 %1178
      %vm1180 = vcmask 670720
      %v1181 = vsel %vm1180, %v1133, %v1135
      %v1182 = vsel %vm1180, %v1135, %v1137
      %v1183 = vsel %vm1180, %v1139, %v1141
      %v1184 = vsel %vm1180, %v1141, %v1143
      %v1185 = vsel %vm1180, %v1145, %v1147
      %v1186 = vsel %vm1180, %v1147, %v1149
      %v1187 = vsel %vm1180, %v1151, %v1153
      %v1188 = vsel %vm1180, %v1153, %v1155
      %v1189 = vsel %vm1180, %v1157, %v1159
      %v1190 = vsel %vm1180, %v1159, %v1161
      %v1191 = vsel %vm1180, %v1163, %v1165
      %v1192 = vsel %vm1180, %v1165, %v1167
      %v1193 = vsel %vm1180, %v1169, %v1171
      %v1194 = vsel %vm1180, %v1171, %v1173
      %v1195 = vsel %vm1180, %v1175, %v1177
      %v1196 = vsel %vm1180, %v1177, %v1179
      %1216 = vrot.lane.b32.xlu0 %v348, 52
      %v1217 = vpop.permute.xlu0 %1216
      %1218 = vrot.lane.b32.xlu0 %v352, 52
      %v1219 = vpop.permute.xlu0 %1218
      %1220 = vrot.lane.b32.xlu0 %v457, 52
      %v1221 = vpop.permute.xlu0 %1220
      %1222 = vrot.lane.b32.xlu0 %v356, 52
      %v1223 = vpop.permute.xlu0 %1222
      %1224 = vrot.lane.b32.xlu0 %v360, 52
      %v1225 = vpop.permute.xlu0 %1224
      %1226 = vrot.lane.b32.xlu0 %v460, 52
      %v1227 = vpop.permute.xlu0 %1226
      %1228 = vrot.lane.b32.xlu0 %v364, 52
      %v1229 = vpop.permute.xlu0 %1228
      %1230 = vrot.lane.b32.xlu0 %v368, 52
      %v1231 = vpop.permute.xlu0 %1230
      %1232 = vrot.lane.b32.xlu0 %v463, 52
      %v1233 = vpop.permute.xlu0 %1232
      %1234 = vrot.lane.b32.xlu0 %v585, 52
      %v1235 = vpop.permute.xlu0 %1234
      %1236 = vrot.lane.b32.xlu0 %v586, 52
      %v1237 = vpop.permute.xlu0 %1236
      %1238 = vrot.lane.b32.xlu0 %v588, 52
      %v1239 = vpop.permute.xlu0 %1238
      %1240 = vrot.lane.b32.xlu0 %v475, 52
      %v1241 = vpop.permute.xlu0 %1240
      %1242 = vrot.lane.b32.xlu0 %v478, 52
      %v1243 = vpop.permute.xlu0 %1242
      %1244 = vrot.lane.b32.xlu0 %v481, 52
      %v1245 = vpop.permute.xlu0 %1244
      %1246 = vrot.lane.b32.xlu0 %v483, 52
      %v1247 = vpop.permute.xlu0 %1246
      %1248 = vrot.lane.b32.xlu0 %v485, 52
      %v1249 = vpop.permute.xlu0 %1248
      %1250 = vrot.lane.b32.xlu0 %v488, 52
      %v1251 = vpop.permute.xlu0 %1250
      %1252 = vrot.lane.b32.xlu0 %v396, 52
      %v1253 = vpop.permute.xlu0 %1252
      %1254 = vrot.lane.b32.xlu0 %v400, 52
      %v1255 = vpop.permute.xlu0 %1254
      %1256 = vrot.lane.b32.xlu0 %v491, 52
      %v1257 = vpop.permute.xlu0 %1256
      %1258 = vrot.lane.b32.xlu0 %v404, 52
      %v1259 = vpop.permute.xlu0 %1258
      %1260 = vrot.lane.b32.xlu0 %v408, 52
      %v1261 = vpop.permute.xlu0 %1260
      %1262 = vrot.lane.b32.xlu0 %v494, 52
      %v1263 = vpop.permute.xlu0 %1262
      %vm1264 = vcmask 424960
      %v1265 = vsel %vm1264, %v1217, %v1219
      %v1266 = vsel %vm1264, %v1219, %v1221
      %v1267 = vsel %vm1264, %v1223, %v1225
      %v1268 = vsel %vm1264, %v1225, %v1227
      %v1269 = vsel %vm1264, %v1229, %v1231
      %v1270 = vsel %vm1264, %v1231, %v1233
      %v1271 = vsel %vm1264, %v1235, %v1237
      %v1272 = vsel %vm1264, %v1237, %v1239
      %v1273 = vsel %vm1264, %v1241, %v1243
      %v1274 = vsel %vm1264, %v1243, %v1245
      %v1275 = vsel %vm1264, %v1247, %v1249
      %v1276 = vsel %vm1264, %v1249, %v1251
      %v1277 = vsel %vm1264, %v1253, %v1255
      %v1278 = vsel %vm1264, %v1255, %v1257
      %v1279 = vsel %vm1264, %v1259, %v1261
      %v1280 = vsel %vm1264, %v1261, %v1263
      %1301 = vrot.lane.b32.xlu0 %v348, 29
      %v1302 = vpop.permute.xlu0 %1301
      %1303 = vrot.lane.b32.xlu0 %v352, 29
      %v1304 = vpop.permute.xlu0 %1303
      %1305 = vrot.lane.b32.xlu0 %v457, 29
      %v1306 = vpop.permute.xlu0 %1305
      %1307 = vrot.lane.b32.xlu0 %v553, 29
      %v1308 = vpop.permute.xlu0 %1307
      %1309 = vrot.lane.b32.xlu0 %v554, 29
      %v1310 = vpop.permute.xlu0 %1309
      %1311 = vrot.lane.b32.xlu0 %v557, 29
      %v1312 = vpop.permute.xlu0 %1311
      %1313 = vrot.lane.b32.xlu0 %v560, 29
      %v1314 = vpop.permute.xlu0 %1313
      %1315 = vrot.lane.b32.xlu0 %v563, 29
      %v1316 = vpop.permute.xlu0 %1315
      %1317 = vrot.lane.b32.xlu0 %v566, 29
      %v1318 = vpop.permute.xlu0 %1317
      %1319 = vrot.lane.b32.xlu0 %v466, 29
      %v1320 = vpop.permute.xlu0 %1319
      %1321 = vrot.lane.b32.xlu0 %v469, 29
      %v1322 = vpop.permute.xlu0 %1321
      %1323 = vrot.lane.b32.xlu0 %v472, 29
      %v1324 = vpop.permute.xlu0 %1323
      %1325 = vrot.lane.b32.xlu0 %v475, 29
      %v1326 = vpop.permute.xlu0 %1325
      %1327 = vrot.lane.b32.xlu0 %v478, 29
      %v1328 = vpop.permute.xlu0 %1327
      %1329 = vrot.lane.b32.xlu0 %v481, 29
      %v1330 = vpop.permute.xlu0 %1329
      %1331 = vrot.lane.b32.xlu0 %v483, 29
      %v1332 = vpop.permute.xlu0 %1331
      %1333 = vrot.lane.b32.xlu0 %v485, 29
      %v1334 = vpop.permute.xlu0 %1333
      %1335 = vrot.lane.b32.xlu0 %v488, 29
      %v1336 = vpop.permute.xlu0 %1335
      %1337 = vrot.lane.b32.xlu0 %v589, 29
      %v1338 = vpop.permute.xlu0 %1337
      %1339 = vrot.lane.b32.xlu0 %v590, 29
      %v1340 = vpop.permute.xlu0 %1339
      %1341 = vrot.lane.b32.xlu0 %v591, 29
      %v1342 = vpop.permute.xlu0 %1341
      %1343 = vrot.lane.b32.xlu0 %v593, 29
      %v1344 = vpop.permute.xlu0 %1343
      %1345 = vrot.lane.b32.xlu0 %v581, 29
      %v1346 = vpop.permute.xlu0 %1345
      %1347 = vrot.lane.b32.xlu0 %v584, 29
      %v1348 = vpop.permute.xlu0 %1347
      %vm1349 = vcmask 236544
      %v1350 = vsel %vm1349, %v1302, %v1304
      %v1351 = vsel %vm1349, %v1304, %v1306
      %v1352 = vsel %vm1349, %v1308, %v1310
      %v1353 = vsel %vm1349, %v1310, %v1312
      %v1354 = vsel %vm1349, %v1314, %v1316
      %v1355 = vsel %vm1349, %v1316, %v1318
      %v1356 = vsel %vm1349, %v1320, %v1322
      %v1357 = vsel %vm1349, %v1322, %v1324
      %v1358 = vsel %vm1349, %v1326, %v1328
      %v1359 = vsel %vm1349, %v1328, %v1330
      %v1360 = vsel %vm1349, %v1332, %v1334
      %v1361 = vsel %vm1349, %v1334, %v1336
      %v1362 = vsel %vm1349, %v1338, %v1340
      %v1363 = vsel %vm1349, %v1340, %v1342
      %v1364 = vsel %vm1349, %v1344, %v1346
      %v1365 = vsel %vm1349, %v1346, %v1348
      %v1382 = vld [vmem:[%s1] sm:$0xff]
      %v1383 = vld [vmem:[%s1 + $0x8] sm:$0xff]
      %v1384 = vld [vmem:[%s1 + $0x10] sm:$0xff]
      %v1385 = vld [vmem:[%s1 + $0x18] sm:$0xff]
      %v1386 = vld [vmem:[%s1 + $0x20] sm:$0xff]
      %v1387 = vld [vmem:[%s1 + $0x28] sm:$0xff]
      %v1388 = vld [vmem:[%s1 + $0x30] sm:$0xff]
      %v1389 = vld [vmem:[%s1 + $0x38] sm:$0xff]
      %v1390 = vld [vmem:[%s1 + $0x40] sm:$0xff]
      %v1391 = vld [vmem:[%s1 + $0x48] sm:$0xff]
      %v1392 = vld [vmem:[%s1 + $0x50] sm:$0xff]
      %v1393 = vld [vmem:[%s1 + $0x58] sm:$0xff]
      %v1394 = vld [vmem:[%s1 + $0x60] sm:$0xff]
      %v1395 = vld [vmem:[%s1 + $0x68] sm:$0xff]
      %v1396 = vld [vmem:[%s1 + $0x70] sm:$0xff]
      %v1397 = vld [vmem:[%s1 + $0x78] sm:$0xff]
      %v1398 = vld [vmem:[%s1 + $0x80] sm:$0xff]
      %v1399 = vld [vmem:[%s1 + $0x88] sm:$0xff]
      %v1400 = vld [vmem:[%s1 + $0x90] sm:$0xff]
      %v1401 = vld [vmem:[%s1 + $0x98] sm:$0xff]
      %v1402 = vld [vmem:[%s1 + $0xa0] sm:$0xff]
      %v1403 = vld [vmem:[%s1 + $0xa8] sm:$0xff]
      %v1404 = vld [vmem:[%s1 + $0xb0] sm:$0xff]
      %v1405 = vld [vmem:[%s1 + $0xb8] sm:$0xff]
      %v1406 = vld [vmem:[%s1 + $0xc0] sm:$0xff]
      %v1407 = vld [vmem:[%s1 + $0xc8] sm:$0xff]
      %v1408 = vld [vmem:[%s1 + $0xd0] sm:$0xff]
      %v1409 = vld [vmem:[%s1 + $0xd8] sm:$0xff]
      %v1410 = vld [vmem:[%s1 + $0xe0] sm:$0xff]
      %v1411 = vld [vmem:[%s1 + $0xe8] sm:$0xff]
      %v1412 = vld [vmem:[%s1 + $0xf0] sm:$0xff]
      %v1413 = vld [vmem:[%s1 + $0xf8] sm:$0xff]
      %v1414 = vld [vmem:[%s2] sm:$0xff]
      %v1415 = vld [vmem:[%s2 + $0x8] sm:$0xff]
      %v1416 = vld [vmem:[%s2 + $0x10] sm:$0xff]
      %v1417 = vld [vmem:[%s2 + $0x18] sm:$0xff]
      %v1418 = vld [vmem:[%s2 + $0x20] sm:$0xff]
      %v1419 = vld [vmem:[%s2 + $0x28] sm:$0xff]
      %v1420 = vld [vmem:[%s2 + $0x30] sm:$0xff]
      %v1421 = vld [vmem:[%s2 + $0x38] sm:$0xff]
      %1423 = vset.pattern.permute.xlu0 0
      %1424 = vperm.xlu0 %1423, %v1414
      %v1425 = vpop.permute.xlu0 %1424
      %1428 = vset.pattern.permute.xlu0 0
      %1429 = vperm.xlu0 %1428, %v1415
      %v1430 = vpop.permute.xlu0 %1429
      %1433 = vset.pattern.permute.xlu0 0
      %1434 = vperm.xlu0 %1433, %v1416
      %v1435 = vpop.permute.xlu0 %1434
      %1438 = vset.pattern.permute.xlu0 0
      %1439 = vperm.xlu0 %1438, %v1417
      %v1440 = vpop.permute.xlu0 %1439
      %1443 = vset.pattern.permute.xlu0 0
      %1444 = vperm.xlu0 %1443, %v1418
      %v1445 = vpop.permute.xlu0 %1444
      %1448 = vset.pattern.permute.xlu0 0
      %1449 = vperm.xlu0 %1448, %v1419
      %v1450 = vpop.permute.xlu0 %1449
      %1453 = vset.pattern.permute.xlu0 0
      %1454 = vperm.xlu0 %1453, %v1420
      %v1455 = vpop.permute.xlu0 %1454
      %1458 = vset.pattern.permute.xlu0 0
      %1459 = vperm.xlu0 %1458, %v1421
      %v1460 = vpop.permute.xlu0 %1459
      %v1494 = vunpack.c.l.b16 %v1382
      %v1495 = vunpack.c.h.b16 %v1382
      %v1496 = vunpack.c.l.b16 %v1383
      %v1497 = vunpack.c.h.b16 %v1383
      %v1498 = vunpack.c.l.b16 %v1384
      %v1499 = vunpack.c.h.b16 %v1384
      %v1500 = vunpack.c.l.b16 %v1385
      %v1501 = vunpack.c.h.b16 %v1385
      %v1502 = vunpack.c.l.b16 %v1386
      %v1503 = vunpack.c.h.b16 %v1386
      %v1504 = vunpack.c.l.b16 %v1387
      %v1505 = vunpack.c.h.b16 %v1387
      %v1506 = vunpack.c.l.b16 %v1388
      %v1507 = vunpack.c.h.b16 %v1388
      %v1508 = vunpack.c.l.b16 %v1389
      %v1509 = vunpack.c.h.b16 %v1389
      %v1510 = vunpack.c.l.b16 %v1390
      %v1511 = vunpack.c.h.b16 %v1390
      %v1512 = vunpack.c.l.b16 %v1391
      %v1513 = vunpack.c.h.b16 %v1391
      %v1514 = vunpack.c.l.b16 %v1392
      %v1515 = vunpack.c.h.b16 %v1392
      %v1516 = vunpack.c.l.b16 %v1393
      %v1517 = vunpack.c.h.b16 %v1393
      %v1518 = vunpack.c.l.b16 %v1394
      %v1519 = vunpack.c.h.b16 %v1394
      %v1520 = vunpack.c.l.b16 %v1395
      %v1521 = vunpack.c.h.b16 %v1395
      %v1522 = vunpack.c.l.b16 %v1396
      %v1523 = vunpack.c.h.b16 %v1396
      %v1524 = vunpack.c.l.b16 %v1397
      %v1525 = vunpack.c.h.b16 %v1397
      %v1526 = vunpack.c.l.b16 %v1398
      %v1527 = vunpack.c.h.b16 %v1398
      %v1528 = vunpack.c.l.b16 %v1399
      %v1529 = vunpack.c.h.b16 %v1399
      %v1530 = vunpack.c.l.b16 %v1400
      %v1531 = vunpack.c.h.b16 %v1400
      %v1532 = vunpack.c.l.b16 %v1401
      %v1533 = vunpack.c.h.b16 %v1401
      %v1534 = vunpack.c.l.b16 %v1402
      %v1535 = vunpack.c.h.b16 %v1402
      %v1536 = vunpack.c.l.b16 %v1403
      %v1537 = vunpack.c.h.b16 %v1403
      %v1538 = vunpack.c.l.b16 %v1404
      %v1539 = vunpack.c.h.b16 %v1404
      %v1540 = vunpack.c.l.b16 %v1405
      %v1541 = vunpack.c.h.b16 %v1405
      %v1542 = vunpack.c.l.b16 %v1406
      %v1543 = vunpack.c.h.b16 %v1406
      %v1544 = vunpack.c.l.b16 %v1407
      %v1545 = vunpack.c.h.b16 %v1407
      %v1546 = vunpack.c.l.b16 %v1408
      %v1547 = vunpack.c.h.b16 %v1408
      %v1548 = vunpack.c.l.b16 %v1409
      %v1549 = vunpack.c.h.b16 %v1409
      %v1550 = vunpack.c.l.b16 %v1410
      %v1551 = vunpack.c.h.b16 %v1410
      %v1552 = vunpack.c.l.b16 %v1411
      %v1553 = vunpack.c.h.b16 %v1411
      %v1554 = vunpack.c.l.b16 %v1412
      %v1555 = vunpack.c.h.b16 %v1412
      %v1556 = vunpack.c.l.b16 %v1413
      %v1557 = vunpack.c.h.b16 %v1413
      %v1558 = vpack.c.b16 %v1502, %v1494
      %v1559 = vpack.c.b16 %v1503, %v1495
      %v1560 = vpack.c.b16 %v1504, %v1496
      %v1561 = vpack.c.b16 %v1505, %v1497
      %v1562 = vpack.c.b16 %v1506, %v1498
      %v1563 = vpack.c.b16 %v1507, %v1499
      %v1564 = vpack.c.b16 %v1508, %v1500
      %v1565 = vpack.c.b16 %v1509, %v1501
      %v1566 = vpack.c.b16 %v1518, %v1510
      %v1567 = vpack.c.b16 %v1519, %v1511
      %v1568 = vpack.c.b16 %v1520, %v1512
      %v1569 = vpack.c.b16 %v1521, %v1513
      %v1570 = vpack.c.b16 %v1522, %v1514
      %v1571 = vpack.c.b16 %v1523, %v1515
      %v1572 = vpack.c.b16 %v1524, %v1516
      %v1573 = vpack.c.b16 %v1525, %v1517
      %v1574 = vpack.c.b16 %v1534, %v1526
      %v1575 = vpack.c.b16 %v1535, %v1527
      %v1576 = vpack.c.b16 %v1536, %v1528
      %v1577 = vpack.c.b16 %v1537, %v1529
      %v1578 = vpack.c.b16 %v1538, %v1530
      %v1579 = vpack.c.b16 %v1539, %v1531
      %v1580 = vpack.c.b16 %v1540, %v1532
      %v1581 = vpack.c.b16 %v1541, %v1533
      %v1582 = vpack.c.b16 %v1550, %v1542
      %v1583 = vpack.c.b16 %v1551, %v1543
      %v1584 = vpack.c.b16 %v1552, %v1544
      %v1585 = vpack.c.b16 %v1553, %v1545
      %v1586 = vpack.c.b16 %v1554, %v1546
      %v1587 = vpack.c.b16 %v1555, %v1547
      %v1588 = vpack.c.b16 %v1556, %v1548
      %v1589 = vpack.c.b16 %v1557, %v1549
      %vm1618 = vcmask 588800
      %v1620 = vsel %vm1618, %v1565, 0
      %v1623 = vsel %vm1618, %v1573, 0
      %v1626 = vsel %vm1618, %v1581, 0
      %v1629 = vsel %vm1618, %v1589, 0
      %v1632 = vsel %vm345, %v979, 0
      %v1635 = vsel %vm345, %v980, 0
      %1637 = vmatprep.subr.bf16.mxu0 %v352
      %1638 = vmatpush1.bf16.msra.mxu0 %v348
      %1639 = vmatprep.subr.bf16.mxu0 %v360
      %1640 = vmatpush1.bf16.msra.mxu0 %v356
      %1641 = vmatprep.subr.bf16.mxu0 %v368
      %1642 = vmatpush1.bf16.msra.mxu0 %v364
      %1643 = vmatprep.subr.bf16.mxu0 %v376
      %1644 = vmatpush1.bf16.msra.mxu0 %v372
      %1645 = vmatprep.subr.bf16.mxu0 %v384
      %1646 = vmatpush1.bf16.msra.mxu0 %v380
      %1647 = vmatprep.subr.bf16.mxu0 %v392
      %1648 = vmatpush1.bf16.msra.mxu0 %v388
      %1649 = vmatprep.subr.bf16.mxu0 %v400
      %1650 = vmatpush1.bf16.msra.mxu0 %v396
      %1651 = vmatprep.subr.bf16.mxu0 %v408
      %1652 = vmatpush1.bf16.msra.mxu0 %v404
      %1653 = vmatprep.subr.bf16.mxu0 %v1086
      %1654 = vmatpush1.bf16.msra.mxu0 %v1085
      %1655 = vmatprep.subr.bf16.mxu0 %v1088
      %1656 = vmatpush1.bf16.msra.mxu0 %v1087
      %1657 = vmatprep.subr.bf16.mxu0 %v1090
      %1658 = vmatpush1.bf16.msra.mxu0 %v1089
      %1659 = vmatprep.subr.bf16.mxu0 %v1092
      %1660 = vmatpush1.bf16.msra.mxu0 %v1091
      %1661 = vmatprep.subr.bf16.mxu0 %v1094
      %1662 = vmatpush1.bf16.msra.mxu0 %v1093
      %1663 = vmatprep.subr.bf16.mxu0 %v1096
      %1664 = vmatpush1.bf16.msra.mxu0 %v1095
      %1665 = vmatprep.subr.bf16.mxu0 %v1098
      %1666 = vmatpush1.bf16.msra.mxu0 %v1097
      %1667 = vmatprep.subr.bf16.mxu0 %v1100
      %1668 = vmatpush1.bf16.msra.mxu0 %v1099
      %1669 = vmatprep.mubr.bf16.mxu0 %v1559
      %1670 = vmatmul.mubr.bf16.gmra.mrb[0].mxu0 %v1558
      %v1671 = vpop.f32.mrb[0].mxu0
      %v1672 = vadd.f32 %v1425, %v1671
      %v1673 = vpop.f32.mrb[0].mxu0
      %v1674 = vadd.f32 %v1425, %v1673
      %v1675 = vpop.f32.mrb[0].mxu0
      %v1676 = vadd.f32 %v1430, %v1675
      %v1677 = vpop.f32.mrb[0].mxu0
      %v1678 = vadd.f32 %v1430, %v1677
      %1679 = vmatprep.mubr.bf16.mxu0 %v1567
      %1680 = vmatmul.mubr.bf16.gmra.mrb[0].mxu0 %v1566
      %v1681 = vpop.f32.mrb[0].mxu0
      %v1682 = vadd.f32 %v1435, %v1681
      %v1683 = vpop.f32.mrb[0].mxu0
      %v1684 = vadd.f32 %v1435, %v1683
      %v1685 = vpop.f32.mrb[0].mxu0
      %v1686 = vadd.f32 %v1440, %v1685
      %v1687 = vpop.f32.mrb[0].mxu0
      %v1688 = vadd.f32 %v1440, %v1687
      %1689 = vmatprep.mubr.bf16.mxu0 %v1575
      %1690 = vmatmul.mubr.bf16.gmra.mrb[0].mxu0 %v1574
      %v1691 = vpop.f32.mrb[0].mxu0
      %v1692 = vadd.f32 %v1445, %v1691
      %v1693 = vpop.f32.mrb[0].mxu0
      %v1694 = vadd.f32 %v1445, %v1693
      %v1695 = vpop.f32.mrb[0].mxu0
      %v1696 = vadd.f32 %v1450, %v1695
      %v1697 = vpop.f32.mrb[0].mxu0
      %v1698 = vadd.f32 %v1450, %v1697
      %1699 = vmatprep.mubr.bf16.mxu0 %v1583
      %1700 = vmatmul.mubr.bf16.gmra.mrb[0].mxu0 %v1582
      %v1701 = vpop.f32.mrb[0].mxu0
      %v1702 = vadd.f32 %v1455, %v1701
      %v1703 = vpop.f32.mrb[0].mxu0
      %v1704 = vadd.f32 %v1455, %v1703
      %v1705 = vpop.f32.mrb[0].mxu0
      %v1706 = vadd.f32 %v1460, %v1705
      %v1707 = vpop.f32.mrb[0].mxu0
      %v1708 = vadd.f32 %v1460, %v1707
      %1709 = vdwg.mxu0
      %1710 = vmatprep.subr.bf16.mxu0 %v1182
      %1711 = vmatpush1.bf16.msra.mxu0 %v1181
      %1712 = vmatprep.subr.bf16.mxu0 %v1184
      %1713 = vmatpush1.bf16.msra.mxu0 %v1183
      %1714 = vmatprep.subr.bf16.mxu0 %v1186
      %1715 = vmatpush1.bf16.msra.mxu0 %v1185
      %1716 = vmatprep.subr.bf16.mxu0 %v1188
      %1717 = vmatpush1.bf16.msra.mxu0 %v1187
      %1718 = vmatprep.subr.bf16.mxu0 %v1190
      %1719 = vmatpush1.bf16.msra.mxu0 %v1189
      %1720 = vmatprep.subr.bf16.mxu0 %v1192
      %1721 = vmatpush1.bf16.msra.mxu0 %v1191
      %1722 = vmatprep.subr.bf16.mxu0 %v1194
      %1723 = vmatpush1.bf16.msra.mxu0 %v1193
      %1724 = vmatprep.subr.bf16.mxu0 %v1196
      %1725 = vmatpush1.bf16.msra.mxu0 %v1195
      %1726 = vmatprep.subr.bf16.mxu0 %v1266
      %1727 = vmatpush1.bf16.msra.mxu0 %v1265
      %1728 = vmatprep.subr.bf16.mxu0 %v1268
      %1729 = vmatpush1.bf16.msra.mxu0 %v1267
      %1730 = vmatprep.subr.bf16.mxu0 %v1270
      %1731 = vmatpush1.bf16.msra.mxu0 %v1269
      %1732 = vmatprep.subr.bf16.mxu0 %v1272
      %1733 = vmatpush1.bf16.msra.mxu0 %v1271
      %1734 = vmatprep.subr.bf16.mxu0 %v1274
      %1735 = vmatpush1.bf16.msra.mxu0 %v1273
      %1736 = vmatprep.subr.bf16.mxu0 %v1276
      %1737 = vmatpush1.bf16.msra.mxu0 %v1275
      %1738 = vmatprep.subr.bf16.mxu0 %v1278
      %1739 = vmatpush1.bf16.msra.mxu0 %v1277
      %1740 = vmatprep.subr.bf16.mxu0 %v1280
      %1741 = vmatpush1.bf16.msra.mxu0 %v1279
      %1742 = vmatprep.mubr.bf16.mxu0 %v1561
      %1743 = vmatmul.mubr.bf16.gmra.mrb[0].mxu0 %v1560
      %v1744 = vpop.f32.mrb[0].mxu0
      %v1745 = vadd.f32 %v1672, %v1744
      %v1746 = vpop.f32.mrb[0].mxu0
      %v1747 = vadd.f32 %v1674, %v1746
      %v1748 = vpop.f32.mrb[0].mxu0
      %v1749 = vadd.f32 %v1676, %v1748
      %v1750 = vpop.f32.mrb[0].mxu0
      %v1751 = vadd.f32 %v1678, %v1750
      %1752 = vmatprep.mubr.bf16.mxu0 %v1569
      %1753 = vmatmul.mubr.bf16.gmra.mrb[0].mxu0 %v1568
      %v1754 = vpop.f32.mrb[0].mxu0
      %v1755 = vadd.f32 %v1682, %v1754
      %v1756 = vpop.f32.mrb[0].mxu0
      %v1757 = vadd.f32 %v1684, %v1756
      %v1758 = vpop.f32.mrb[0].mxu0
      %v1759 = vadd.f32 %v1686, %v1758
      %v1760 = vpop.f32.mrb[0].mxu0
      %v1761 = vadd.f32 %v1688, %v1760
      %1762 = vmatprep.mubr.bf16.mxu0 %v1577
      %1763 = vmatmul.mubr.bf16.gmra.mrb[0].mxu0 %v1576
      %v1764 = vpop.f32.mrb[0].mxu0
      %v1765 = vadd.f32 %v1692, %v1764
      %v1766 = vpop.f32.mrb[0].mxu0
      %v1767 = vadd.f32 %v1694, %v1766
      %v1768 = vpop.f32.mrb[0].mxu0
      %v1769 = vadd.f32 %v1696, %v1768
      %v1770 = vpop.f32.mrb[0].mxu0
      %v1771 = vadd.f32 %v1698, %v1770
      %1772 = vmatprep.mubr.bf16.mxu0 %v1585
      %1773 = vmatmul.mubr.bf16.gmra.mrb[0].mxu0 %v1584
      %v1774 = vpop.f32.mrb[0].mxu0
      %v1775 = vadd.f32 %v1702, %v1774
      %v1776 = vpop.f32.mrb[0].mxu0
      %v1777 = vadd.f32 %v1704, %v1776
      %v1778 = vpop.f32.mrb[0].mxu0
      %v1779 = vadd.f32 %v1706, %v1778
      %v1780 = vpop.f32.mrb[0].mxu0
      %v1781 = vadd.f32 %v1708, %v1780
      %1782 = vdwg.mxu0
      %1783 = vmatprep.subr.bf16.mxu0 %v1351
      %1784 = vmatpush1.bf16.msra.mxu0 %v1350
      %1785 = vmatprep.subr.bf16.mxu0 %v1353
      %1786 = vmatpush1.bf16.msra.mxu0 %v1352
      %1787 = vmatprep.subr.bf16.mxu0 %v1355
      %1788 = vmatpush1.bf16.msra.mxu0 %v1354
      %1789 = vmatprep.subr.bf16.mxu0 %v1357
      %1790 = vmatpush1.bf16.msra.mxu0 %v1356
      %1791 = vmatprep.subr.bf16.mxu0 %v1359
      %1792 = vmatpush1.bf16.msra.mxu0 %v1358
      %1793 = vmatprep.subr.bf16.mxu0 %v1361
      %1794 = vmatpush1.bf16.msra.mxu0 %v1360
      %1795 = vmatprep.subr.bf16.mxu0 %v1363
      %1796 = vmatpush1.bf16.msra.mxu0 %v1362
      %1797 = vmatprep.subr.bf16.mxu0 %v1365
      %1798 = vmatpush1.bf16.msra.mxu0 %v1364
      %1799 = vmatprep.subr.bf16.mxu0 %v654
      %1800 = vmatpush1.bf16.msra.mxu0 %v650
      %1801 = vmatprep.subr.bf16.mxu0 %v660
      %1802 = vmatpush1.bf16.msra.mxu0 %v656
      %1803 = vmatprep.subr.bf16.mxu0 %v666
      %1804 = vmatpush1.bf16.msra.mxu0 %v662
      %1805 = vmatprep.subr.bf16.mxu0 %v672
      %1806 = vmatpush1.bf16.msra.mxu0 %v668
      %1807 = vmatprep.subr.bf16.mxu0 %v678
      %1808 = vmatpush1.bf16.msra.mxu0 %v674
      %1809 = vmatprep.subr.bf16.mxu0 %v684
      %1810 = vmatpush1.bf16.msra.mxu0 %v680
      %1811 = vmatprep.subr.bf16.mxu0 %v690
      %1812 = vmatpush1.bf16.msra.mxu0 %v686
      %1813 = vmatprep.subr.bf16.mxu0 %v697
      %1814 = vmatpush1.bf16.msra.mxu0 %v693
      %1815 = vmatprep.mubr.bf16.mxu0 %v1563
      %1816 = vmatmul.mubr.bf16.gmra.mrb[0].mxu0 %v1562
      %v1817 = vpop.f32.mrb[0].mxu0
      %v1818 = vadd.f32 %v1745, %v1817
      %v1819 = vpop.f32.mrb[0].mxu0
      %v1820 = vadd.f32 %v1747, %v1819
      %v1821 = vpop.f32.mrb[0].mxu0
      %v1822 = vadd.f32 %v1749, %v1821
      %v1823 = vpop.f32.mrb[0].mxu0
      %v1824 = vadd.f32 %v1751, %v1823
      %1825 = vmatprep.mubr.bf16.mxu0 %v1571
      %1826 = vmatmul.mubr.bf16.gmra.mrb[0].mxu0 %v1570
      %v1827 = vpop.f32.mrb[0].mxu0
      %v1828 = vadd.f32 %v1755, %v1827
      %v1829 = vpop.f32.mrb[0].mxu0
      %v1830 = vadd.f32 %v1757, %v1829
      %v1831 = vpop.f32.mrb[0].mxu0
      %v1832 = vadd.f32 %v1759, %v1831
      %v1833 = vpop.f32.mrb[0].mxu0
      %v1834 = vadd.f32 %v1761, %v1833
      %1835 = vmatprep.mubr.bf16.mxu0 %v1579
      %1836 = vmatmul.mubr.bf16.gmra.mrb[0].mxu0 %v1578
      %v1837 = vpop.f32.mrb[0].mxu0
      %v1838 = vadd.f32 %v1765, %v1837
      %v1839 = vpop.f32.mrb[0].mxu0
      %v1840 = vadd.f32 %v1767, %v1839
      %v1841 = vpop.f32.mrb[0].mxu0
      %v1842 = vadd.f32 %v1769, %v1841
      %v1843 = vpop.f32.mrb[0].mxu0
      %v1844 = vadd.f32 %v1771, %v1843
      %1845 = vmatprep.mubr.bf16.mxu0 %v1587
      %1846 = vmatmul.mubr.bf16.gmra.mrb[0].mxu0 %v1586
      %v1847 = vpop.f32.mrb[0].mxu0
      %v1848 = vadd.f32 %v1775, %v1847
      %v1849 = vpop.f32.mrb[0].mxu0
      %v1850 = vadd.f32 %v1777, %v1849
      %v1851 = vpop.f32.mrb[0].mxu0
      %v1852 = vadd.f32 %v1779, %v1851
      %v1853 = vpop.f32.mrb[0].mxu0
      %v1854 = vadd.f32 %v1781, %v1853
      %1855 = vdwg.mxu0
      %1856 = vmatprep.subr.bf16.mxu0 %v843
      %1857 = vmatpush1.bf16.msra.mxu0 %v839
      %1858 = vmatprep.subr.bf16.mxu0 %v850
      %1859 = vmatpush1.bf16.msra.mxu0 %v846
      %1860 = vmatprep.subr.bf16.mxu0 %v858
      %1861 = vmatpush1.bf16.msra.mxu0 %v854
      %1862 = vmatprep.subr.bf16.mxu0 %v866
      %1863 = vmatpush1.bf16.msra.mxu0 %v862
      %1864 = vmatprep.subr.bf16.mxu0 %v874
      %1865 = vmatpush1.bf16.msra.mxu0 %v870
      %1866 = vmatprep.subr.bf16.mxu0 %v882
      %1867 = vmatpush1.bf16.msra.mxu0 %v878
      %1868 = vmatprep.subr.bf16.mxu0 %v890
      %1869 = vmatpush1.bf16.msra.mxu0 %v886
      %1870 = vmatprep.subr.bf16.mxu0 %v898
      %1871 = vmatpush1.bf16.msra.mxu0 %v894
      %1872 = vmatprep.subr.bf16.mxu0 %v987
      %1873 = vmatpush1.bf16.msra.mxu0 %v983
      %1874 = vmatprep.subr.bf16.mxu0 %v995
      %1875 = vmatpush1.bf16.msra.mxu0 %v991
      %1876 = vmatprep.subr.bf16.mxu0 %v1003
      %1877 = vmatpush1.bf16.msra.mxu0 %v999
      %1878 = vmatprep.subr.bf16.mxu0 %v1011
      %1879 = vmatpush1.bf16.msra.mxu0 %v1007
      %1880 = vmatprep.subr.bf16.mxu0 %v1635
      %1881 = vmatpush1.bf16.msra.mxu0 %v1632
      %1882 = vmatprep.subr.bf16.mxu0 0
      %1883 = vmatpush1.bf16.msra.mxu0 0
      %1884 = vmatprep.subr.bf16.mxu0 0
      %1885 = vmatpush1.bf16.msra.mxu0 0
      %1886 = vmatprep.subr.bf16.mxu0 0
      %1887 = vmatpush1.bf16.msra.mxu0 0
      %1888 = vmatprep.mubr.bf16.mxu0 %v1620
      %1889 = vmatmul.mubr.bf16.gmra.mrb[0].mxu0 %v1564
      %v1890 = vpop.f32.mrb[0].mxu0
      %v1891 = vadd.f32 %v1818, %v1890
      %v1892 = vpop.f32.mrb[0].mxu0
      %v1893 = vadd.f32 %v1820, %v1892
      %v1894 = vpop.f32.mrb[0].mxu0
      %v1895 = vadd.f32 %v1822, %v1894
      %v1896 = vpop.f32.mrb[0].mxu0
      %v1897 = vadd.f32 %v1824, %v1896
      %1898 = vmatprep.mubr.bf16.mxu0 %v1623
      %1899 = vmatmul.mubr.bf16.gmra.mrb[0].mxu0 %v1572
      %v1900 = vpop.f32.mrb[0].mxu0
      %v1901 = vadd.f32 %v1828, %v1900
      %v1902 = vpop.f32.mrb[0].mxu0
      %v1903 = vadd.f32 %v1830, %v1902
      %v1904 = vpop.f32.mrb[0].mxu0
      %v1905 = vadd.f32 %v1832, %v1904
      %v1906 = vpop.f32.mrb[0].mxu0
      %v1907 = vadd.f32 %v1834, %v1906
      %1908 = vmatprep.mubr.bf16.mxu0 %v1626
      %1909 = vmatmul.mubr.bf16.gmra.mrb[0].mxu0 %v1580
      %v1910 = vpop.f32.mrb[0].mxu0
      %v1911 = vadd.f32 %v1838, %v1910
      %v1912 = vpop.f32.mrb[0].mxu0
      %v1913 = vadd.f32 %v1840, %v1912
      %v1914 = vpop.f32.mrb[0].mxu0
      %v1915 = vadd.f32 %v1842, %v1914
      %v1916 = vpop.f32.mrb[0].mxu0
      %v1917 = vadd.f32 %v1844, %v1916
      %1918 = vmatprep.mubr.bf16.mxu0 %v1629
      %1919 = vmatmul.mubr.bf16.gmra.mrb[0].mxu0 %v1588
      %v1920 = vpop.f32.mrb[0].mxu0
      %v1921 = vadd.f32 %v1848, %v1920
      %v1922 = vpop.f32.mrb[0].mxu0
      %v1923 = vadd.f32 %v1850, %v1922
      %v1924 = vpop.f32.mrb[0].mxu0
      %v1925 = vadd.f32 %v1852, %v1924
      %v1926 = vpop.f32.mrb[0].mxu0
      %v1927 = vadd.f32 %v1854, %v1926
      %1928 = vdwg.mxu0
      %v1929 = vxor.u32 %v1911, 2147483648
      %v1930 = vxor.u32 %v1913, 2147483648
      %v1931 = vxor.u32 %v1915, 2147483648
      %v1932 = vxor.u32 %v1917, 2147483648
      %v1933 = vxor.u32 %v1921, 2147483648
      %v1934 = vxor.u32 %v1923, 2147483648
      %v1935 = vxor.u32 %v1925, 2147483648
      %v1936 = vxor.u32 %v1927, 2147483648
      %v1937 = vmul.f32 %v1929, 1.442695
      %v1938 = vpow.pop %v1937
      %v1939 = vmul.f32 %v1930, 1.442695
      %v1940 = vpow.pop %v1939
      %v1941 = vmul.f32 %v1931, 1.442695
      %v1942 = vpow.pop %v1941
      %v1943 = vmul.f32 %v1932, 1.442695
      %v1944 = vpow.pop %v1943
      %v1945 = vmul.f32 %v1933, 1.442695
      %v1946 = vpow.pop %v1945
      %v1947 = vmul.f32 %v1934, 1.442695
      %v1948 = vpow.pop %v1947
      %v1949 = vmul.f32 %v1935, 1.442695
      %v1950 = vpow.pop %v1949
      %v1951 = vmul.f32 %v1936, 1.442695
      %v1952 = vpow.pop %v1951
      %v1953 = vadd.f32 %v1938, 1.0
      %v1954 = vadd.f32 %v1940, 1.0
      %v1955 = vadd.f32 %v1942, 1.0
      %v1956 = vadd.f32 %v1944, 1.0
      %v1957 = vadd.f32 %v1946, 1.0
      %v1958 = vadd.f32 %v1948, 1.0
      %v1959 = vadd.f32 %v1950, 1.0
      %v1960 = vadd.f32 %v1952, 1.0
      %v1961 = vrcp.pop %v1953
      %v1962 = vmul.f32 1.0, %v1961
      %v1963 = vrcp.pop %v1954
      %v1964 = vmul.f32 1.0, %v1963
      %v1965 = vrcp.pop %v1955
      %v1966 = vmul.f32 1.0, %v1965
      %v1967 = vrcp.pop %v1956
      %v1968 = vmul.f32 1.0, %v1967
      %v1969 = vrcp.pop %v1957
      %v1970 = vmul.f32 1.0, %v1969
      %v1971 = vrcp.pop %v1958
      %v1972 = vmul.f32 1.0, %v1971
      %v1973 = vrcp.pop %v1959
      %v1974 = vmul.f32 1.0, %v1973
      %v1975 = vrcp.pop %v1960
      %v1976 = vmul.f32 1.0, %v1975
      %v1977 = vmul.f32 %v1891, %v1962
      %v1978 = vmul.f32 %v1893, %v1964
      %v1979 = vmul.f32 %v1895, %v1966
      %v1980 = vmul.f32 %v1897, %v1968
      %v1981 = vmul.f32 %v1901, %v1970
      %v1982 = vmul.f32 %v1903, %v1972
      %v1983 = vmul.f32 %v1905, %v1974
      %v1984 = vmul.f32 %v1907, %v1976
      %v1985 = vpack.c.bf16 %v1979, %v1977
      %v1986 = vpack.c.bf16 %v1980, %v1978
      %v1987 = vpack.c.bf16 %v1983, %v1981
      %v1988 = vpack.c.bf16 %v1984, %v1982
      %v1993 = vunpack.c.l.b16 %v1985
      %v1994 = vunpack.c.l.b16 %v1986
      %v1995 = vunpack.c.h.b16 %v1985
      %v1996 = vunpack.c.h.b16 %v1986
      %v1997 = vunpack.c.l.b16 %v1987
      %v1998 = vunpack.c.l.b16 %v1988
      %v1999 = vunpack.c.h.b16 %v1987
      %v2000 = vunpack.c.h.b16 %v1988
      %v2001 = vpack.c.b16 %v1994, %v1993
      %v2002 = vpack.c.b16 %v1996, %v1995
      %v2003 = vpack.c.b16 %v1998, %v1997
      %v2004 = vpack.c.b16 %v2000, %v1999
      %2009 = vst [vmem:[%s192] sm:$0xff] %v2001
      %2010 = vst [vmem:[%s192 + $0x8] sm:$0xff] %v2002
      %2011 = vst [vmem:[%s192 + $0x10] sm:$0xff] %v2003
      %2012 = vst [vmem:[%s192 + $0x18] sm:$0xff] %v2004
      %s2013 = smul.u32 2, %s19
      %p2014 = scmp.lt.s32.totalorder %s18, 1
      %s2015 = scalar_select %p2014, %s18, 1
      %p2016 = scmp.lt.s32.totalorder %s2013, 1
      %s2017 = scalar_select %p2016, %s2013, 1
      %s2018 = smul.addr %s2015, 8
      %s2019 = sadd.s32 %s2017, %s2018
      %s2020 = smul.addr %s2019, 4
      %s2021 = scalar_lea.vmem %s3, %s2020
      // Predicated region
      $region33: #{deep_griffin_lim_forward.17} parent=31 // pred_check
        %p2022 = pneg %p114
      $region34: #{deep_griffin_lim_forward.17} parent=31 // pred_check_branch
        %2024 = sbr.rel (%p2022) target = $region36
      $region35: #{deep_griffin_lim_forward.17} parent=31 // pred_region
        %s2025 = smul.u32 2, %s19
      $region36: #{deep_griffin_lim_forward.17} parent=31 // pred_fallthru
        _
    $region32: #{deep_griffin_lim_forward.17} parent=5 // pred_fallthru
      _
    %p2026 = scmp.le.s32.totalorder 2, %s9
    // Predicated region
    $region37: #{deep_griffin_lim_forward.17} parent=5 // pred_check
      %p2027 = pneg %p2026
    $region38: #{deep_griffin_lim_forward.17} parent=5 // pred_check_branch
      %2029 = sbr.rel (%p2027) target = $region40
    $region39: #{deep_griffin_lim_forward.17} parent=5 // pred_region
      %s2030 = ssub.s32 %s9, 2
      // Predicated region
      $region41: #{deep_griffin_lim_forward.17} parent=39 // pred_check
        %p2031 = pneg %p120
      $region42: #{deep_griffin_lim_forward.17} parent=39 // pred_check_branch
        %2033 = sbr.rel (%p2031) target = $region44
      $region43: #{deep_griffin_lim_forward.17} parent=39 // pred_region
        %s2034 = smul.u32 2, %s21
        %p2035 = scmp.lt.s32.totalorder %s20, 1
        %s2036 = scalar_select %p2035, %s20, 1
        %p2037 = scmp.lt.s32.totalorder %s2034, 1
        %s2038 = scalar_select %p2037, %s2034, 1
        %s2039 = smul.addr %s2036, 8
        %s2040 = sadd.s32 %s2038, %s2039
        %s2041 = smul.addr %s2040, 4
        %s2042 = scalar_lea.vmem %s3, %s2041
      $region44: #{deep_griffin_lim_forward.17} parent=39 // pred_fallthru
        _
    $region40: #{deep_griffin_lim_forward.17} parent=5 // pred_fallthru
      _
  $region6: #{deep_griffin_lim_forward.17} parent=0 // loop_footer
    %s13 = sadd.s32 1, %s9
  $region7: #{deep_griffin_lim_forward.17} parent=0 // loop_footer_branch
    %8 = sbr.rel target = $region3
  $region8: #{deep_griffin_lim_forward.17} parent=0 // loop_exit
    _

</llo_original>
